<compile_context>
chip_gen: v7x
topology: tpu7x:2x2x1
jax: 0.10.0
libtpu: 0.0.40
codegen_flags: <defaults>
</compile_context>

<pallas_src>
import jax
import jax.numpy as jnp
import numpy as np
from jax.experimental import pallas as pl
from jax.experimental.pallas import tpu as pltpu


def _sppf_kernel(x_ref, w1_ref, b1_ref, w2_ref, b2_ref, o_ref, ph_ref, pw_ref):
    """Processes one batch element (grid over N).

    x_ref : (1, H, W, C1)   input tile (NHWC, f32)
    w1_ref: (C1, C_)        cv1 1x1 weight, BN-scale folded, bf16
    b1_ref: (1, C_)         cv1 folded BN bias, f32
    w2_ref: (4, C_, C2)     cv2 1x1 weight split along the concat axis, bf16
    b2_ref: (1, C2)         cv2 folded BN bias, f32
    o_ref : (1, H, W, C2)   output tile
    ph_ref: (H+4, W, C_)    VMEM scratch: H-direction -inf padded buffer
    pw_ref: (H, W+4, C_)    VMEM scratch: W-direction -inf padded buffer
    """
    x = x_ref[0]                               # (H, W, C1)
    H, W, C1 = x.shape
    C_ = w1_ref.shape[1]
    C2 = w2_ref.shape[2]

    # ---- cv1: 1x1 conv == channel matmul (bf16 in, f32 acc), bias + SiLU ----
    y = jnp.dot(x.reshape(H * W, C1).astype(jnp.bfloat16), w1_ref[...],
                preferred_element_type=jnp.float32)
    y = y + b1_ref[...]
    feats0 = y * jax.nn.sigmoid(y)             # (H*W, C_) f32

    # ---- -inf borders for the pooling scratch (thin strips, written once per
    #      grid step; the pool body only overwrites the interior) -------------
    neg = jnp.float32(-jnp.inf)
    ph_ref[0:2, :, :] = jnp.full((2, W, C_), neg, jnp.float32)
    ph_ref[H + 2:H + 4, :, :] = jnp.full((2, W, C_), neg, jnp.float32)
    pw_ref[:, 0:2, :] = jnp.full((H, 2, C_), neg, jnp.float32)
    pw_ref[:, W + 2:W + 4, :] = jnp.full((H, 2, C_), neg, jnp.float32)

    def max5(v0, v1, v2, v3, v4):
        # Tree-shaped 5-way max: depth 3 instead of a serial chain of 4.
        return jnp.maximum(jnp.maximum(jnp.maximum(v0, v1),
                                       jnp.maximum(v2, v3)), v4)

    def maxpool5(v2d):
        """5x5 max pool, stride 1, -inf padding 2 (separable: H then W)."""
        ph_ref[2:H + 2, :, :] = v2d.reshape(H, W, C_)
        t = max5(ph_ref[0:H, :, :],            # shifts along untiled leading dim
                 ph_ref[1:H + 1, :, :],
                 ph_ref[2:H + 2, :, :],
                 ph_ref[3:H + 3, :, :],
                 ph_ref[4:H + 4, :, :])
        pw_ref[:, 2:W + 2, :] = t
        r = max5(pw_ref[:, 0:W, :],            # shifts along sublane dim
                 pw_ref[:, 1:W + 1, :],
                 pw_ref[:, 2:W + 2, :],
                 pw_ref[:, 3:W + 3, :],
                 pw_ref[:, 4:W + 4, :])
        return r.reshape(H * W, C_)

    feats1 = maxpool5(feats0)
    feats2 = maxpool5(feats1)
    feats3 = maxpool5(feats2)

    # ---- cv2: concat along channels == sum of 4 matmuls over K-slices of w2 -
    acc = jnp.dot(feats0.astype(jnp.bfloat16), w2_ref[0],
                  preferred_element_type=jnp.float32)
    acc = acc + jnp.dot(feats1.astype(jnp.bfloat16), w2_ref[1],
                        preferred_element_type=jnp.float32)
    acc = acc + jnp.dot(feats2.astype(jnp.bfloat16), w2_ref[2],
                        preferred_element_type=jnp.float32)
    acc = acc + jnp.dot(feats3.astype(jnp.bfloat16), w2_ref[3],
                        preferred_element_type=jnp.float32)
    z = acc + b2_ref[...]
    z = z * jax.nn.sigmoid(z)                  # SiLU
    o_ref[0] = z.reshape(H, W, C2).astype(o_ref.dtype)


def sppf_pallas_nhwc(x_nhwc, params):
    """SPPF forward on an NHWC tensor. x_nhwc: (N, H, W, C1) float32."""
    w1f, b1, w2f, b2 = params                  # w1f/w2f bf16, b1/b2 f32
    N, H, W, C1 = x_nhwc.shape
    C_ = w1f.shape[1]
    C2 = w2f.shape[2]

    return pl.pallas_call(
        _sppf_kernel,
        out_shape=jax.ShapeDtypeStruct((N, H, W, C2), x_nhwc.dtype),
        grid=(N,),
        in_specs=[
            pl.BlockSpec((1, H, W, C1), lambda n: (n, 0, 0, 0)),
            pl.BlockSpec((C1, C_), lambda n: (0, 0)),
            pl.BlockSpec((1, C_), lambda n: (0, 0)),
            pl.BlockSpec((4, C_, C2), lambda n: (0, 0, 0)),
            pl.BlockSpec((1, C2), lambda n: (0, 0)),
        ],
        out_specs=pl.BlockSpec((1, H, W, C2), lambda n: (n, 0, 0, 0)),
        scratch_shapes=[
            pltpu.VMEM((H + 4, W, C_), jnp.float32),   # H-padded pool buffer
            pltpu.VMEM((H, W + 4, C_), jnp.float32),   # W-padded pool buffer
        ],
        compiler_params=pltpu.CompilerParams(dimension_semantics=("parallel",)),
    )(x_nhwc, w1f, b1, w2f, b2)


def sppf_pallas(x_nchw, params):
    """SPPF forward with the PyTorch NCHW interface. x_nchw: (N, C1, H, W)."""
    x = jnp.transpose(x_nchw, (0, 2, 3, 1))    # NCHW -> NHWC
    out = sppf_pallas_nhwc(x, params)
    return jnp.transpose(out, (0, 3, 1, 2))    # NHWC -> NCHW


# --------------------------- parameter construction ---------------------------

def make_params(key, c1, c2, eps=1e-5):
    """Returns (params_ref_f32, params_kernel). BN is eval-mode, folded."""
    c_ = c1 // 2
    ks = jax.random.split(key, 10)
    w1 = jax.random.normal(ks[0], (c1, c_), jnp.float32) * 0.2       # cv1 1x1, (Cin, Cout)
    w2 = jax.random.normal(ks[1], (4 * c_, c2), jnp.float32) * 0.2   # cv2 1x1, (4*C_, Cout)

    gamma1 = 1.0 + 0.1 * jax.random.normal(ks[2], (c_,), jnp.float32)
    beta1 = 0.05 * jax.random.normal(ks[3], (c_,), jnp.float32)
    mean1 = 0.02 * jax.random.normal(ks[4], (c_,), jnp.float32)
    var1 = 0.9 + 0.1 * jax.random.uniform(ks[5], (c_,), jnp.float32)

    gamma2 = 1.0 + 0.1 * jax.random.normal(ks[6], (c2,), jnp.float32)
    beta2 = 0.05 * jax.random.normal(ks[7], (c2,), jnp.float32)
    mean2 = 0.02 * jax.random.normal(ks[8], (c2,), jnp.float32)
    var2 = 0.9 + 0.1 * jax.random.uniform(ks[9], (c2,), jnp.float32)

    # Fold eval-mode BN into per-output-channel scale/bias, scale into weights.
    s1 = gamma1 / jnp.sqrt(var1 + eps)
    b1 = beta1 - mean1 * s1
    s2 = gamma2 / jnp.sqrt(var2 + eps)
    b2 = beta2 - mean2 * s2
    w1f = w1 * s1[None, :]
    w2f = w2 * s2[None, :]

    params_ref = (w1f, b1.reshape(1, c_), w2f, b2.reshape(1, c2))
    params_kernel = (w1f.astype(jnp.bfloat16), b1.reshape(1, c_),
                     w2f.reshape(4, c_, c2).astype(jnp.bfloat16),
                     b2.reshape(1, c2))
    return params_ref, params_kernel


# ------------------------------- pure-JAX reference ----------------------------

def _maxpool5_ref(v_nhwc):
    return jax.lax.reduce_window(
        v_nhwc, -jnp.inf, jax.lax.max,
        window_dimensions=(1, 5, 5, 1),
        window_strides=(1, 1, 1, 1),
        padding=((0, 0), (2, 2), (2, 2), (0, 0)))


def sppf_ref(x_nchw, params_f32):
    w1f, b1, w2f, b2 = params_f32
    x = jnp.transpose(x_nchw, (0, 2, 3, 1))    # NHWC

    def silu(v):
        return v * jax.nn.sigmoid(v)

    y = silu(jnp.einsum("nhwc,cd->nhwd", x, w1f) + b1.reshape(1, 1, 1, -1))
    y1 = _maxpool5_ref(y)
    y2 = _maxpool5_ref(y1)
    y3 = _maxpool5_ref(y2)
    cat = jnp.concatenate([y, y1, y2, y3], axis=-1)
    z = silu(jnp.einsum("nhwc,cd->nhwd", cat, w2f) + b2.reshape(1, 1, 1, -1))
    return jnp.transpose(z, (0, 3, 1, 2))


if __name__ == "__main__":
    key = jax.random.PRNGKey(0)
    kx, kp = jax.random.split(key)

    N, C1, C2, H, W = 2, 8, 8, 16, 16          # c_ = c1 // 2 = 4
    x = jax.random.normal(kx, (N, C1, H, W), jnp.float32)
    params_f32, params_kernel = make_params(kp, C1, C2)

    out = jax.block_until_ready(sppf_pallas(x, params_kernel))
    ref = jax.block_until_ready(sppf_ref(x, params_f32))

    # bf16 matmul inputs inside the kernel vs. f32 reference -> loose-ish tolerance.
    np.testing.assert_allclose(np.asarray(out), np.asarray(ref), atol=2e-2, rtol=2e-2)

    print("KERNEL_OK")
</pallas_src>

<mosaic_0001>
module attributes {stable_mosaic.version = 11 : i64} {
  func.func @_sppf_kernel(%arg0: i32, %arg1: memref<1x16x16x8xf32, #tpu.memory_space<vmem>>, %arg2: memref<8x4xbf16, #tpu.memory_space<vmem>>, %arg3: memref<1x4xf32, #tpu.memory_space<vmem>>, %arg4: memref<4x4x8xbf16, #tpu.memory_space<vmem>>, %arg5: memref<1x8xf32, #tpu.memory_space<vmem>>, %arg6: memref<1x16x16x8xf32, #tpu.memory_space<vmem>>, %arg7: memref<20x16x4xf32, #tpu.memory_space<vmem>>, %arg8: memref<16x20x4xf32, #tpu.memory_space<vmem>>) attributes {dimension_semantics = [#tpu.dimension_semantics<parallel>], iteration_bounds = array<i64: 2>, scalar_prefetch = 0 : i64, scratch_operands = 2 : i64, tpu.core_type = #tpu.core_type<tc>, window_params = [{transform_indices = @transform_0, window_bounds = array<i64: 1, 16, 16, 8>}, {pipeline_mode = #tpu.pipeline_mode<synchronous>, transform_indices = @transform_1, window_bounds = array<i64: 8, 4>}, {pipeline_mode = #tpu.pipeline_mode<synchronous>, transform_indices = @transform_2, window_bounds = array<i64: 1, 4>}, {pipeline_mode = #tpu.pipeline_mode<synchronous>, transform_indices = @transform_3, window_bounds = array<i64: 4, 4, 8>}, {pipeline_mode = #tpu.pipeline_mode<synchronous>, transform_indices = @transform_4, window_bounds = array<i64: 1, 8>}, {transform_indices = @transform_5, window_bounds = array<i64: 1, 16, 16, 8>}]} {
    %c0 = arith.constant 0 : index
    %c0_0 = arith.constant 0 : index
    %c0_1 = arith.constant 0 : index
    %c0_2 = arith.constant 0 : index
    %0 = vector.load %arg1[%c0, %c0_0, %c0_1, %c0_2] : memref<1x16x16x8xf32, #tpu.memory_space<vmem>>, vector<1x16x16x8xf32>
    %1 = vector.shape_cast %0 : vector<1x16x16x8xf32> to vector<16x16x8xf32>
    %2 = vector.shape_cast %1 : vector<16x16x8xf32> to vector<256x8xf32>
    %3 = arith.truncf %2 : vector<256x8xf32> to vector<256x8xbf16>
    %c0_3 = arith.constant 0 : index
    %c0_4 = arith.constant 0 : index
    %4 = vector.load %arg2[%c0_3, %c0_4] : memref<8x4xbf16, #tpu.memory_space<vmem>>, vector<8x4xbf16>
    %cst = arith.constant dense<0.000000e+00> : vector<256x4xf32>
    %5 = tpu.matmul %3, %4, %cst {dimension_numbers = #tpu.dot_dimension_numbers<[1], [0], [0], [1], [0, 0, 1, 1], [], []>} : vector<256x8xbf16>, vector<8x4xbf16>, vector<256x4xf32> -> vector<256x4xf32>
    %c0_5 = arith.constant 0 : index
    %c0_6 = arith.constant 0 : index
    %6 = vector.load %arg3[%c0_5, %c0_6] : memref<1x4xf32, #tpu.memory_space<vmem>>, vector<1x4xf32>
    %7 = vector.broadcast %6 : vector<1x4xf32> to vector<256x4xf32>
    %8 = arith.addf %5, %7 : vector<256x4xf32>
    %9 = arith.negf %8 : vector<256x4xf32>
    %10 = math.exp %9 : vector<256x4xf32>
    %cst_7 = arith.constant 1.000000e+00 : f32
    %11 = vector.broadcast %cst_7 : f32 to vector<256x4xf32>
    %12 = arith.addf %11, %10 : vector<256x4xf32>
    %13 = arith.divf %11, %12 : vector<256x4xf32>
    %14 = arith.mulf %8, %13 : vector<256x4xf32>
    %cst_8 = arith.constant 0xFF800000 : f32
    %15 = vector.broadcast %cst_8 : f32 to vector<2x16x4xf32>
    %c0_9 = arith.constant 0 : index
    %c0_10 = arith.constant 0 : index
    %c0_11 = arith.constant 0 : index
    %16 = vector.load %arg7[%c0_9, %c0_10, %c0_11] : memref<20x16x4xf32, #tpu.memory_space<vmem>>, vector<2x16x4xf32>
    tpu.vector_store %arg7[%c0_9, %c0_10, %c0_11], %15 {strides = array<i32>} : memref<20x16x4xf32, #tpu.memory_space<vmem>>, vector<2x16x4xf32>,
    %cst_12 = arith.constant 0xFF800000 : f32
    %17 = vector.broadcast %cst_12 : f32 to vector<2x16x4xf32>
    %c18 = arith.constant 18 : index
    %c0_13 = arith.constant 0 : index
    %c0_14 = arith.constant 0 : index
    %18 = vector.load %arg7[%c18, %c0_13, %c0_14] : memref<20x16x4xf32, #tpu.memory_space<vmem>>, vector<2x16x4xf32>
    tpu.vector_store %arg7[%c18, %c0_13, %c0_14], %17 {strides = array<i32>} : memref<20x16x4xf32, #tpu.memory_space<vmem>>, vector<2x16x4xf32>,
    %cst_15 = arith.constant 0xFF800000 : f32
    %19 = vector.broadcast %cst_15 : f32 to vector<16x2x4xf32>
    %c0_16 = arith.constant 0 : index
    %c0_17 = arith.constant 0 : index
    %c0_18 = arith.constant 0 : index
    %20 = vector.load %arg8[%c0_16, %c0_17, %c0_18] : memref<16x20x4xf32, #tpu.memory_space<vmem>>, vector<16x2x4xf32>
    tpu.vector_store %arg8[%c0_16, %c0_17, %c0_18], %19 {strides = array<i32>} : memref<16x20x4xf32, #tpu.memory_space<vmem>>, vector<16x2x4xf32>,
    %cst_19 = arith.constant 0xFF800000 : f32
    %21 = vector.broadcast %cst_19 : f32 to vector<16x2x4xf32>
    %c0_20 = arith.constant 0 : index
    %c18_21 = arith.constant 18 : index
    %c0_22 = arith.constant 0 : index
    %22 = vector.load %arg8[%c0_20, %c18_21, %c0_22] : memref<16x20x4xf32, #tpu.memory_space<vmem>>, vector<16x2x4xf32>
    tpu.vector_store %arg8[%c0_20, %c18_21, %c0_22], %21 {strides = array<i32>} : memref<16x20x4xf32, #tpu.memory_space<vmem>>, vector<16x2x4xf32>,
    %23 = vector.shape_cast %14 : vector<256x4xf32> to vector<16x16x4xf32>
    %c2 = arith.constant 2 : index
    %c0_23 = arith.constant 0 : index
    %c0_24 = arith.constant 0 : index
    %24 = vector.load %arg7[%c2, %c0_23, %c0_24] : memref<20x16x4xf32, #tpu.memory_space<vmem>>, vector<16x16x4xf32>
    tpu.vector_store %arg7[%c2, %c0_23, %c0_24], %23 {strides = array<i32>} : memref<20x16x4xf32, #tpu.memory_space<vmem>>, vector<16x16x4xf32>,
    %c0_25 = arith.constant 0 : index
    %c0_26 = arith.constant 0 : index
    %c0_27 = arith.constant 0 : index
    %25 = vector.load %arg7[%c0_25, %c0_26, %c0_27] : memref<20x16x4xf32, #tpu.memory_space<vmem>>, vector<16x16x4xf32>
    %c1 = arith.constant 1 : index
    %c0_28 = arith.constant 0 : index
    %c0_29 = arith.constant 0 : index
    %26 = vector.load %arg7[%c1, %c0_28, %c0_29] : memref<20x16x4xf32, #tpu.memory_space<vmem>>, vector<16x16x4xf32>
    %c2_30 = arith.constant 2 : index
    %c0_31 = arith.constant 0 : index
    %c0_32 = arith.constant 0 : index
    %27 = vector.load %arg7[%c2_30, %c0_31, %c0_32] : memref<20x16x4xf32, #tpu.memory_space<vmem>>, vector<16x16x4xf32>
    %c3 = arith.constant 3 : index
    %c0_33 = arith.constant 0 : index
    %c0_34 = arith.constant 0 : index
    %28 = vector.load %arg7[%c3, %c0_33, %c0_34] : memref<20x16x4xf32, #tpu.memory_space<vmem>>, vector<16x16x4xf32>
    %c4 = arith.constant 4 : index
    %c0_35 = arith.constant 0 : index
    %c0_36 = arith.constant 0 : index
    %29 = vector.load %arg7[%c4, %c0_35, %c0_36] : memref<20x16x4xf32, #tpu.memory_space<vmem>>, vector<16x16x4xf32>
    %30 = arith.maximumf %25, %26 : vector<16x16x4xf32>
    %31 = arith.maximumf %27, %28 : vector<16x16x4xf32>
    %32 = arith.maximumf %30, %31 : vector<16x16x4xf32>
    %33 = arith.maximumf %32, %29 : vector<16x16x4xf32>
    %c0_37 = arith.constant 0 : index
    %c2_38 = arith.constant 2 : index
    %c0_39 = arith.constant 0 : index
    %34 = vector.load %arg8[%c0_37, %c2_38, %c0_39] : memref<16x20x4xf32, #tpu.memory_space<vmem>>, vector<16x16x4xf32>
    tpu.vector_store %arg8[%c0_37, %c2_38, %c0_39], %33 {strides = array<i32>} : memref<16x20x4xf32, #tpu.memory_space<vmem>>, vector<16x16x4xf32>,
    %c0_40 = arith.constant 0 : index
    %c0_41 = arith.constant 0 : index
    %c0_42 = arith.constant 0 : index
    %35 = vector.load %arg8[%c0_40, %c0_41, %c0_42] : memref<16x20x4xf32, #tpu.memory_space<vmem>>, vector<16x16x4xf32>
    %c0_43 = arith.constant 0 : index
    %c1_44 = arith.constant 1 : index
    %c0_45 = arith.constant 0 : index
    %36 = vector.load %arg8[%c0_43, %c1_44, %c0_45] : memref<16x20x4xf32, #tpu.memory_space<vmem>>, vector<16x16x4xf32>
    %c0_46 = arith.constant 0 : index
    %c2_47 = arith.constant 2 : index
    %c0_48 = arith.constant 0 : index
    %37 = vector.load %arg8[%c0_46, %c2_47, %c0_48] : memref<16x20x4xf32, #tpu.memory_space<vmem>>, vector<16x16x4xf32>
    %c0_49 = arith.constant 0 : index
    %c3_50 = arith.constant 3 : index
    %c0_51 = arith.constant 0 : index
    %38 = vector.load %arg8[%c0_49, %c3_50, %c0_51] : memref<16x20x4xf32, #tpu.memory_space<vmem>>, vector<16x16x4xf32>
    %c0_52 = arith.constant 0 : index
    %c4_53 = arith.constant 4 : index
    %c0_54 = arith.constant 0 : index
    %39 = vector.load %arg8[%c0_52, %c4_53, %c0_54] : memref<16x20x4xf32, #tpu.memory_space<vmem>>, vector<16x16x4xf32>
    %40 = arith.maximumf %35, %36 : vector<16x16x4xf32>
    %41 = arith.maximumf %37, %38 : vector<16x16x4xf32>
    %42 = arith.maximumf %40, %41 : vector<16x16x4xf32>
    %43 = arith.maximumf %42, %39 : vector<16x16x4xf32>
    %44 = vector.shape_cast %43 : vector<16x16x4xf32> to vector<256x4xf32>
    %45 = vector.shape_cast %44 : vector<256x4xf32> to vector<16x16x4xf32>
    %c2_55 = arith.constant 2 : index
    %c0_56 = arith.constant 0 : index
    %c0_57 = arith.constant 0 : index
    %46 = vector.load %arg7[%c2_55, %c0_56, %c0_57] : memref<20x16x4xf32, #tpu.memory_space<vmem>>, vector<16x16x4xf32>
    tpu.vector_store %arg7[%c2_55, %c0_56, %c0_57], %45 {strides = array<i32>} : memref<20x16x4xf32, #tpu.memory_space<vmem>>, vector<16x16x4xf32>,
    %c0_58 = arith.constant 0 : index
    %c0_59 = arith.constant 0 : index
    %c0_60 = arith.constant 0 : index
    %47 = vector.load %arg7[%c0_58, %c0_59, %c0_60] : memref<20x16x4xf32, #tpu.memory_space<vmem>>, vector<16x16x4xf32>
    %c1_61 = arith.constant 1 : index
    %c0_62 = arith.constant 0 : index
    %c0_63 = arith.constant 0 : index
    %48 = vector.load %arg7[%c1_61, %c0_62, %c0_63] : memref<20x16x4xf32, #tpu.memory_space<vmem>>, vector<16x16x4xf32>
    %c2_64 = arith.constant 2 : index
    %c0_65 = arith.constant 0 : index
    %c0_66 = arith.constant 0 : index
    %49 = vector.load %arg7[%c2_64, %c0_65, %c0_66] : memref<20x16x4xf32, #tpu.memory_space<vmem>>, vector<16x16x4xf32>
    %c3_67 = arith.constant 3 : index
    %c0_68 = arith.constant 0 : index
    %c0_69 = arith.constant 0 : index
    %50 = vector.load %arg7[%c3_67, %c0_68, %c0_69] : memref<20x16x4xf32, #tpu.memory_space<vmem>>, vector<16x16x4xf32>
    %c4_70 = arith.constant 4 : index
    %c0_71 = arith.constant 0 : index
    %c0_72 = arith.constant 0 : index
    %51 = vector.load %arg7[%c4_70, %c0_71, %c0_72] : memref<20x16x4xf32, #tpu.memory_space<vmem>>, vector<16x16x4xf32>
    %52 = arith.maximumf %47, %48 : vector<16x16x4xf32>
    %53 = arith.maximumf %49, %50 : vector<16x16x4xf32>
    %54 = arith.maximumf %52, %53 : vector<16x16x4xf32>
    %55 = arith.maximumf %54, %51 : vector<16x16x4xf32>
    %c0_73 = arith.constant 0 : index
    %c2_74 = arith.constant 2 : index
    %c0_75 = arith.constant 0 : index
    %56 = vector.load %arg8[%c0_73, %c2_74, %c0_75] : memref<16x20x4xf32, #tpu.memory_space<vmem>>, vector<16x16x4xf32>
    tpu.vector_store %arg8[%c0_73, %c2_74, %c0_75], %55 {strides = array<i32>} : memref<16x20x4xf32, #tpu.memory_space<vmem>>, vector<16x16x4xf32>,
    %c0_76 = arith.constant 0 : index
    %c0_77 = arith.constant 0 : index
    %c0_78 = arith.constant 0 : index
    %57 = vector.load %arg8[%c0_76, %c0_77, %c0_78] : memref<16x20x4xf32, #tpu.memory_space<vmem>>, vector<16x16x4xf32>
    %c0_79 = arith.constant 0 : index
    %c1_80 = arith.constant 1 : index
    %c0_81 = arith.constant 0 : index
    %58 = vector.load %arg8[%c0_79, %c1_80, %c0_81] : memref<16x20x4xf32, #tpu.memory_space<vmem>>, vector<16x16x4xf32>
    %c0_82 = arith.constant 0 : index
    %c2_83 = arith.constant 2 : index
    %c0_84 = arith.constant 0 : index
    %59 = vector.load %arg8[%c0_82, %c2_83, %c0_84] : memref<16x20x4xf32, #tpu.memory_space<vmem>>, vector<16x16x4xf32>
    %c0_85 = arith.constant 0 : index
    %c3_86 = arith.constant 3 : index
    %c0_87 = arith.constant 0 : index
    %60 = vector.load %arg8[%c0_85, %c3_86, %c0_87] : memref<16x20x4xf32, #tpu.memory_space<vmem>>, vector<16x16x4xf32>
    %c0_88 = arith.constant 0 : index
    %c4_89 = arith.constant 4 : index
    %c0_90 = arith.constant 0 : index
    %61 = vector.load %arg8[%c0_88, %c4_89, %c0_90] : memref<16x20x4xf32, #tpu.memory_space<vmem>>, vector<16x16x4xf32>
    %62 = arith.maximumf %57, %58 : vector<16x16x4xf32>
    %63 = arith.maximumf %59, %60 : vector<16x16x4xf32>
    %64 = arith.maximumf %62, %63 : vector<16x16x4xf32>
    %65 = arith.maximumf %64, %61 : vector<16x16x4xf32>
    %66 = vector.shape_cast %65 : vector<16x16x4xf32> to vector<256x4xf32>
    %67 = vector.shape_cast %66 : vector<256x4xf32> to vector<16x16x4xf32>
    %c2_91 = arith.constant 2 : index
    %c0_92 = arith.constant 0 : index
    %c0_93 = arith.constant 0 : index
    %68 = vector.load %arg7[%c2_91, %c0_92, %c0_93] : memref<20x16x4xf32, #tpu.memory_space<vmem>>, vector<16x16x4xf32>
    tpu.vector_store %arg7[%c2_91, %c0_92, %c0_93], %67 {strides = array<i32>} : memref<20x16x4xf32, #tpu.memory_space<vmem>>, vector<16x16x4xf32>,
    %c0_94 = arith.constant 0 : index
    %c0_95 = arith.constant 0 : index
    %c0_96 = arith.constant 0 : index
    %69 = vector.load %arg7[%c0_94, %c0_95, %c0_96] : memref<20x16x4xf32, #tpu.memory_space<vmem>>, vector<16x16x4xf32>
    %c1_97 = arith.constant 1 : index
    %c0_98 = arith.constant 0 : index
    %c0_99 = arith.constant 0 : index
    %70 = vector.load %arg7[%c1_97, %c0_98, %c0_99] : memref<20x16x4xf32, #tpu.memory_space<vmem>>, vector<16x16x4xf32>
    %c2_100 = arith.constant 2 : index
    %c0_101 = arith.constant 0 : index
    %c0_102 = arith.constant 0 : index
    %71 = vector.load %arg7[%c2_100, %c0_101, %c0_102] : memref<20x16x4xf32, #tpu.memory_space<vmem>>, vector<16x16x4xf32>
    %c3_103 = arith.constant 3 : index
    %c0_104 = arith.constant 0 : index
    %c0_105 = arith.constant 0 : index
    %72 = vector.load %arg7[%c3_103, %c0_104, %c0_105] : memref<20x16x4xf32, #tpu.memory_space<vmem>>, vector<16x16x4xf32>
    %c4_106 = arith.constant 4 : index
    %c0_107 = arith.constant 0 : index
    %c0_108 = arith.constant 0 : index
    %73 = vector.load %arg7[%c4_106, %c0_107, %c0_108] : memref<20x16x4xf32, #tpu.memory_space<vmem>>, vector<16x16x4xf32>
    %74 = arith.maximumf %69, %70 : vector<16x16x4xf32>
    %75 = arith.maximumf %71, %72 : vector<16x16x4xf32>
    %76 = arith.maximumf %74, %75 : vector<16x16x4xf32>
    %77 = arith.maximumf %76, %73 : vector<16x16x4xf32>
    %c0_109 = arith.constant 0 : index
    %c2_110 = arith.constant 2 : index
    %c0_111 = arith.constant 0 : index
    %78 = vector.load %arg8[%c0_109, %c2_110, %c0_111] : memref<16x20x4xf32, #tpu.memory_space<vmem>>, vector<16x16x4xf32>
    tpu.vector_store %arg8[%c0_109, %c2_110, %c0_111], %77 {strides = array<i32>} : memref<16x20x4xf32, #tpu.memory_space<vmem>>, vector<16x16x4xf32>,
    %c0_112 = arith.constant 0 : index
    %c0_113 = arith.constant 0 : index
    %c0_114 = arith.constant 0 : index
    %79 = vector.load %arg8[%c0_112, %c0_113, %c0_114] : memref<16x20x4xf32, #tpu.memory_space<vmem>>, vector<16x16x4xf32>
    %c0_115 = arith.constant 0 : index
    %c1_116 = arith.constant 1 : index
    %c0_117 = arith.constant 0 : index
    %80 = vector.load %arg8[%c0_115, %c1_116, %c0_117] : memref<16x20x4xf32, #tpu.memory_space<vmem>>, vector<16x16x4xf32>
    %c0_118 = arith.constant 0 : index
    %c2_119 = arith.constant 2 : index
    %c0_120 = arith.constant 0 : index
    %81 = vector.load %arg8[%c0_118, %c2_119, %c0_120] : memref<16x20x4xf32, #tpu.memory_space<vmem>>, vector<16x16x4xf32>
    %c0_121 = arith.constant 0 : index
    %c3_122 = arith.constant 3 : index
    %c0_123 = arith.constant 0 : index
    %82 = vector.load %arg8[%c0_121, %c3_122, %c0_123] : memref<16x20x4xf32, #tpu.memory_space<vmem>>, vector<16x16x4xf32>
    %c0_124 = arith.constant 0 : index
    %c4_125 = arith.constant 4 : index
    %c0_126 = arith.constant 0 : index
    %83 = vector.load %arg8[%c0_124, %c4_125, %c0_126] : memref<16x20x4xf32, #tpu.memory_space<vmem>>, vector<16x16x4xf32>
    %84 = arith.maximumf %79, %80 : vector<16x16x4xf32>
    %85 = arith.maximumf %81, %82 : vector<16x16x4xf32>
    %86 = arith.maximumf %84, %85 : vector<16x16x4xf32>
    %87 = arith.maximumf %86, %83 : vector<16x16x4xf32>
    %88 = vector.shape_cast %87 : vector<16x16x4xf32> to vector<256x4xf32>
    %89 = arith.truncf %14 : vector<256x4xf32> to vector<256x4xbf16>
    %c0_127 = arith.constant 0 : index
    %c0_128 = arith.constant 0 : index
    %c0_129 = arith.constant 0 : index
    %90 = vector.load %arg4[%c0_127, %c0_128, %c0_129] : memref<4x4x8xbf16, #tpu.memory_space<vmem>>, vector<1x4x8xbf16>
    %91 = vector.shape_cast %90 : vector<1x4x8xbf16> to vector<4x8xbf16>
    %cst_130 = arith.constant dense<0.000000e+00> : vector<256x8xf32>
    %92 = tpu.matmul %89, %91, %cst_130 {dimension_numbers = #tpu.dot_dimension_numbers<[1], [0], [0], [1], [0, 0, 1, 1], [], []>} : vector<256x4xbf16>, vector<4x8xbf16>, vector<256x8xf32> -> vector<256x8xf32>
    %93 = arith.truncf %44 : vector<256x4xf32> to vector<256x4xbf16>
    %c1_131 = arith.constant 1 : index
    %c0_132 = arith.constant 0 : index
    %c0_133 = arith.constant 0 : index
    %94 = vector.load %arg4[%c1_131, %c0_132, %c0_133] : memref<4x4x8xbf16, #tpu.memory_space<vmem>>, vector<1x4x8xbf16>
    %95 = vector.shape_cast %94 : vector<1x4x8xbf16> to vector<4x8xbf16>
    %cst_134 = arith.constant dense<0.000000e+00> : vector<256x8xf32>
    %96 = tpu.matmul %93, %95, %cst_134 {dimension_numbers = #tpu.dot_dimension_numbers<[1], [0], [0], [1], [0, 0, 1, 1], [], []>} : vector<256x4xbf16>, vector<4x8xbf16>, vector<256x8xf32> -> vector<256x8xf32>
    %97 = arith.addf %92, %96 : vector<256x8xf32>
    %98 = arith.truncf %66 : vector<256x4xf32> to vector<256x4xbf16>
    %c2_135 = arith.constant 2 : index
    %c0_136 = arith.constant 0 : index
    %c0_137 = arith.constant 0 : index
    %99 = vector.load %arg4[%c2_135, %c0_136, %c0_137] : memref<4x4x8xbf16, #tpu.memory_space<vmem>>, vector<1x4x8xbf16>
    %100 = vector.shape_cast %99 : vector<1x4x8xbf16> to vector<4x8xbf16>
    %cst_138 = arith.constant dense<0.000000e+00> : vector<256x8xf32>
    %101 = tpu.matmul %98, %100, %cst_138 {dimension_numbers = #tpu.dot_dimension_numbers<[1], [0], [0], [1], [0, 0, 1, 1], [], []>} : vector<256x4xbf16>, vector<4x8xbf16>, vector<256x8xf32> -> vector<256x8xf32>
    %102 = arith.addf %97, %101 : vector<256x8xf32>
    %103 = arith.truncf %88 : vector<256x4xf32> to vector<256x4xbf16>
    %c3_139 = arith.constant 3 : index
    %c0_140 = arith.constant 0 : index
    %c0_141 = arith.constant 0 : index
    %104 = vector.load %arg4[%c3_139, %c0_140, %c0_141] : memref<4x4x8xbf16, #tpu.memory_space<vmem>>, vector<1x4x8xbf16>
    %105 = vector.shape_cast %104 : vector<1x4x8xbf16> to vector<4x8xbf16>
    %cst_142 = arith.constant dense<0.000000e+00> : vector<256x8xf32>
    %106 = tpu.matmul %103, %105, %cst_142 {dimension_numbers = #tpu.dot_dimension_numbers<[1], [0], [0], [1], [0, 0, 1, 1], [], []>} : vector<256x4xbf16>, vector<4x8xbf16>, vector<256x8xf32> -> vector<256x8xf32>
    %107 = arith.addf %102, %106 : vector<256x8xf32>
    %c0_143 = arith.constant 0 : index
    %c0_144 = arith.constant 0 : index
    %108 = vector.load %arg5[%c0_143, %c0_144] : memref<1x8xf32, #tpu.memory_space<vmem>>, vector<1x8xf32>
    %109 = vector.broadcast %108 : vector<1x8xf32> to vector<256x8xf32>
    %110 = arith.addf %107, %109 : vector<256x8xf32>
    %111 = arith.negf %110 : vector<256x8xf32>
    %112 = math.exp %111 : vector<256x8xf32>
    %cst_145 = arith.constant 1.000000e+00 : f32
    %113 = vector.broadcast %cst_145 : f32 to vector<256x8xf32>
    %114 = arith.addf %113, %112 : vector<256x8xf32>
    %115 = arith.divf %113, %114 : vector<256x8xf32>
    %116 = arith.mulf %110, %115 : vector<256x8xf32>
    %117 = vector.shape_cast %116 : vector<256x8xf32> to vector<16x16x8xf32>
    %c0_146 = arith.constant 0 : index
    %c0_147 = arith.constant 0 : index
    %c0_148 = arith.constant 0 : index
    %c0_149 = arith.constant 0 : index
    %118 = vector.load %arg6[%c0_146, %c0_147, %c0_148, %c0_149] : memref<1x16x16x8xf32, #tpu.memory_space<vmem>>, vector<1x16x16x8xf32>
    %119 = vector.shape_cast %118 : vector<1x16x16x8xf32> to vector<16x16x8xf32>
    %120 = vector.shape_cast %117 : vector<16x16x8xf32> to vector<1x16x16x8xf32>
    tpu.vector_store %arg6[%c0_146, %c0_147, %c0_148, %c0_149], %120 {strides = array<i32>} : memref<1x16x16x8xf32, #tpu.memory_space<vmem>>, vector<1x16x16x8xf32>,
    return
  }
  func.func @transform_0(%arg0: i32) -> (i32, i32, i32, i32) {
    %c0_i32 = arith.constant 0 : i32
    %c0_i32_0 = arith.constant 0 : i32
    %c0_i32_1 = arith.constant 0 : i32
    %c0_i32_2 = arith.constant 0 : i32
    return %arg0, %c0_i32, %c0_i32_0, %c0_i32_1 : i32, i32, i32, i32
  }
  func.func @transform_1(%arg0: i32) -> (i32, i32) {
    %c0_i32 = arith.constant 0 : i32
    %c0_i32_0 = arith.constant 0 : i32
    %c0_i32_1 = arith.constant 0 : i32
    return %c0_i32, %c0_i32_0 : i32, i32
  }
  func.func @transform_2(%arg0: i32) -> (i32, i32) {
    %c0_i32 = arith.constant 0 : i32
    %c0_i32_0 = arith.constant 0 : i32
    %c0_i32_1 = arith.constant 0 : i32
    return %c0_i32, %c0_i32_0 : i32, i32
  }
  func.func @transform_3(%arg0: i32) -> (i32, i32, i32) {
    %c0_i32 = arith.constant 0 : i32
    %c0_i32_0 = arith.constant 0 : i32
    %c0_i32_1 = arith.constant 0 : i32
    %c0_i32_2 = arith.constant 0 : i32
    return %c0_i32, %c0_i32_0, %c0_i32_1 : i32, i32, i32
  }
  func.func @transform_4(%arg0: i32) -> (i32, i32) {
    %c0_i32 = arith.constant 0 : i32
    %c0_i32_0 = arith.constant 0 : i32
    %c0_i32_1 = arith.constant 0 : i32
    return %c0_i32, %c0_i32_0 : i32, i32
  }
  func.func @transform_5(%arg0: i32) -> (i32, i32, i32, i32) {
    %c0_i32 = arith.constant 0 : i32
    %c0_i32_0 = arith.constant 0 : i32
    %c0_i32_1 = arith.constant 0 : i32
    %c0_i32_2 = arith.constant 0 : i32
    return %arg0, %c0_i32, %c0_i32_0, %c0_i32_1 : i32, i32, i32, i32
  }
}

</mosaic_0001>

<llo_original>
// kernel: tpu_custom_call.1
$region0: #{tpu_custom_call.1}
  #allocation0 [shape = 'u32[]', space=smem, size = 0x4, offset = 0x4, fixed_abs, tag = 'smem constant byte address 0x4 - core index']
  #allocation1 [shape = 'u32[144,128]{1,0:T(1,128)}', space=vmem, size = 0x12000, scoped, tag = 'internal scratch']
  #allocation2 [shape = 'f32[20,16,4]{2,1,0:T(8,128)}', space=vmem, size = 0x28000, scoped, tag = 'scratch operand']
  #allocation3 [shape = 'f32[16,20,4]{2,1,0:T(8,128)}', space=vmem, size = 0x30000, scoped, tag = 'scratch operand']
  %s0 = inlined_call_operand.vmem [shape: f32[2,16,16,8], index: 0, kind: input, shape index: {}]
  %s1 = inlined_call_operand.vmem [shape: bf16[8,4], index: 1, kind: input, shape index: {}]
  %s2 = inlined_call_operand.vmem [shape: f32[1,4], index: 2, kind: input, shape index: {}]
  %s3 = inlined_call_operand.vmem [shape: bf16[4,4,8], index: 3, kind: input, shape index: {}]
  %s4 = inlined_call_operand.vmem [shape: f32[1,8], index: 4, kind: input, shape index: {}]
  %s5 = inlined_call_operand.vmem [shape: f32[2,16,16,8], index: 5, kind: output, shape index: {}]
  %s6 = sld [smem:[#allocation0]]
  $region53: #{tpu_custom_call.1} parent=0
    _
  %s8 = ssub.s32 1, %s6
  %s9 = scalar_select 0, %s8, %s6
  loop: start=0, step=1, limit=4
  $region2: #{tpu_custom_call.1} parent=0 // loop_pre_header
    _
  $region3: #{tpu_custom_call.1} parent=0 // loop_header
    %s11 = sphi 0, %s15
    %p12 = scmp.ge.s32.totalorder %s11, 4
    %s21 = sphi 0, %s23
    %s24 = sphi 0, %s21
    %s25 = sphi 0, %s24
    %s41 = sphi 0, %s25
    %s45 = sphi 0, %s45
    %s47 = sphi 0, %s45
    %s48 = sphi 0, %s47
    %s62 = sphi 0, %s48
    %s66 = sphi 0, %s66
    %s68 = sphi 0, %s66
    %s69 = sphi 0, %s68
    %s83 = sphi 0, %s69
    %s87 = sphi 0, %s87
    %s89 = sphi 0, %s87
    %s90 = sphi 0, %s89
    %s104 = sphi 0, %s90
    %s108 = sphi 0, %s108
    %s110 = sphi 0, %s108
    %s111 = sphi 0, %s110
    %s125 = sphi 0, %s111
    %s131 = sphi 0, %s133
    %s134 = sphi 0, %s131
    %s135 = sphi 0, %s134
    %s151 = sphi 0, %s135
  $region4: #{tpu_custom_call.1} parent=0 // loop_header_branch
    %14 = sbr.rel (%p12) target = $region8
  $region5: #{tpu_custom_call.1} parent=0 // loop_body
    %s16 = ssub.s32 %s11, 1
    %s17 = ssub.s32 %s11, 2
    %s18 = sadd.s32 %s11, 1
    %s19 = ssub.s32 %s11, %s18
    %p20 = scmp.eq.s32.totalorder %s19, 0
    %s22 = sadd.s32 %s21, 1
    %s23 = scalar_select %p20, %s21, %s22
    %p26 = pneg %p20
    %p27 = scmp.eq.s32.totalorder %s11, 1
    %p28 = por %p26, %p27
    %p29 = scmp.ne.s32.totalorder %s21, %s24
    %p30 = scmp.eq.s32.totalorder %s11, 0
    %p31 = por %p29, %p30
    %p32 = scmp.ne.s32.totalorder %s21, %s24
    %p33 = scmp.eq.s32.totalorder %s16, 1
    %p34 = por %p32, %p33
    %p35 = scmp.ne.s32.totalorder %s24, %s25
    %p36 = scmp.eq.s32.totalorder %s16, 0
    %p37 = por %p35, %p36
    %p38 = scmp.ne.s32.totalorder %s24, %s25
    %p39 = scmp.eq.s32.totalorder %s17, 1
    %p40 = por %p38, %p39
    %p42 = scmp.ne.s32.totalorder %s25, %s41
    %p43 = scmp.eq.s32.totalorder %s17, 0
    %p44 = por %p42, %p43
    %s46 = sadd.s32 %s45, 1
    %p49 = scmp.eq.s32.totalorder %s11, 1
    %p50 = scmp.ne.s32.totalorder %s45, %s47
    %p51 = scmp.eq.s32.totalorder %s11, 0
    %p52 = por %p50, %p51
    %p53 = scmp.ne.s32.totalorder %s45, %s47
    %p54 = scmp.eq.s32.totalorder %s16, 1
    %p55 = por %p53, %p54
    %p56 = scmp.ne.s32.totalorder %s47, %s48
    %p57 = scmp.eq.s32.totalorder %s16, 0
    %p58 = por %p56, %p57
    %p59 = scmp.ne.s32.totalorder %s47, %s48
    %p60 = scmp.eq.s32.totalorder %s17, 1
    %p61 = por %p59, %p60
    %p63 = scmp.ne.s32.totalorder %s48, %s62
    %p64 = scmp.eq.s32.totalorder %s17, 0
    %p65 = por %p63, %p64
    %s67 = sadd.s32 %s66, 1
    %p70 = scmp.eq.s32.totalorder %s11, 1
    %p71 = scmp.ne.s32.totalorder %s66, %s68
    %p72 = scmp.eq.s32.totalorder %s11, 0
    %p73 = por %p71, %p72
    %p74 = scmp.ne.s32.totalorder %s66, %s68
    %p75 = scmp.eq.s32.totalorder %s16, 1
    %p76 = por %p74, %p75
    %p77 = scmp.ne.s32.totalorder %s68, %s69
    %p78 = scmp.eq.s32.totalorder %s16, 0
    %p79 = por %p77, %p78
    %p80 = scmp.ne.s32.totalorder %s68, %s69
    %p81 = scmp.eq.s32.totalorder %s17, 1
    %p82 = por %p80, %p81
    %p84 = scmp.ne.s32.totalorder %s69, %s83
    %p85 = scmp.eq.s32.totalorder %s17, 0
    %p86 = por %p84, %p85
    %s88 = sadd.s32 %s87, 1
    %p91 = scmp.eq.s32.totalorder %s11, 1
    %p92 = scmp.ne.s32.totalorder %s87, %s89
    %p93 = scmp.eq.s32.totalorder %s11, 0
    %p94 = por %p92, %p93
    %p95 = scmp.ne.s32.totalorder %s87, %s89
    %p96 = scmp.eq.s32.totalorder %s16, 1
    %p97 = por %p95, %p96
    %p98 = scmp.ne.s32.totalorder %s89, %s90
    %p99 = scmp.eq.s32.totalorder %s16, 0
    %p100 = por %p98, %p99
    %p101 = scmp.ne.s32.totalorder %s89, %s90
    %p102 = scmp.eq.s32.totalorder %s17, 1
    %p103 = por %p101, %p102
    %p105 = scmp.ne.s32.totalorder %s90, %s104
    %p106 = scmp.eq.s32.totalorder %s17, 0
    %p107 = por %p105, %p106
    %s109 = sadd.s32 %s108, 1
    %p112 = scmp.eq.s32.totalorder %s11, 1
    %p113 = scmp.ne.s32.totalorder %s108, %s110
    %p114 = scmp.eq.s32.totalorder %s11, 0
    %p115 = por %p113, %p114
    %p116 = scmp.ne.s32.totalorder %s108, %s110
    %p117 = scmp.eq.s32.totalorder %s16, 1
    %p118 = por %p116, %p117
    %p119 = scmp.ne.s32.totalorder %s110, %s111
    %p120 = scmp.eq.s32.totalorder %s16, 0
    %p121 = por %p119, %p120
    %p122 = scmp.ne.s32.totalorder %s110, %s111
    %p123 = scmp.eq.s32.totalorder %s17, 1
    %p124 = por %p122, %p123
    %p126 = scmp.ne.s32.totalorder %s111, %s125
    %p127 = scmp.eq.s32.totalorder %s17, 0
    %p128 = por %p126, %p127
    %s129 = ssub.s32 %s11, %s18
    %p130 = scmp.eq.s32.totalorder %s129, 0
    %s132 = sadd.s32 %s131, 1
    %s133 = scalar_select %p130, %s131, %s132
    %p136 = pneg %p130
    %p137 = scmp.eq.s32.totalorder %s11, 1
    %p138 = por %p136, %p137
    %p139 = scmp.ne.s32.totalorder %s131, %s134
    %p140 = scmp.eq.s32.totalorder %s11, 0
    %p141 = por %p139, %p140
    %p142 = scmp.ne.s32.totalorder %s131, %s134
    %p143 = scmp.eq.s32.totalorder %s16, 1
    %p144 = por %p142, %p143
    %p145 = scmp.ne.s32.totalorder %s134, %s135
    %p146 = scmp.eq.s32.totalorder %s16, 0
    %p147 = por %p145, %p146
    %p148 = scmp.ne.s32.totalorder %s134, %s135
    %p149 = scmp.eq.s32.totalorder %s17, 1
    %p150 = por %p148, %p149
    %p152 = scmp.ne.s32.totalorder %s135, %s151
    %p153 = scmp.eq.s32.totalorder %s17, 0
    %p154 = por %p152, %p153
    %p155 = scmp.le.s32.totalorder 1, %s11
    %p156 = scmp.lt.s32.totalorder %s11, 3
    %p157 = pnand %p155, %p156
    %p158 = pneg %p157
    // Predicated region
    $region9: #{tpu_custom_call.1} parent=5 // pred_check
      _
    $region10: #{tpu_custom_call.1} parent=5 // pred_check_branch
      %160 = sbr.rel (%p157) target = $region12
    $region11: #{tpu_custom_call.1} parent=5 // pred_region
      %s161 = ssub.s32 %s11, 1
      // Predicated region
      $region13: #{tpu_custom_call.1} parent=11 // pred_check
        %p162 = pneg %p58
      $region14: #{tpu_custom_call.1} parent=11 // pred_check_branch
        %164 = sbr.rel (%p162) target = $region16
      $region15: #{tpu_custom_call.1} parent=11 // pred_region
        _
      $region16: #{tpu_custom_call.1} parent=11 // pred_fallthru
        _
      // Predicated region
      $region17: #{tpu_custom_call.1} parent=11 // pred_check
        %p165 = pneg %p79
      $region18: #{tpu_custom_call.1} parent=11 // pred_check_branch
        %167 = sbr.rel (%p165) target = $region20
      $region19: #{tpu_custom_call.1} parent=11 // pred_region
        _
      $region20: #{tpu_custom_call.1} parent=11 // pred_fallthru
        _
      // Predicated region
      $region21: #{tpu_custom_call.1} parent=11 // pred_check
        %p168 = pneg %p100
      $region22: #{tpu_custom_call.1} parent=11 // pred_check_branch
        %170 = sbr.rel (%p168) target = $region24
      $region23: #{tpu_custom_call.1} parent=11 // pred_region
        _
      $region24: #{tpu_custom_call.1} parent=11 // pred_fallthru
        _
      // Predicated region
      $region25: #{tpu_custom_call.1} parent=11 // pred_check
        %p171 = pneg %p121
      $region26: #{tpu_custom_call.1} parent=11 // pred_check_branch
        %173 = sbr.rel (%p171) target = $region28
      $region27: #{tpu_custom_call.1} parent=11 // pred_region
        _
      $region28: #{tpu_custom_call.1} parent=11 // pred_fallthru
        _
    $region12: #{tpu_custom_call.1} parent=5 // pred_fallthru
      _
    %p174 = scmp.lt.s32.totalorder %s11, 2
    // Predicated region
    $region29: #{tpu_custom_call.1} parent=5 // pred_check
      %p175 = pneg %p174
    $region30: #{tpu_custom_call.1} parent=5 // pred_check_branch
      %177 = sbr.rel (%p175) target = $region32
    $region31: #{tpu_custom_call.1} parent=5 // pred_region
      // Predicated region
      $region33: #{tpu_custom_call.1} parent=31 // pred_check
        %p178 = pneg %p31
      $region34: #{tpu_custom_call.1} parent=31 // pred_check_branch
        %180 = sbr.rel (%p178) target = $region36
      $region35: #{tpu_custom_call.1} parent=31 // pred_region
        %p181 = scmp.lt.s32.totalorder %s11, 1
        %s182 = scalar_select %p181, %s11, 1
        %s183 = smul.addr %s182, 32
        %s184 = smul.addr %s183, 8
        %s185 = scalar_lea.vmem %s0, %s184
      $region36: #{tpu_custom_call.1} parent=31 // pred_fallthru
        _
    $region32: #{tpu_custom_call.1} parent=5 // pred_fallthru
      _
    %p186 = scmp.le.s32.totalorder 1, %s11
    %p187 = scmp.lt.s32.totalorder %s11, 3
    %p188 = pnand %p186, %p187
    %p189 = pneg %p188
    // Predicated region
    $region37: #{tpu_custom_call.1} parent=5 // pred_check
      _
    $region38: #{tpu_custom_call.1} parent=5 // pred_check_branch
      %191 = sbr.rel (%p188) target = $region40
    $region39: #{tpu_custom_call.1} parent=5 // pred_region
      %s192 = ssub.s32 %s11, 1
      %p193 = scmp.lt.s32.totalorder %s16, 1
      %s194 = scalar_select %p193, %s16, 1
      %s195 = smul.addr %s194, 32
      %s196 = smul.addr %s195, 8
      %s197 = scalar_lea.vmem %s0, %s196
      %p198 = pneg %p37
      %p199 = pneg %p34
      %p200 = pneg %p58
      %p201 = pneg %p55
      %p202 = pneg %p79
      %p203 = pneg %p76
      %p204 = pneg %p100
      %p205 = pneg %p97
      %p206 = pneg %p121
      %p207 = pneg %p118
      %p208 = pneg %p147
      %p209 = pneg %p144
      %p210 = scmp.lt.s32.totalorder %s16, 1
      %s211 = scalar_select %p210, %s16, 1
      %s212 = smul.addr %s211, 32
      %s213 = smul.addr %s212, 8
      %s214 = scalar_lea.vmem %s5, %s213
      %p215 = scmp.lt.s32.totalorder %s16, 1
      %s216 = scalar_select %p215, %s16, 1
      %s217 = smul.addr %s216, 32
      %s218 = smul.addr %s217, 8
      %s219 = scalar_lea.vmem %s0, %s218
      %p220 = scmp.lt.s32.totalorder %s16, 1
      %s221 = scalar_select %p220, %s16, 1
      %s222 = smul.addr %s221, 32
      %s223 = smul.addr %s222, 8
      %s224 = scalar_lea.vmem %s5, %s223
      %v226 = vld [vmem:[%s219] sm:$0xff]
      %v227 = vld [vmem:[%s219 + $0x8] sm:$0xff]
      %v228 = vld [vmem:[%s219 + $0x10] sm:$0xff]
      %v229 = vld [vmem:[%s219 + $0x18] sm:$0xff]
      %v230 = vld [vmem:[%s219 + $0x20] sm:$0xff]
      %v231 = vld [vmem:[%s219 + $0x28] sm:$0xff]
      %v232 = vld [vmem:[%s219 + $0x30] sm:$0xff]
      %v233 = vld [vmem:[%s219 + $0x38] sm:$0xff]
      %v234 = vld [vmem:[%s219 + $0x40] sm:$0xff]
      %v235 = vld [vmem:[%s219 + $0x48] sm:$0xff]
      %v236 = vld [vmem:[%s219 + $0x50] sm:$0xff]
      %v237 = vld [vmem:[%s219 + $0x58] sm:$0xff]
      %v238 = vld [vmem:[%s219 + $0x60] sm:$0xff]
      %v239 = vld [vmem:[%s219 + $0x68] sm:$0xff]
      %v240 = vld [vmem:[%s219 + $0x70] sm:$0xff]
      %v241 = vld [vmem:[%s219 + $0x78] sm:$0xff]
      %v242 = vld [vmem:[%s219 + $0x80] sm:$0xff]
      %v243 = vld [vmem:[%s219 + $0x88] sm:$0xff]
      %v244 = vld [vmem:[%s219 + $0x90] sm:$0xff]
      %v245 = vld [vmem:[%s219 + $0x98] sm:$0xff]
      %v246 = vld [vmem:[%s219 + $0xa0] sm:$0xff]
      %v247 = vld [vmem:[%s219 + $0xa8] sm:$0xff]
      %v248 = vld [vmem:[%s219 + $0xb0] sm:$0xff]
      %v249 = vld [vmem:[%s219 + $0xb8] sm:$0xff]
      %v250 = vld [vmem:[%s219 + $0xc0] sm:$0xff]
      %v251 = vld [vmem:[%s219 + $0xc8] sm:$0xff]
      %v252 = vld [vmem:[%s219 + $0xd0] sm:$0xff]
      %v253 = vld [vmem:[%s219 + $0xd8] sm:$0xff]
      %v254 = vld [vmem:[%s219 + $0xe0] sm:$0xff]
      %v255 = vld [vmem:[%s219 + $0xe8] sm:$0xff]
      %v256 = vld [vmem:[%s219 + $0xf0] sm:$0xff]
      %v257 = vld [vmem:[%s219 + $0xf8] sm:$0xff]
      %v258 = vpack.c.bf16 %v227, %v226
      %v259 = vpack.c.bf16 %v229, %v228
      %v260 = vpack.c.bf16 %v231, %v230
      %v261 = vpack.c.bf16 %v233, %v232
      %v262 = vpack.c.bf16 %v235, %v234
      %v263 = vpack.c.bf16 %v237, %v236
      %v264 = vpack.c.bf16 %v239, %v238
      %v265 = vpack.c.bf16 %v241, %v240
      %v266 = vpack.c.bf16 %v243, %v242
      %v267 = vpack.c.bf16 %v245, %v244
      %v268 = vpack.c.bf16 %v247, %v246
      %v269 = vpack.c.bf16 %v249, %v248
      %v270 = vpack.c.bf16 %v251, %v250
      %v271 = vpack.c.bf16 %v253, %v252
      %v272 = vpack.c.bf16 %v255, %v254
      %v273 = vpack.c.bf16 %v257, %v256
      %v274 = vld [vmem:[%s1] sm:$0xf]
      %v275 = vld [vmem:[%s2] sm:$0x1]
      %v277 = vlaneseq
      %v278 = vshrl.u32 %v277, 7
      %v279 = vsub.s32 0, %v278
      %v280 = vrot.slane %v275, %v279
      %vm282 = vcmask 64512
      %v284 = vsel %vm282, %v258, 0
      %v287 = vsel %vm282, %v259, 0
      %v290 = vsel %vm282, %v260, 0
      %v293 = vsel %vm282, %v261, 0
      %v296 = vsel %vm282, %v262, 0
      %v299 = vsel %vm282, %v263, 0
      %v302 = vsel %vm282, %v264, 0
      %v305 = vsel %vm282, %v265, 0
      %v308 = vsel %vm282, %v266, 0
      %v311 = vsel %vm282, %v267, 0
      %v314 = vsel %vm282, %v268, 0
      %v317 = vsel %vm282, %v269, 0
      %v320 = vsel %vm282, %v270, 0
      %v323 = vsel %vm282, %v271, 0
      %v326 = vsel %vm282, %v272, 0
      %v329 = vsel %vm282, %v273, 0
      %vm331 = vcmask 1043456
      %v333 = vsel %vm331, %v274, 0
      %335 = vmatprep.subr.bf16.mxu0 0
      %336 = vmatpush1.bf16.msra.mxu0 %v333
      %337 = vmatprep.subr.bf16.mxu0 0
      %338 = vmatpush1.bf16.msra.mxu0 0
      %339 = vmatprep.subr.bf16.mxu0 0
      %340 = vmatpush1.bf16.msra.mxu0 0
      %341 = vmatprep.subr.bf16.mxu0 0
      %342 = vmatpush1.bf16.msra.mxu0 0
      %343 = vmatprep.subr.bf16.mxu0 0
      %344 = vmatpush1.bf16.msra.mxu0 0
      %345 = vmatprep.subr.bf16.mxu0 0
      %346 = vmatpush1.bf16.msra.mxu0 0
      %347 = vmatprep.subr.bf16.mxu0 0
      %348 = vmatpush1.bf16.msra.mxu0 0
      %349 = vmatprep.subr.bf16.mxu0 0
      %350 = vmatpush1.bf16.msra.mxu0 0
      %351 = vmatprep.subr.bf16.mxu0 0
      %352 = vmatpush1.bf16.msra.mxu0 0
      %353 = vmatprep.subr.bf16.mxu0 0
      %354 = vmatpush1.bf16.msra.mxu0 0
      %355 = vmatprep.subr.bf16.mxu0 0
      %356 = vmatpush1.bf16.msra.mxu0 0
      %357 = vmatprep.subr.bf16.mxu0 0
      %358 = vmatpush1.bf16.msra.mxu0 0
      %359 = vmatprep.subr.bf16.mxu0 0
      %360 = vmatpush1.bf16.msra.mxu0 0
      %361 = vmatprep.subr.bf16.mxu0 0
      %362 = vmatpush1.bf16.msra.mxu0 0
      %363 = vmatprep.subr.bf16.mxu0 0
      %364 = vmatpush1.bf16.msra.mxu0 0
      %365 = vmatprep.subr.bf16.mxu0 0
      %366 = vmatpush1.bf16.msra.mxu0 0
      %367 = vmatprep.mubr.bf16.mxu0 0
      %368 = vmatmul.mubr.bf16.gmra.mrb[0].mxu0 %v284
      %v369 = vpop.f32.mrb[0].mxu0
      %v370 = vadd.f32 %v280, %v369
      %v371 = vpop.f32.mrb[0].mxu0
      %v372 = vpop.f32.mrb[0].mxu0
      %v373 = vadd.f32 %v280, %v372
      %v374 = vpop.f32.mrb[0].mxu0
      %375 = vmatprep.mubr.bf16.mxu0 0
      %376 = vmatmul.mubr.bf16.gmra.mrb[0].mxu0 %v287
      %v377 = vpop.f32.mrb[0].mxu0
      %v378 = vadd.f32 %v280, %v377
      %v379 = vpop.f32.mrb[0].mxu0
      %v380 = vpop.f32.mrb[0].mxu0
      %v381 = vadd.f32 %v280, %v380
      %v382 = vpop.f32.mrb[0].mxu0
      %383 = vmatprep.mubr.bf16.mxu0 0
      %384 = vmatmul.mubr.bf16.gmra.mrb[0].mxu0 %v290
      %v385 = vpop.f32.mrb[0].mxu0
      %v386 = vadd.f32 %v280, %v385
      %v387 = vpop.f32.mrb[0].mxu0
      %v388 = vpop.f32.mrb[0].mxu0
      %v389 = vadd.f32 %v280, %v388
      %v390 = vpop.f32.mrb[0].mxu0
      %391 = vmatprep.mubr.bf16.mxu0 0
      %392 = vmatmul.mubr.bf16.gmra.mrb[0].mxu0 %v293
      %v393 = vpop.f32.mrb[0].mxu0
      %v394 = vadd.f32 %v280, %v393
      %v395 = vpop.f32.mrb[0].mxu0
      %v396 = vpop.f32.mrb[0].mxu0
      %v397 = vadd.f32 %v280, %v396
      %v398 = vpop.f32.mrb[0].mxu0
      %399 = vmatprep.mubr.bf16.mxu0 0
      %400 = vmatmul.mubr.bf16.gmra.mrb[0].mxu0 %v296
      %v401 = vpop.f32.mrb[0].mxu0
      %v402 = vadd.f32 %v280, %v401
      %v403 = vpop.f32.mrb[0].mxu0
      %v404 = vpop.f32.mrb[0].mxu0
      %v405 = vadd.f32 %v280, %v404
      %v406 = vpop.f32.mrb[0].mxu0
      %407 = vmatprep.mubr.bf16.mxu0 0
      %408 = vmatmul.mubr.bf16.gmra.mrb[0].mxu0 %v299
      %v409 = vpop.f32.mrb[0].mxu0
      %v410 = vadd.f32 %v280, %v409
      %v411 = vpop.f32.mrb[0].mxu0
      %v412 = vpop.f32.mrb[0].mxu0
      %v413 = vadd.f32 %v280, %v412
      %v414 = vpop.f32.mrb[0].mxu0
      %415 = vmatprep.mubr.bf16.mxu0 0
      %416 = vmatmul.mubr.bf16.gmra.mrb[0].mxu0 %v302
      %v417 = vpop.f32.mrb[0].mxu0
      %v418 = vadd.f32 %v280, %v417
      %v419 = vpop.f32.mrb[0].mxu0
      %v420 = vpop.f32.mrb[0].mxu0
      %v421 = vadd.f32 %v280, %v420
      %v422 = vpop.f32.mrb[0].mxu0
      %423 = vmatprep.mubr.bf16.mxu0 0
      %424 = vmatmul.mubr.bf16.gmra.mrb[0].mxu0 %v305
      %v425 = vpop.f32.mrb[0].mxu0
      %v426 = vadd.f32 %v280, %v425
      %v427 = vpop.f32.mrb[0].mxu0
      %v428 = vpop.f32.mrb[0].mxu0
      %v429 = vadd.f32 %v280, %v428
      %v430 = vpop.f32.mrb[0].mxu0
      %431 = vmatprep.mubr.bf16.mxu0 0
      %432 = vmatmul.mubr.bf16.gmra.mrb[0].mxu0 %v308
      %v433 = vpop.f32.mrb[0].mxu0
      %v434 = vadd.f32 %v280, %v433
      %v435 = vpop.f32.mrb[0].mxu0
      %v436 = vpop.f32.mrb[0].mxu0
      %v437 = vadd.f32 %v280, %v436
      %v438 = vpop.f32.mrb[0].mxu0
      %439 = vmatprep.mubr.bf16.mxu0 0
      %440 = vmatmul.mubr.bf16.gmra.mrb[0].mxu0 %v311
      %v441 = vpop.f32.mrb[0].mxu0
      %v442 = vadd.f32 %v280, %v441
      %v443 = vpop.f32.mrb[0].mxu0
      %v444 = vpop.f32.mrb[0].mxu0
      %v445 = vadd.f32 %v280, %v444
      %v446 = vpop.f32.mrb[0].mxu0
      %447 = vmatprep.mubr.bf16.mxu0 0
      %448 = vmatmul.mubr.bf16.gmra.mrb[0].mxu0 %v314
      %v449 = vpop.f32.mrb[0].mxu0
      %v450 = vadd.f32 %v280, %v449
      %v451 = vpop.f32.mrb[0].mxu0
      %v452 = vpop.f32.mrb[0].mxu0
      %v453 = vadd.f32 %v280, %v452
      %v454 = vpop.f32.mrb[0].mxu0
      %455 = vmatprep.mubr.bf16.mxu0 0
      %456 = vmatmul.mubr.bf16.gmra.mrb[0].mxu0 %v317
      %v457 = vpop.f32.mrb[0].mxu0
      %v458 = vadd.f32 %v280, %v457
      %v459 = vpop.f32.mrb[0].mxu0
      %v460 = vpop.f32.mrb[0].mxu0
      %v461 = vadd.f32 %v280, %v460
      %v462 = vpop.f32.mrb[0].mxu0
      %463 = vmatprep.mubr.bf16.mxu0 0
      %464 = vmatmul.mubr.bf16.gmra.mrb[0].mxu0 %v320
      %v465 = vpop.f32.mrb[0].mxu0
      %v466 = vadd.f32 %v280, %v465
      %v467 = vpop.f32.mrb[0].mxu0
      %v468 = vpop.f32.mrb[0].mxu0
      %v469 = vadd.f32 %v280, %v468
      %v470 = vpop.f32.mrb[0].mxu0
      %471 = vmatprep.mubr.bf16.mxu0 0
      %472 = vmatmul.mubr.bf16.gmra.mrb[0].mxu0 %v323
      %v473 = vpop.f32.mrb[0].mxu0
      %v474 = vadd.f32 %v280, %v473
      %v475 = vpop.f32.mrb[0].mxu0
      %v476 = vpop.f32.mrb[0].mxu0
      %v477 = vadd.f32 %v280, %v476
      %v478 = vpop.f32.mrb[0].mxu0
      %479 = vmatprep.mubr.bf16.mxu0 0
      %480 = vmatmul.mubr.bf16.gmra.mrb[0].mxu0 %v326
      %v481 = vpop.f32.mrb[0].mxu0
      %v482 = vadd.f32 %v280, %v481
      %v483 = vpop.f32.mrb[0].mxu0
      %v484 = vpop.f32.mrb[0].mxu0
      %v485 = vadd.f32 %v280, %v484
      %v486 = vpop.f32.mrb[0].mxu0
      %487 = vmatprep.mubr.bf16.mxu0 0
      %488 = vmatmul.mubr.bf16.gmra.mrb[0].mxu0 %v329
      %v489 = vpop.f32.mrb[0].mxu0
      %v490 = vadd.f32 %v280, %v489
      %v491 = vpop.f32.mrb[0].mxu0
      %v492 = vpop.f32.mrb[0].mxu0
      %v493 = vadd.f32 %v280, %v492
      %v494 = vpop.f32.mrb[0].mxu0
      %495 = vdwg.mxu0
      %v496 = vxor.u32 %v370, 2147483648
      %v497 = vxor.u32 %v373, 2147483648
      %v498 = vxor.u32 %v378, 2147483648
      %v499 = vxor.u32 %v381, 2147483648
      %v500 = vxor.u32 %v386, 2147483648
      %v501 = vxor.u32 %v389, 2147483648
      %v502 = vxor.u32 %v394, 2147483648
      %v503 = vxor.u32 %v397, 2147483648
      %v504 = vxor.u32 %v402, 2147483648
      %v505 = vxor.u32 %v405, 2147483648
      %v506 = vxor.u32 %v410, 2147483648
      %v507 = vxor.u32 %v413, 2147483648
      %v508 = vxor.u32 %v418, 2147483648
      %v509 = vxor.u32 %v421, 2147483648
      %v510 = vxor.u32 %v426, 2147483648
      %v511 = vxor.u32 %v429, 2147483648
      %v512 = vxor.u32 %v434, 2147483648
      %v513 = vxor.u32 %v437, 2147483648
      %v514 = vxor.u32 %v442, 2147483648
      %v515 = vxor.u32 %v445, 2147483648
      %v516 = vxor.u32 %v450, 2147483648
      %v517 = vxor.u32 %v453, 2147483648
      %v518 = vxor.u32 %v458, 2147483648
      %v519 = vxor.u32 %v461, 2147483648
      %v520 = vxor.u32 %v466, 2147483648
      %v521 = vxor.u32 %v469, 2147483648
      %v522 = vxor.u32 %v474, 2147483648
      %v523 = vxor.u32 %v477, 2147483648
      %v524 = vxor.u32 %v482, 2147483648
      %v525 = vxor.u32 %v485, 2147483648
      %v526 = vxor.u32 %v490, 2147483648
      %v527 = vxor.u32 %v493, 2147483648
      %v528 = vmul.f32 %v496, 1.442695
      %v529 = vpow.pop %v528
      %v530 = vmul.f32 %v497, 1.442695
      %v531 = vpow.pop %v530
      %v532 = vmul.f32 %v498, 1.442695
      %v533 = vpow.pop %v532
      %v534 = vmul.f32 %v499, 1.442695
      %v535 = vpow.pop %v534
      %v536 = vmul.f32 %v500, 1.442695
      %v537 = vpow.pop %v536
      %v538 = vmul.f32 %v501, 1.442695
      %v539 = vpow.pop %v538
      %v540 = vmul.f32 %v502, 1.442695
      %v541 = vpow.pop %v540
      %v542 = vmul.f32 %v503, 1.442695
      %v543 = vpow.pop %v542
      %v544 = vmul.f32 %v504, 1.442695
      %v545 = vpow.pop %v544
      %v546 = vmul.f32 %v505, 1.442695
      %v547 = vpow.pop %v546
      %v548 = vmul.f32 %v506, 1.442695
      %v549 = vpow.pop %v548
      %v550 = vmul.f32 %v507, 1.442695
      %v551 = vpow.pop %v550
      %v552 = vmul.f32 %v508, 1.442695
      %v553 = vpow.pop %v552
      %v554 = vmul.f32 %v509, 1.442695
      %v555 = vpow.pop %v554
      %v556 = vmul.f32 %v510, 1.442695
      %v557 = vpow.pop %v556
      %v558 = vmul.f32 %v511, 1.442695
      %v559 = vpow.pop %v558
      %v560 = vmul.f32 %v512, 1.442695
      %v561 = vpow.pop %v560
      %v562 = vmul.f32 %v513, 1.442695
      %v563 = vpow.pop %v562
      %v564 = vmul.f32 %v514, 1.442695
      %v565 = vpow.pop %v564
      %v566 = vmul.f32 %v515, 1.442695
      %v567 = vpow.pop %v566
      %v568 = vmul.f32 %v516, 1.442695
      %v569 = vpow.pop %v568
      %v570 = vmul.f32 %v517, 1.442695
      %v571 = vpow.pop %v570
      %v572 = vmul.f32 %v518, 1.442695
      %v573 = vpow.pop %v572
      %v574 = vmul.f32 %v519, 1.442695
      %v575 = vpow.pop %v574
      %v576 = vmul.f32 %v520, 1.442695
      %v577 = vpow.pop %v576
      %v578 = vmul.f32 %v521, 1.442695
      %v579 = vpow.pop %v578
      %v580 = vmul.f32 %v522, 1.442695
      %v581 = vpow.pop %v580
      %v582 = vmul.f32 %v523, 1.442695
      %v583 = vpow.pop %v582
      %v584 = vmul.f32 %v524, 1.442695
      %v585 = vpow.pop %v584
      %v586 = vmul.f32 %v525, 1.442695
      %v587 = vpow.pop %v586
      %v588 = vmul.f32 %v526, 1.442695
      %v589 = vpow.pop %v588
      %v590 = vmul.f32 %v527, 1.442695
      %v591 = vpow.pop %v590
      %v592 = vadd.f32 %v529, 1.0
      %v593 = vadd.f32 %v531, 1.0
      %v594 = vadd.f32 %v533, 1.0
      %v595 = vadd.f32 %v535, 1.0
      %v596 = vadd.f32 %v537, 1.0
      %v597 = vadd.f32 %v539, 1.0
      %v598 = vadd.f32 %v541, 1.0
      %v599 = vadd.f32 %v543, 1.0
      %v600 = vadd.f32 %v545, 1.0
      %v601 = vadd.f32 %v547, 1.0
      %v602 = vadd.f32 %v549, 1.0
      %v603 = vadd.f32 %v551, 1.0
      %v604 = vadd.f32 %v553, 1.0
      %v605 = vadd.f32 %v555, 1.0
      %v606 = vadd.f32 %v557, 1.0
      %v607 = vadd.f32 %v559, 1.0
      %v608 = vadd.f32 %v561, 1.0
      %v609 = vadd.f32 %v563, 1.0
      %v610 = vadd.f32 %v565, 1.0
      %v611 = vadd.f32 %v567, 1.0
      %v612 = vadd.f32 %v569, 1.0
      %v613 = vadd.f32 %v571, 1.0
      %v614 = vadd.f32 %v573, 1.0
      %v615 = vadd.f32 %v575, 1.0
      %v616 = vadd.f32 %v577, 1.0
      %v617 = vadd.f32 %v579, 1.0
      %v618 = vadd.f32 %v581, 1.0
      %v619 = vadd.f32 %v583, 1.0
      %v620 = vadd.f32 %v585, 1.0
      %v621 = vadd.f32 %v587, 1.0
      %v622 = vadd.f32 %v589, 1.0
      %v623 = vadd.f32 %v591, 1.0
      %v624 = vrcp.pop %v592
      %v625 = vmul.f32 1.0, %v624
      %v626 = vrcp.pop %v593
      %v627 = vmul.f32 1.0, %v626
      %v628 = vrcp.pop %v594
      %v629 = vmul.f32 1.0, %v628
      %v630 = vrcp.pop %v595
      %v631 = vmul.f32 1.0, %v630
      %v632 = vrcp.pop %v596
      %v633 = vmul.f32 1.0, %v632
      %v634 = vrcp.pop %v597
      %v635 = vmul.f32 1.0, %v634
      %v636 = vrcp.pop %v598
      %v637 = vmul.f32 1.0, %v636
      %v638 = vrcp.pop %v599
      %v639 = vmul.f32 1.0, %v638
      %v640 = vrcp.pop %v600
      %v641 = vmul.f32 1.0, %v640
      %v642 = vrcp.pop %v601
      %v643 = vmul.f32 1.0, %v642
      %v644 = vrcp.pop %v602
      %v645 = vmul.f32 1.0, %v644
      %v646 = vrcp.pop %v603
      %v647 = vmul.f32 1.0, %v646
      %v648 = vrcp.pop %v604
      %v649 = vmul.f32 1.0, %v648
      %v650 = vrcp.pop %v605
      %v651 = vmul.f32 1.0, %v650
      %v652 = vrcp.pop %v606
      %v653 = vmul.f32 1.0, %v652
      %v654 = vrcp.pop %v607
      %v655 = vmul.f32 1.0, %v654
      %v656 = vrcp.pop %v608
      %v657 = vmul.f32 1.0, %v656
      %v658 = vrcp.pop %v609
      %v659 = vmul.f32 1.0, %v658
      %v660 = vrcp.pop %v610
      %v661 = vmul.f32 1.0, %v660
      %v662 = vrcp.pop %v611
      %v663 = vmul.f32 1.0, %v662
      %v664 = vrcp.pop %v612
      %v665 = vmul.f32 1.0, %v664
      %v666 = vrcp.pop %v613
      %v667 = vmul.f32 1.0, %v666
      %v668 = vrcp.pop %v614
      %v669 = vmul.f32 1.0, %v668
      %v670 = vrcp.pop %v615
      %v671 = vmul.f32 1.0, %v670
      %v672 = vrcp.pop %v616
      %v673 = vmul.f32 1.0, %v672
      %v674 = vrcp.pop %v617
      %v675 = vmul.f32 1.0, %v674
      %v676 = vrcp.pop %v618
      %v677 = vmul.f32 1.0, %v676
      %v678 = vrcp.pop %v619
      %v679 = vmul.f32 1.0, %v678
      %v680 = vrcp.pop %v620
      %v681 = vmul.f32 1.0, %v680
      %v682 = vrcp.pop %v621
      %v683 = vmul.f32 1.0, %v682
      %v684 = vrcp.pop %v622
      %v685 = vmul.f32 1.0, %v684
      %v686 = vrcp.pop %v623
      %v687 = vmul.f32 1.0, %v686
      %v688 = vmul.f32 %v370, %v625
      %v689 = vmul.f32 %v373, %v627
      %v690 = vmul.f32 %v378, %v629
      %v691 = vmul.f32 %v381, %v631
      %v692 = vmul.f32 %v386, %v633
      %v693 = vmul.f32 %v389, %v635
      %v694 = vmul.f32 %v394, %v637
      %v695 = vmul.f32 %v397, %v639
      %v696 = vmul.f32 %v402, %v641
      %v697 = vmul.f32 %v405, %v643
      %v698 = vmul.f32 %v410, %v645
      %v699 = vmul.f32 %v413, %v647
      %v700 = vmul.f32 %v418, %v649
      %v701 = vmul.f32 %v421, %v651
      %v702 = vmul.f32 %v426, %v653
      %v703 = vmul.f32 %v429, %v655
      %v704 = vmul.f32 %v434, %v657
      %v705 = vmul.f32 %v437, %v659
      %v706 = vmul.f32 %v442, %v661
      %v707 = vmul.f32 %v445, %v663
      %v708 = vmul.f32 %v450, %v665
      %v709 = vmul.f32 %v453, %v667
      %v710 = vmul.f32 %v458, %v669
      %v711 = vmul.f32 %v461, %v671
      %v712 = vmul.f32 %v466, %v673
      %v713 = vmul.f32 %v469, %v675
      %v714 = vmul.f32 %v474, %v677
      %v715 = vmul.f32 %v477, %v679
      %v716 = vmul.f32 %v482, %v681
      %v717 = vmul.f32 %v485, %v683
      %v718 = vmul.f32 %v490, %v685
      %v719 = vmul.f32 %v493, %v687
      %vm720 = vcmask 31744
      %721 = vst.msk [vmem:[#allocation2] sm:$0xff] %vm720, -inf
      %722 = vst.msk [vmem:[#allocation2 + $0x8] sm:$0xff] %vm720, -inf
      %723 = vst.msk [vmem:[#allocation2 + $0x10] sm:$0xff] %vm720, -inf
      %724 = vst.msk [vmem:[#allocation2 + $0x18] sm:$0xff] %vm720, -inf
      %s725 = scalar_lea.vmem [#allocation2], 288
      %726 = vst.msk [vmem:[%s725] sm:$0xff] %vm720, -inf
      %727 = vst.msk [vmem:[%s725 + $0x8] sm:$0xff] %vm720, -inf
      %728 = vst.msk [vmem:[%s725 + $0x10] sm:$0xff] %vm720, -inf
      %729 = vst.msk [vmem:[%s725 + $0x18] sm:$0xff] %vm720, -inf
      %vm730 = vcmask 25600
      %731 = vst.msk [vmem:[#allocation3] sm:$0x3] %vm730, -inf
      %732 = vst.msk [vmem:[#allocation3 + $0x18] sm:$0x3] %vm730, -inf
      %733 = vst.msk [vmem:[#allocation3 + $0x30] sm:$0x3] %vm730, -inf
      %734 = vst.msk [vmem:[#allocation3 + $0x48] sm:$0x3] %vm730, -inf
      %735 = vst.msk [vmem:[#allocation3 + $0x60] sm:$0x3] %vm730, -inf
      %736 = vst.msk [vmem:[#allocation3 + $0x78] sm:$0x3] %vm730, -inf
      %737 = vst.msk [vmem:[#allocation3 + $0x90] sm:$0x3] %vm730, -inf
      %738 = vst.msk [vmem:[#allocation3 + $0xa8] sm:$0x3] %vm730, -inf
      %739 = vst.msk [vmem:[#allocation3 + $0xc0] sm:$0x3] %vm730, -inf
      %740 = vst.msk [vmem:[#allocation3 + $0xd8] sm:$0x3] %vm730, -inf
      %741 = vst.msk [vmem:[#allocation3 + $0xf0] sm:$0x3] %vm730, -inf
      %742 = vst.msk [vmem:[#allocation3 + $0x108] sm:$0x3] %vm730, -inf
      %743 = vst.msk [vmem:[#allocation3 + $0x120] sm:$0x3] %vm730, -inf
      %744 = vst.msk [vmem:[#allocation3 + $0x138] sm:$0x3] %vm730, -inf
      %745 = vst.msk [vmem:[#allocation3 + $0x150] sm:$0x3] %vm730, -inf
      %746 = vst.msk [vmem:[#allocation3 + $0x168] sm:$0x3] %vm730, -inf
      %747 = vst.msk [vmem:[#allocation3 + $0x12] sm:$0x3] %vm730, -inf
      %748 = vst.msk [vmem:[#allocation3 + $0x2a] sm:$0x3] %vm730, -inf
      %749 = vst.msk [vmem:[#allocation3 + $0x42] sm:$0x3] %vm730, -inf
      %750 = vst.msk [vmem:[#allocation3 + $0x5a] sm:$0x3] %vm730, -inf
      %751 = vst.msk [vmem:[#allocation3 + $0x72] sm:$0x3] %vm730, -inf
      %752 = vst.msk [vmem:[#allocation3 + $0x8a] sm:$0x3] %vm730, -inf
      %753 = vst.msk [vmem:[#allocation3 + $0xa2] sm:$0x3] %vm730, -inf
      %754 = vst.msk [vmem:[#allocation3 + $0xba] sm:$0x3] %vm730, -inf
      %755 = vst.msk [vmem:[#allocation3 + $0xd2] sm:$0x3] %vm730, -inf
      %756 = vst.msk [vmem:[#allocation3 + $0xea] sm:$0x3] %vm730, -inf
      %757 = vst.msk [vmem:[#allocation3 + $0x102] sm:$0x3] %vm730, -inf
      %758 = vst.msk [vmem:[#allocation3 + $0x11a] sm:$0x3] %vm730, -inf
      %759 = vst.msk [vmem:[#allocation3 + $0x132] sm:$0x3] %vm730, -inf
      %760 = vst.msk [vmem:[#allocation3 + $0x14a] sm:$0x3] %vm730, -inf
      %761 = vst.msk [vmem:[#allocation3 + $0x162] sm:$0x3] %vm730, -inf
      %762 = vst.msk [vmem:[#allocation3 + $0x17a] sm:$0x3] %vm730, -inf
      %s763 = scalar_lea.vmem [#allocation2], 32
      %764 = vst.msk [vmem:[%s763] sm:$0xff] %vm720, %v688
      %765 = vst.msk [vmem:[%s763 + $0x8] sm:$0xff] %vm720, %v689
      %766 = vst.msk [vmem:[%s763 + $0x10] sm:$0xff] %vm720, %v690
      %767 = vst.msk [vmem:[%s763 + $0x18] sm:$0xff] %vm720, %v691
      %768 = vst.msk [vmem:[%s763 + $0x20] sm:$0xff] %vm720, %v692
      %769 = vst.msk [vmem:[%s763 + $0x28] sm:$0xff] %vm720, %v693
      %770 = vst.msk [vmem:[%s763 + $0x30] sm:$0xff] %vm720, %v694
      %771 = vst.msk [vmem:[%s763 + $0x38] sm:$0xff] %vm720, %v695
      %772 = vst.msk [vmem:[%s763 + $0x40] sm:$0xff] %vm720, %v696
      %773 = vst.msk [vmem:[%s763 + $0x48] sm:$0xff] %vm720, %v697
      %774 = vst.msk [vmem:[%s763 + $0x50] sm:$0xff] %vm720, %v698
      %775 = vst.msk [vmem:[%s763 + $0x58] sm:$0xff] %vm720, %v699
      %776 = vst.msk [vmem:[%s763 + $0x60] sm:$0xff] %vm720, %v700
      %777 = vst.msk [vmem:[%s763 + $0x68] sm:$0xff] %vm720, %v701
      %778 = vst.msk [vmem:[%s763 + $0x70] sm:$0xff] %vm720, %v702
      %779 = vst.msk [vmem:[%s763 + $0x78] sm:$0xff] %vm720, %v703
      %780 = vst.msk [vmem:[%s763 + $0x80] sm:$0xff] %vm720, %v704
      %781 = vst.msk [vmem:[%s763 + $0x88] sm:$0xff] %vm720, %v705
      %782 = vst.msk [vmem:[%s763 + $0x90] sm:$0xff] %vm720, %v706
      %783 = vst.msk [vmem:[%s763 + $0x98] sm:$0xff] %vm720, %v707
      %784 = vst.msk [vmem:[%s763 + $0xa0] sm:$0xff] %vm720, %v708
      %785 = vst.msk [vmem:[%s763 + $0xa8] sm:$0xff] %vm720, %v709
      %786 = vst.msk [vmem:[%s763 + $0xb0] sm:$0xff] %vm720, %v710
      %787 = vst.msk [vmem:[%s763 + $0xb8] sm:$0xff] %vm720, %v711
      %788 = vst.msk [vmem:[%s763 + $0xc0] sm:$0xff] %vm720, %v712
      %789 = vst.msk [vmem:[%s763 + $0xc8] sm:$0xff] %vm720, %v713
      %790 = vst.msk [vmem:[%s763 + $0xd0] sm:$0xff] %vm720, %v714
      %791 = vst.msk [vmem:[%s763 + $0xd8] sm:$0xff] %vm720, %v715
      %792 = vst.msk [vmem:[%s763 + $0xe0] sm:$0xff] %vm720, %v716
      %793 = vst.msk [vmem:[%s763 + $0xe8] sm:$0xff] %vm720, %v717
      %794 = vst.msk [vmem:[%s763 + $0xf0] sm:$0xff] %vm720, %v718
      %795 = vst.msk [vmem:[%s763 + $0xf8] sm:$0xff] %vm720, %v719
      %v796 = vld [vmem:[#allocation2] sm:$0xff]
      %v797 = vld [vmem:[#allocation2 + $0x8] sm:$0xff]
      %v798 = vld [vmem:[#allocation2 + $0x10] sm:$0xff]
      %v799 = vld [vmem:[#allocation2 + $0x18] sm:$0xff]
      %v800 = vld [vmem:[#allocation2 + $0x20] sm:$0xff]
      %v801 = vld [vmem:[#allocation2 + $0x28] sm:$0xff]
      %v802 = vld [vmem:[#allocation2 + $0x30] sm:$0xff]
      %v803 = vld [vmem:[#allocation2 + $0x38] sm:$0xff]
      %v804 = vld [vmem:[#allocation2 + $0x40] sm:$0xff]
      %v805 = vld [vmem:[#allocation2 + $0x48] sm:$0xff]
      %v806 = vld [vmem:[#allocation2 + $0x50] sm:$0xff]
      %v807 = vld [vmem:[#allocation2 + $0x58] sm:$0xff]
      %v808 = vld [vmem:[#allocation2 + $0x60] sm:$0xff]
      %v809 = vld [vmem:[#allocation2 + $0x68] sm:$0xff]
      %v810 = vld [vmem:[#allocation2 + $0x70] sm:$0xff]
      %v811 = vld [vmem:[#allocation2 + $0x78] sm:$0xff]
      %v812 = vld [vmem:[#allocation2 + $0x80] sm:$0xff]
      %v813 = vld [vmem:[#allocation2 + $0x88] sm:$0xff]
      %v814 = vld [vmem:[#allocation2 + $0x90] sm:$0xff]
      %v815 = vld [vmem:[#allocation2 + $0x98] sm:$0xff]
      %v816 = vld [vmem:[#allocation2 + $0xa0] sm:$0xff]
      %v817 = vld [vmem:[#allocation2 + $0xa8] sm:$0xff]
      %v818 = vld [vmem:[#allocation2 + $0xb0] sm:$0xff]
      %v819 = vld [vmem:[#allocation2 + $0xb8] sm:$0xff]
      %v820 = vld [vmem:[#allocation2 + $0xc0] sm:$0xff]
      %v821 = vld [vmem:[#allocation2 + $0xc8] sm:$0xff]
      %v822 = vld [vmem:[#allocation2 + $0xd0] sm:$0xff]
      %v823 = vld [vmem:[#allocation2 + $0xd8] sm:$0xff]
      %v824 = vld [vmem:[#allocation2 + $0xe0] sm:$0xff]
      %v825 = vld [vmem:[#allocation2 + $0xe8] sm:$0xff]
      %v826 = vld [vmem:[#allocation2 + $0xf0] sm:$0xff]
      %v827 = vld [vmem:[#allocation2 + $0xf8] sm:$0xff]
      %s828 = scalar_lea.vmem [#allocation2], 16
      %v829 = vld [vmem:[%s828] sm:$0xff]
      %v830 = vld [vmem:[%s828 + $0x8] sm:$0xff]
      %v831 = vld [vmem:[%s828 + $0x10] sm:$0xff]
      %v832 = vld [vmem:[%s828 + $0x18] sm:$0xff]
      %v833 = vld [vmem:[%s828 + $0x20] sm:$0xff]
      %v834 = vld [vmem:[%s828 + $0x28] sm:$0xff]
      %v835 = vld [vmem:[%s828 + $0x30] sm:$0xff]
      %v836 = vld [vmem:[%s828 + $0x38] sm:$0xff]
      %v837 = vld [vmem:[%s828 + $0x40] sm:$0xff]
      %v838 = vld [vmem:[%s828 + $0x48] sm:$0xff]
      %v839 = vld [vmem:[%s828 + $0x50] sm:$0xff]
      %v840 = vld [vmem:[%s828 + $0x58] sm:$0xff]
      %v841 = vld [vmem:[%s828 + $0x60] sm:$0xff]
      %v842 = vld [vmem:[%s828 + $0x68] sm:$0xff]
      %v843 = vld [vmem:[%s828 + $0x70] sm:$0xff]
      %v844 = vld [vmem:[%s828 + $0x78] sm:$0xff]
      %v845 = vld [vmem:[%s828 + $0x80] sm:$0xff]
      %v846 = vld [vmem:[%s828 + $0x88] sm:$0xff]
      %v847 = vld [vmem:[%s828 + $0x90] sm:$0xff]
      %v848 = vld [vmem:[%s828 + $0x98] sm:$0xff]
      %v849 = vld [vmem:[%s828 + $0xa0] sm:$0xff]
      %v850 = vld [vmem:[%s828 + $0xa8] sm:$0xff]
      %v851 = vld [vmem:[%s828 + $0xb0] sm:$0xff]
      %v852 = vld [vmem:[%s828 + $0xb8] sm:$0xff]
      %v853 = vld [vmem:[%s828 + $0xc0] sm:$0xff]
      %v854 = vld [vmem:[%s828 + $0xc8] sm:$0xff]
      %v855 = vld [vmem:[%s828 + $0xd0] sm:$0xff]
      %v856 = vld [vmem:[%s828 + $0xd8] sm:$0xff]
      %v857 = vld [vmem:[%s828 + $0xe0] sm:$0xff]
      %v858 = vld [vmem:[%s828 + $0xe8] sm:$0xff]
      %v859 = vld [vmem:[%s828 + $0xf0] sm:$0xff]
      %v860 = vld [vmem:[%s828 + $0xf8] sm:$0xff]
      %v861 = vld [vmem:[%s763] sm:$0xff]
      %v862 = vld [vmem:[%s763 + $0x8] sm:$0xff]
      %v863 = vld [vmem:[%s763 + $0x10] sm:$0xff]
      %v864 = vld [vmem:[%s763 + $0x18] sm:$0xff]
      %v865 = vld [vmem:[%s763 + $0x20] sm:$0xff]
      %v866 = vld [vmem:[%s763 + $0x28] sm:$0xff]
      %v867 = vld [vmem:[%s763 + $0x30] sm:$0xff]
      %v868 = vld [vmem:[%s763 + $0x38] sm:$0xff]
      %v869 = vld [vmem:[%s763 + $0x40] sm:$0xff]
      %v870 = vld [vmem:[%s763 + $0x48] sm:$0xff]
      %v871 = vld [vmem:[%s763 + $0x50] sm:$0xff]
      %v872 = vld [vmem:[%s763 + $0x58] sm:$0xff]
      %v873 = vld [vmem:[%s763 + $0x60] sm:$0xff]
      %v874 = vld [vmem:[%s763 + $0x68] sm:$0xff]
      %v875 = vld [vmem:[%s763 + $0x70] sm:$0xff]
      %v876 = vld [vmem:[%s763 + $0x78] sm:$0xff]
      %v877 = vld [vmem:[%s763 + $0x80] sm:$0xff]
      %v878 = vld [vmem:[%s763 + $0x88] sm:$0xff]
      %v879 = vld [vmem:[%s763 + $0x90] sm:$0xff]
      %v880 = vld [vmem:[%s763 + $0x98] sm:$0xff]
      %v881 = vld [vmem:[%s763 + $0xa0] sm:$0xff]
      %v882 = vld [vmem:[%s763 + $0xa8] sm:$0xff]
      %v883 = vld [vmem:[%s763 + $0xb0] sm:$0xff]
      %v884 = vld [vmem:[%s763 + $0xb8] sm:$0xff]
      %v885 = vld [vmem:[%s763 + $0xc0] sm:$0xff]
      %v886 = vld [vmem:[%s763 + $0xc8] sm:$0xff]
      %v887 = vld [vmem:[%s763 + $0xd0] sm:$0xff]
      %v888 = vld [vmem:[%s763 + $0xd8] sm:$0xff]
      %v889 = vld [vmem:[%s763 + $0xe0] sm:$0xff]
      %v890 = vld [vmem:[%s763 + $0xe8] sm:$0xff]
      %v891 = vld [vmem:[%s763 + $0xf0] sm:$0xff]
      %v892 = vld [vmem:[%s763 + $0xf8] sm:$0xff]
      %s893 = scalar_lea.vmem [#allocation2], 48
      %v894 = vld [vmem:[%s893] sm:$0xff]
      %v895 = vld [vmem:[%s893 + $0x8] sm:$0xff]
      %v896 = vld [vmem:[%s893 + $0x10] sm:$0xff]
      %v897 = vld [vmem:[%s893 + $0x18] sm:$0xff]
      %v898 = vld [vmem:[%s893 + $0x20] sm:$0xff]
      %v899 = vld [vmem:[%s893 + $0x28] sm:$0xff]
      %v900 = vld [vmem:[%s893 + $0x30] sm:$0xff]
      %v901 = vld [vmem:[%s893 + $0x38] sm:$0xff]
      %v902 = vld [vmem:[%s893 + $0x40] sm:$0xff]
      %v903 = vld [vmem:[%s893 + $0x48] sm:$0xff]
      %v904 = vld [vmem:[%s893 + $0x50] sm:$0xff]
      %v905 = vld [vmem:[%s893 + $0x58] sm:$0xff]
      %v906 = vld [vmem:[%s893 + $0x60] sm:$0xff]
      %v907 = vld [vmem:[%s893 + $0x68] sm:$0xff]
      %v908 = vld [vmem:[%s893 + $0x70] sm:$0xff]
      %v909 = vld [vmem:[%s893 + $0x78] sm:$0xff]
      %v910 = vld [vmem:[%s893 + $0x80] sm:$0xff]
      %v911 = vld [vmem:[%s893 + $0x88] sm:$0xff]
      %v912 = vld [vmem:[%s893 + $0x90] sm:$0xff]
      %v913 = vld [vmem:[%s893 + $0x98] sm:$0xff]
      %v914 = vld [vmem:[%s893 + $0xa0] sm:$0xff]
      %v915 = vld [vmem:[%s893 + $0xa8] sm:$0xff]
      %v916 = vld [vmem:[%s893 + $0xb0] sm:$0xff]
      %v917 = vld [vmem:[%s893 + $0xb8] sm:$0xff]
      %v918 = vld [vmem:[%s893 + $0xc0] sm:$0xff]
      %v919 = vld [vmem:[%s893 + $0xc8] sm:$0xff]
      %v920 = vld [vmem:[%s893 + $0xd0] sm:$0xff]
      %v921 = vld [vmem:[%s893 + $0xd8] sm:$0xff]
      %v922 = vld [vmem:[%s893 + $0xe0] sm:$0xff]
      %v923 = vld [vmem:[%s893 + $0xe8] sm:$0xff]
      %v924 = vld [vmem:[%s893 + $0xf0] sm:$0xff]
      %v925 = vld [vmem:[%s893 + $0xf8] sm:$0xff]
      %s926 = scalar_lea.vmem [#allocation2], 64
      %v927 = vld [vmem:[%s926] sm:$0xff]
      %v928 = vld [vmem:[%s926 + $0x8] sm:$0xff]
      %v929 = vld [vmem:[%s926 + $0x10] sm:$0xff]
      %v930 = vld [vmem:[%s926 + $0x18] sm:$0xff]
      %v931 = vld [vmem:[%s926 + $0x20] sm:$0xff]
      %v932 = vld [vmem:[%s926 + $0x28] sm:$0xff]
      %v933 = vld [vmem:[%s926 + $0x30] sm:$0xff]
      %v934 = vld [vmem:[%s926 + $0x38] sm:$0xff]
      %v935 = vld [vmem:[%s926 + $0x40] sm:$0xff]
      %v936 = vld [vmem:[%s926 + $0x48] sm:$0xff]
      %v937 = vld [vmem:[%s926 + $0x50] sm:$0xff]
      %v938 = vld [vmem:[%s926 + $0x58] sm:$0xff]
      %v939 = vld [vmem:[%s926 + $0x60] sm:$0xff]
      %v940 = vld [vmem:[%s926 + $0x68] sm:$0xff]
      %v941 = vld [vmem:[%s926 + $0x70] sm:$0xff]
      %v942 = vld [vmem:[%s926 + $0x78] sm:$0xff]
      %v943 = vld [vmem:[%s926 + $0x80] sm:$0xff]
      %v944 = vld [vmem:[%s926 + $0x88] sm:$0xff]
      %v945 = vld [vmem:[%s926 + $0x90] sm:$0xff]
      %v946 = vld [vmem:[%s926 + $0x98] sm:$0xff]
      %v947 = vld [vmem:[%s926 + $0xa0] sm:$0xff]
      %v948 = vld [vmem:[%s926 + $0xa8] sm:$0xff]
      %v949 = vld [vmem:[%s926 + $0xb0] sm:$0xff]
      %v950 = vld [vmem:[%s926 + $0xb8] sm:$0xff]
      %v951 = vld [vmem:[%s926 + $0xc0] sm:$0xff]
      %v952 = vld [vmem:[%s926 + $0xc8] sm:$0xff]
      %v953 = vld [vmem:[%s926 + $0xd0] sm:$0xff]
      %v954 = vld [vmem:[%s926 + $0xd8] sm:$0xff]
      %v955 = vld [vmem:[%s926 + $0xe0] sm:$0xff]
      %v956 = vld [vmem:[%s926 + $0xe8] sm:$0xff]
      %v957 = vld [vmem:[%s926 + $0xf0] sm:$0xff]
      %v958 = vld [vmem:[%s926 + $0xf8] sm:$0xff]
      %v959 = vmax.f32 %v796, %v829
      %v960 = vmax.f32 %v797, %v830
      %v961 = vmax.f32 %v798, %v831
      %v962 = vmax.f32 %v799, %v832
      %v963 = vmax.f32 %v800, %v833
      %v964 = vmax.f32 %v801, %v834
      %v965 = vmax.f32 %v802, %v835
      %v966 = vmax.f32 %v803, %v836
      %v967 = vmax.f32 %v804, %v837
      %v968 = vmax.f32 %v805, %v838
      %v969 = vmax.f32 %v806, %v839
      %v970 = vmax.f32 %v807, %v840
      %v971 = vmax.f32 %v808, %v841
      %v972 = vmax.f32 %v809, %v842
      %v973 = vmax.f32 %v810, %v843
      %v974 = vmax.f32 %v811, %v844
      %v975 = vmax.f32 %v812, %v845
      %v976 = vmax.f32 %v813, %v846
      %v977 = vmax.f32 %v814, %v847
      %v978 = vmax.f32 %v815, %v848
      %v979 = vmax.f32 %v816, %v849
      %v980 = vmax.f32 %v817, %v850
      %v981 = vmax.f32 %v818, %v851
      %v982 = vmax.f32 %v819, %v852
      %v983 = vmax.f32 %v820, %v853
      %v984 = vmax.f32 %v821, %v854
      %v985 = vmax.f32 %v822, %v855
      %v986 = vmax.f32 %v823, %v856
      %v987 = vmax.f32 %v824, %v857
      %v988 = vmax.f32 %v825, %v858
      %v989 = vmax.f32 %v826, %v859
      %v990 = vmax.f32 %v827, %v860
      %v991 = vmax.f32 %v861, %v894
      %v992 = vmax.f32 %v862, %v895
      %v993 = vmax.f32 %v863, %v896
      %v994 = vmax.f32 %v864, %v897
      %v995 = vmax.f32 %v865, %v898
      %v996 = vmax.f32 %v866, %v899
      %v997 = vmax.f32 %v867, %v900
      %v998 = vmax.f32 %v868, %v901
      %v999 = vmax.f32 %v869, %v902
      %v1000 = vmax.f32 %v870, %v903
      %v1001 = vmax.f32 %v871, %v904
      %v1002 = vmax.f32 %v872, %v905
      %v1003 = vmax.f32 %v873, %v906
      %v1004 = vmax.f32 %v874, %v907
      %v1005 = vmax.f32 %v875, %v908
      %v1006 = vmax.f32 %v876, %v909
      %v1007 = vmax.f32 %v877, %v910
      %v1008 = vmax.f32 %v878, %v911
      %v1009 = vmax.f32 %v879, %v912
      %v1010 = vmax.f32 %v880, %v913
      %v1011 = vmax.f32 %v881, %v914
      %v1012 = vmax.f32 %v882, %v915
      %v1013 = vmax.f32 %v883, %v916
      %v1014 = vmax.f32 %v884, %v917
      %v1015 = vmax.f32 %v885, %v918
      %v1016 = vmax.f32 %v886, %v919
      %v1017 = vmax.f32 %v887, %v920
      %v1018 = vmax.f32 %v888, %v921
      %v1019 = vmax.f32 %v889, %v922
      %v1020 = vmax.f32 %v890, %v923
      %v1021 = vmax.f32 %v891, %v924
      %v1022 = vmax.f32 %v892, %v925
      %v1023 = vmax.f32 %v959, %v991
      %v1024 = vmax.f32 %v960, %v992
      %v1025 = vmax.f32 %v961, %v993
      %v1026 = vmax.f32 %v962, %v994
      %v1027 = vmax.f32 %v963, %v995
      %v1028 = vmax.f32 %v964, %v996
      %v1029 = vmax.f32 %v965, %v997
      %v1030 = vmax.f32 %v966, %v998
      %v1031 = vmax.f32 %v967, %v999
      %v1032 = vmax.f32 %v968, %v1000
      %v1033 = vmax.f32 %v969, %v1001
      %v1034 = vmax.f32 %v970, %v1002
      %v1035 = vmax.f32 %v971, %v1003
      %v1036 = vmax.f32 %v972, %v1004
      %v1037 = vmax.f32 %v973, %v1005
      %v1038 = vmax.f32 %v974, %v1006
      %v1039 = vmax.f32 %v975, %v1007
      %v1040 = vmax.f32 %v976, %v1008
      %v1041 = vmax.f32 %v977, %v1009
      %v1042 = vmax.f32 %v978, %v1010
      %v1043 = vmax.f32 %v979, %v1011
      %v1044 = vmax.f32 %v980, %v1012
      %v1045 = vmax.f32 %v981, %v1013
      %v1046 = vmax.f32 %v982, %v1014
      %v1047 = vmax.f32 %v983, %v1015
      %v1048 = vmax.f32 %v984, %v1016
      %v1049 = vmax.f32 %v985, %v1017
      %v1050 = vmax.f32 %v986, %v1018
      %v1051 = vmax.f32 %v987, %v1019
      %v1052 = vmax.f32 %v988, %v1020
      %v1053 = vmax.f32 %v989, %v1021
      %v1054 = vmax.f32 %v990, %v1022
      %v1055 = vmax.f32 %v1023, %v927
      %v1056 = vmax.f32 %v1024, %v928
      %v1057 = vmax.f32 %v1025, %v929
      %v1058 = vmax.f32 %v1026, %v930
      %v1059 = vmax.f32 %v1027, %v931
      %v1060 = vmax.f32 %v1028, %v932
      %v1061 = vmax.f32 %v1029, %v933
      %v1062 = vmax.f32 %v1030, %v934
      %v1063 = vmax.f32 %v1031, %v935
      %v1064 = vmax.f32 %v1032, %v936
      %v1065 = vmax.f32 %v1033, %v937
      %v1066 = vmax.f32 %v1034, %v938
      %v1067 = vmax.f32 %v1035, %v939
      %v1068 = vmax.f32 %v1036, %v940
      %v1069 = vmax.f32 %v1037, %v941
      %v1070 = vmax.f32 %v1038, %v942
      %v1071 = vmax.f32 %v1039, %v943
      %v1072 = vmax.f32 %v1040, %v944
      %v1073 = vmax.f32 %v1041, %v945
      %v1074 = vmax.f32 %v1042, %v946
      %v1075 = vmax.f32 %v1043, %v947
      %v1076 = vmax.f32 %v1044, %v948
      %v1077 = vmax.f32 %v1045, %v949
      %v1078 = vmax.f32 %v1046, %v950
      %v1079 = vmax.f32 %v1047, %v951
      %v1080 = vmax.f32 %v1048, %v952
      %v1081 = vmax.f32 %v1049, %v953
      %v1082 = vmax.f32 %v1050, %v954
      %v1083 = vmax.f32 %v1051, %v955
      %v1084 = vmax.f32 %v1052, %v956
      %v1085 = vmax.f32 %v1053, %v957
      %v1086 = vmax.f32 %v1054, %v958
      %1087 = vst.msk [vmem:[#allocation3 + $0x2] sm:$0xff] %vm720, %v1055
      %1088 = vst.msk [vmem:[#allocation3 + $0xa] sm:$0xff] %vm720, %v1056
      %1089 = vst.msk [vmem:[#allocation3 + $0x1a] sm:$0xff] %vm720, %v1057
      %1090 = vst.msk [vmem:[#allocation3 + $0x22] sm:$0xff] %vm720, %v1058
      %1091 = vst.msk [vmem:[#allocation3 + $0x32] sm:$0xff] %vm720, %v1059
      %1092 = vst.msk [vmem:[#allocation3 + $0x3a] sm:$0xff] %vm720, %v1060
      %1093 = vst.msk [vmem:[#allocation3 + $0x4a] sm:$0xff] %vm720, %v1061
      %1094 = vst.msk [vmem:[#allocation3 + $0x52] sm:$0xff] %vm720, %v1062
      %1095 = vst.msk [vmem:[#allocation3 + $0x62] sm:$0xff] %vm720, %v1063
      %1096 = vst.msk [vmem:[#allocation3 + $0x6a] sm:$0xff] %vm720, %v1064
      %1097 = vst.msk [vmem:[#allocation3 + $0x7a] sm:$0xff] %vm720, %v1065
      %1098 = vst.msk [vmem:[#allocation3 + $0x82] sm:$0xff] %vm720, %v1066
      %1099 = vst.msk [vmem:[#allocation3 + $0x92] sm:$0xff] %vm720, %v1067
      %1100 = vst.msk [vmem:[#allocation3 + $0x9a] sm:$0xff] %vm720, %v1068
      %1101 = vst.msk [vmem:[#allocation3 + $0xaa] sm:$0xff] %vm720, %v1069
      %1102 = vst.msk [vmem:[#allocation3 + $0xb2] sm:$0xff] %vm720, %v1070
      %1103 = vst.msk [vmem:[#allocation3 + $0xc2] sm:$0xff] %vm720, %v1071
      %1104 = vst.msk [vmem:[#allocation3 + $0xca] sm:$0xff] %vm720, %v1072
      %1105 = vst.msk [vmem:[#allocation3 + $0xda] sm:$0xff] %vm720, %v1073
      %1106 = vst.msk [vmem:[#allocation3 + $0xe2] sm:$0xff] %vm720, %v1074
      %1107 = vst.msk [vmem:[#allocation3 + $0xf2] sm:$0xff] %vm720, %v1075
      %1108 = vst.msk [vmem:[#allocation3 + $0xfa] sm:$0xff] %vm720, %v1076
      %1109 = vst.msk [vmem:[#allocation3 + $0x10a] sm:$0xff] %vm720, %v1077
      %1110 = vst.msk [vmem:[#allocation3 + $0x112] sm:$0xff] %vm720, %v1078
      %1111 = vst.msk [vmem:[#allocation3 + $0x122] sm:$0xff] %vm720, %v1079
      %1112 = vst.msk [vmem:[#allocation3 + $0x12a] sm:$0xff] %vm720, %v1080
      %1113 = vst.msk [vmem:[#allocation3 + $0x13a] sm:$0xff] %vm720, %v1081
      %1114 = vst.msk [vmem:[#allocation3 + $0x142] sm:$0xff] %vm720, %v1082
      %1115 = vst.msk [vmem:[#allocation3 + $0x152] sm:$0xff] %vm720, %v1083
      %1116 = vst.msk [vmem:[#allocation3 + $0x15a] sm:$0xff] %vm720, %v1084
      %1117 = vst.msk [vmem:[#allocation3 + $0x16a] sm:$0xff] %vm720, %v1085
      %1118 = vst.msk [vmem:[#allocation3 + $0x172] sm:$0xff] %vm720, %v1086
      %v1119 = vld [vmem:[#allocation3] sm:$0xff]
      %v1120 = vld [vmem:[#allocation3 + $0x8] sm:$0xff]
      %v1121 = vld [vmem:[#allocation3 + $0x18] sm:$0xff]
      %v1122 = vld [vmem:[#allocation3 + $0x20] sm:$0xff]
      %v1123 = vld [vmem:[#allocation3 + $0x30] sm:$0xff]
      %v1124 = vld [vmem:[#allocation3 + $0x38] sm:$0xff]
      %v1125 = vld [vmem:[#allocation3 + $0x48] sm:$0xff]
      %v1126 = vld [vmem:[#allocation3 + $0x50] sm:$0xff]
      %v1127 = vld [vmem:[#allocation3 + $0x60] sm:$0xff]
      %v1128 = vld [vmem:[#allocation3 + $0x68] sm:$0xff]
      %v1129 = vld [vmem:[#allocation3 + $0x78] sm:$0xff]
      %v1130 = vld [vmem:[#allocation3 + $0x80] sm:$0xff]
      %v1131 = vld [vmem:[#allocation3 + $0x90] sm:$0xff]
      %v1132 = vld [vmem:[#allocation3 + $0x98] sm:$0xff]
      %v1133 = vld [vmem:[#allocation3 + $0xa8] sm:$0xff]
      %v1134 = vld [vmem:[#allocation3 + $0xb0] sm:$0xff]
      %v1135 = vld [vmem:[#allocation3 + $0xc0] sm:$0xff]
      %v1136 = vld [vmem:[#allocation3 + $0xc8] sm:$0xff]
      %v1137 = vld [vmem:[#allocation3 + $0xd8] sm:$0xff]
      %v1138 = vld [vmem:[#allocation3 + $0xe0] sm:$0xff]
      %v1139 = vld [vmem:[#allocation3 + $0xf0] sm:$0xff]
      %v1140 = vld [vmem:[#allocation3 + $0xf8] sm:$0xff]
      %v1141 = vld [vmem:[#allocation3 + $0x108] sm:$0xff]
      %v1142 = vld [vmem:[#allocation3 + $0x110] sm:$0xff]
      %v1143 = vld [vmem:[#allocation3 + $0x120] sm:$0xff]
      %v1144 = vld [vmem:[#allocation3 + $0x128] sm:$0xff]
      %v1145 = vld [vmem:[#allocation3 + $0x138] sm:$0xff]
      %v1146 = vld [vmem:[#allocation3 + $0x140] sm:$0xff]
      %v1147 = vld [vmem:[#allocation3 + $0x150] sm:$0xff]
      %v1148 = vld [vmem:[#allocation3 + $0x158] sm:$0xff]
      %v1149 = vld [vmem:[#allocation3 + $0x168] sm:$0xff]
      %v1150 = vld [vmem:[#allocation3 + $0x170] sm:$0xff]
      %v1151 = vld [vmem:[#allocation3 + $0x1] sm:$0xff]
      %v1152 = vld [vmem:[#allocation3 + $0x9] sm:$0xff]
      %v1153 = vld [vmem:[#allocation3 + $0x19] sm:$0xff]
      %v1154 = vld [vmem:[#allocation3 + $0x21] sm:$0xff]
      %v1155 = vld [vmem:[#allocation3 + $0x31] sm:$0xff]
      %v1156 = vld [vmem:[#allocation3 + $0x39] sm:$0xff]
      %v1157 = vld [vmem:[#allocation3 + $0x49] sm:$0xff]
      %v1158 = vld [vmem:[#allocation3 + $0x51] sm:$0xff]
      %v1159 = vld [vmem:[#allocation3 + $0x61] sm:$0xff]
      %v1160 = vld [vmem:[#allocation3 + $0x69] sm:$0xff]
      %v1161 = vld [vmem:[#allocation3 + $0x79] sm:$0xff]
      %v1162 = vld [vmem:[#allocation3 + $0x81] sm:$0xff]
      %v1163 = vld [vmem:[#allocation3 + $0x91] sm:$0xff]
      %v1164 = vld [vmem:[#allocation3 + $0x99] sm:$0xff]
      %v1165 = vld [vmem:[#allocation3 + $0xa9] sm:$0xff]
      %v1166 = vld [vmem:[#allocation3 + $0xb1] sm:$0xff]
      %v1167 = vld [vmem:[#allocation3 + $0xc1] sm:$0xff]
      %v1168 = vld [vmem:[#allocation3 + $0xc9] sm:$0xff]
      %v1169 = vld [vmem:[#allocation3 + $0xd9] sm:$0xff]
      %v1170 = vld [vmem:[#allocation3 + $0xe1] sm:$0xff]
      %v1171 = vld [vmem:[#allocation3 + $0xf1] sm:$0xff]
      %v1172 = vld [vmem:[#allocation3 + $0xf9] sm:$0xff]
      %v1173 = vld [vmem:[#allocation3 + $0x109] sm:$0xff]
      %v1174 = vld [vmem:[#allocation3 + $0x111] sm:$0xff]
      %v1175 = vld [vmem:[#allocation3 + $0x121] sm:$0xff]
      %v1176 = vld [vmem:[#allocation3 + $0x129] sm:$0xff]
      %v1177 = vld [vmem:[#allocation3 + $0x139] sm:$0xff]
      %v1178 = vld [vmem:[#allocation3 + $0x141] sm:$0xff]
      %v1179 = vld [vmem:[#allocation3 + $0x151] sm:$0xff]
      %v1180 = vld [vmem:[#allocation3 + $0x159] sm:$0xff]
      %v1181 = vld [vmem:[#allocation3 + $0x169] sm:$0xff]
      %v1182 = vld [vmem:[#allocation3 + $0x171] sm:$0xff]
      %v1183 = vld [vmem:[#allocation3 + $0x2] sm:$0xff]
      %v1184 = vld [vmem:[#allocation3 + $0xa] sm:$0xff]
      %v1185 = vld [vmem:[#allocation3 + $0x1a] sm:$0xff]
      %v1186 = vld [vmem:[#allocation3 + $0x22] sm:$0xff]
      %v1187 = vld [vmem:[#allocation3 + $0x32] sm:$0xff]
      %v1188 = vld [vmem:[#allocation3 + $0x3a] sm:$0xff]
      %v1189 = vld [vmem:[#allocation3 + $0x4a] sm:$0xff]
      %v1190 = vld [vmem:[#allocation3 + $0x52] sm:$0xff]
      %v1191 = vld [vmem:[#allocation3 + $0x62] sm:$0xff]
      %v1192 = vld [vmem:[#allocation3 + $0x6a] sm:$0xff]
      %v1193 = vld [vmem:[#allocation3 + $0x7a] sm:$0xff]
      %v1194 = vld [vmem:[#allocation3 + $0x82] sm:$0xff]
      %v1195 = vld [vmem:[#allocation3 + $0x92] sm:$0xff]
      %v1196 = vld [vmem:[#allocation3 + $0x9a] sm:$0xff]
      %v1197 = vld [vmem:[#allocation3 + $0xaa] sm:$0xff]
      %v1198 = vld [vmem:[#allocation3 + $0xb2] sm:$0xff]
      %v1199 = vld [vmem:[#allocation3 + $0xc2] sm:$0xff]
      %v1200 = vld [vmem:[#allocation3 + $0xca] sm:$0xff]
      %v1201 = vld [vmem:[#allocation3 + $0xda] sm:$0xff]
      %v1202 = vld [vmem:[#allocation3 + $0xe2] sm:$0xff]
      %v1203 = vld [vmem:[#allocation3 + $0xf2] sm:$0xff]
      %v1204 = vld [vmem:[#allocation3 + $0xfa] sm:$0xff]
      %v1205 = vld [vmem:[#allocation3 + $0x10a] sm:$0xff]
      %v1206 = vld [vmem:[#allocation3 + $0x112] sm:$0xff]
      %v1207 = vld [vmem:[#allocation3 + $0x122] sm:$0xff]
      %v1208 = vld [vmem:[#allocation3 + $0x12a] sm:$0xff]
      %v1209 = vld [vmem:[#allocation3 + $0x13a] sm:$0xff]
      %v1210 = vld [vmem:[#allocation3 + $0x142] sm:$0xff]
      %v1211 = vld [vmem:[#allocation3 + $0x152] sm:$0xff]
      %v1212 = vld [vmem:[#allocation3 + $0x15a] sm:$0xff]
      %v1213 = vld [vmem:[#allocation3 + $0x16a] sm:$0xff]
      %v1214 = vld [vmem:[#allocation3 + $0x172] sm:$0xff]
      %v1215 = vld [vmem:[#allocation3 + $0x3] sm:$0xff]
      %v1216 = vld [vmem:[#allocation3 + $0xb] sm:$0xff]
      %v1217 = vld [vmem:[#allocation3 + $0x1b] sm:$0xff]
      %v1218 = vld [vmem:[#allocation3 + $0x23] sm:$0xff]
      %v1219 = vld [vmem:[#allocation3 + $0x33] sm:$0xff]
      %v1220 = vld [vmem:[#allocation3 + $0x3b] sm:$0xff]
      %v1221 = vld [vmem:[#allocation3 + $0x4b] sm:$0xff]
      %v1222 = vld [vmem:[#allocation3 + $0x53] sm:$0xff]
      %v1223 = vld [vmem:[#allocation3 + $0x63] sm:$0xff]
      %v1224 = vld [vmem:[#allocation3 + $0x6b] sm:$0xff]
      %v1225 = vld [vmem:[#allocation3 + $0x7b] sm:$0xff]
      %v1226 = vld [vmem:[#allocation3 + $0x83] sm:$0xff]
      %v1227 = vld [vmem:[#allocation3 + $0x93] sm:$0xff]
      %v1228 = vld [vmem:[#allocation3 + $0x9b] sm:$0xff]
      %v1229 = vld [vmem:[#allocation3 + $0xab] sm:$0xff]
      %v1230 = vld [vmem:[#allocation3 + $0xb3] sm:$0xff]
      %v1231 = vld [vmem:[#allocation3 + $0xc3] sm:$0xff]
      %v1232 = vld [vmem:[#allocation3 + $0xcb] sm:$0xff]
      %v1233 = vld [vmem:[#allocation3 + $0xdb] sm:$0xff]
      %v1234 = vld [vmem:[#allocation3 + $0xe3] sm:$0xff]
      %v1235 = vld [vmem:[#allocation3 + $0xf3] sm:$0xff]
      %v1236 = vld [vmem:[#allocation3 + $0xfb] sm:$0xff]
      %v1237 = vld [vmem:[#allocation3 + $0x10b] sm:$0xff]
      %v1238 = vld [vmem:[#allocation3 + $0x113] sm:$0xff]
      %v1239 = vld [vmem:[#allocation3 + $0x123] sm:$0xff]
      %v1240 = vld [vmem:[#allocation3 + $0x12b] sm:$0xff]
      %v1241 = vld [vmem:[#allocation3 + $0x13b] sm:$0xff]
      %v1242 = vld [vmem:[#allocation3 + $0x143] sm:$0xff]
      %v1243 = vld [vmem:[#allocation3 + $0x153] sm:$0xff]
      %v1244 = vld [vmem:[#allocation3 + $0x15b] sm:$0xff]
      %v1245 = vld [vmem:[#allocation3 + $0x16b] sm:$0xff]
      %v1246 = vld [vmem:[#allocation3 + $0x173] sm:$0xff]
      %v1247 = vld [vmem:[#allocation3 + $0x4] sm:$0xff]
      %v1248 = vld [vmem:[#allocation3 + $0xc] sm:$0xff]
      %v1249 = vld [vmem:[#allocation3 + $0x1c] sm:$0xff]
      %v1250 = vld [vmem:[#allocation3 + $0x24] sm:$0xff]
      %v1251 = vld [vmem:[#allocation3 + $0x34] sm:$0xff]
      %v1252 = vld [vmem:[#allocation3 + $0x3c] sm:$0xff]
      %v1253 = vld [vmem:[#allocation3 + $0x4c] sm:$0xff]
      %v1254 = vld [vmem:[#allocation3 + $0x54] sm:$0xff]
      %v1255 = vld [vmem:[#allocation3 + $0x64] sm:$0xff]
      %v1256 = vld [vmem:[#allocation3 + $0x6c] sm:$0xff]
      %v1257 = vld [vmem:[#allocation3 + $0x7c] sm:$0xff]
      %v1258 = vld [vmem:[#allocation3 + $0x84] sm:$0xff]
      %v1259 = vld [vmem:[#allocation3 + $0x94] sm:$0xff]
      %v1260 = vld [vmem:[#allocation3 + $0x9c] sm:$0xff]
      %v1261 = vld [vmem:[#allocation3 + $0xac] sm:$0xff]
      %v1262 = vld [vmem:[#allocation3 + $0xb4] sm:$0xff]
      %v1263 = vld [vmem:[#allocation3 + $0xc4] sm:$0xff]
      %v1264 = vld [vmem:[#allocation3 + $0xcc] sm:$0xff]
      %v1265 = vld [vmem:[#allocation3 + $0xdc] sm:$0xff]
      %v1266 = vld [vmem:[#allocation3 + $0xe4] sm:$0xff]
      %v1267 = vld [vmem:[#allocation3 + $0xf4] sm:$0xff]
      %v1268 = vld [vmem:[#allocation3 + $0xfc] sm:$0xff]
      %v1269 = vld [vmem:[#allocation3 + $0x10c] sm:$0xff]
      %v1270 = vld [vmem:[#allocation3 + $0x114] sm:$0xff]
      %v1271 = vld [vmem:[#allocation3 + $0x124] sm:$0xff]
      %v1272 = vld [vmem:[#allocation3 + $0x12c] sm:$0xff]
      %v1273 = vld [vmem:[#allocation3 + $0x13c] sm:$0xff]
      %v1274 = vld [vmem:[#allocation3 + $0x144] sm:$0xff]
      %v1275 = vld [vmem:[#allocation3 + $0x154] sm:$0xff]
      %v1276 = vld [vmem:[#allocation3 + $0x15c] sm:$0xff]
      %v1277 = vld [vmem:[#allocation3 + $0x16c] sm:$0xff]
      %v1278 = vld [vmem:[#allocation3 + $0x174] sm:$0xff]
      %v1279 = vmax.f32 %v1119, %v1151
      %v1280 = vmax.f32 %v1120, %v1152
      %v1281 = vmax.f32 %v1121, %v1153
      %v1282 = vmax.f32 %v1122, %v1154
      %v1283 = vmax.f32 %v1123, %v1155
      %v1284 = vmax.f32 %v1124, %v1156
      %v1285 = vmax.f32 %v1125, %v1157
      %v1286 = vmax.f32 %v1126, %v1158
      %v1287 = vmax.f32 %v1127, %v1159
      %v1288 = vmax.f32 %v1128, %v1160
      %v1289 = vmax.f32 %v1129, %v1161
      %v1290 = vmax.f32 %v1130, %v1162
      %v1291 = vmax.f32 %v1131, %v1163
      %v1292 = vmax.f32 %v1132, %v1164
      %v1293 = vmax.f32 %v1133, %v1165
      %v1294 = vmax.f32 %v1134, %v1166
      %v1295 = vmax.f32 %v1135, %v1167
      %v1296 = vmax.f32 %v1136, %v1168
      %v1297 = vmax.f32 %v1137, %v1169
      %v1298 = vmax.f32 %v1138, %v1170
      %v1299 = vmax.f32 %v1139, %v1171
      %v1300 = vmax.f32 %v1140, %v1172
      %v1301 = vmax.f32 %v1141, %v1173
      %v1302 = vmax.f32 %v1142, %v1174
      %v1303 = vmax.f32 %v1143, %v1175
      %v1304 = vmax.f32 %v1144, %v1176
      %v1305 = vmax.f32 %v1145, %v1177
      %v1306 = vmax.f32 %v1146, %v1178
      %v1307 = vmax.f32 %v1147, %v1179
      %v1308 = vmax.f32 %v1148, %v1180
      %v1309 = vmax.f32 %v1149, %v1181
      %v1310 = vmax.f32 %v1150, %v1182
      %v1311 = vmax.f32 %v1183, %v1215
      %v1312 = vmax.f32 %v1184, %v1216
      %v1313 = vmax.f32 %v1185, %v1217
      %v1314 = vmax.f32 %v1186, %v1218
      %v1315 = vmax.f32 %v1187, %v1219
      %v1316 = vmax.f32 %v1188, %v1220
      %v1317 = vmax.f32 %v1189, %v1221
      %v1318 = vmax.f32 %v1190, %v1222
      %v1319 = vmax.f32 %v1191, %v1223
      %v1320 = vmax.f32 %v1192, %v1224
      %v1321 = vmax.f32 %v1193, %v1225
      %v1322 = vmax.f32 %v1194, %v1226
      %v1323 = vmax.f32 %v1195, %v1227
      %v1324 = vmax.f32 %v1196, %v1228
      %v1325 = vmax.f32 %v1197, %v1229
      %v1326 = vmax.f32 %v1198, %v1230
      %v1327 = vmax.f32 %v1199, %v1231
      %v1328 = vmax.f32 %v1200, %v1232
      %v1329 = vmax.f32 %v1201, %v1233
      %v1330 = vmax.f32 %v1202, %v1234
      %v1331 = vmax.f32 %v1203, %v1235
      %v1332 = vmax.f32 %v1204, %v1236
      %v1333 = vmax.f32 %v1205, %v1237
      %v1334 = vmax.f32 %v1206, %v1238
      %v1335 = vmax.f32 %v1207, %v1239
      %v1336 = vmax.f32 %v1208, %v1240
      %v1337 = vmax.f32 %v1209, %v1241
      %v1338 = vmax.f32 %v1210, %v1242
      %v1339 = vmax.f32 %v1211, %v1243
      %v1340 = vmax.f32 %v1212, %v1244
      %v1341 = vmax.f32 %v1213, %v1245
      %v1342 = vmax.f32 %v1214, %v1246
      %v1343 = vmax.f32 %v1279, %v1311
      %v1344 = vmax.f32 %v1280, %v1312
      %v1345 = vmax.f32 %v1281, %v1313
      %v1346 = vmax.f32 %v1282, %v1314
      %v1347 = vmax.f32 %v1283, %v1315
      %v1348 = vmax.f32 %v1284, %v1316
      %v1349 = vmax.f32 %v1285, %v1317
      %v1350 = vmax.f32 %v1286, %v1318
      %v1351 = vmax.f32 %v1287, %v1319
      %v1352 = vmax.f32 %v1288, %v1320
      %v1353 = vmax.f32 %v1289, %v1321
      %v1354 = vmax.f32 %v1290, %v1322
      %v1355 = vmax.f32 %v1291, %v1323
      %v1356 = vmax.f32 %v1292, %v1324
      %v1357 = vmax.f32 %v1293, %v1325
      %v1358 = vmax.f32 %v1294, %v1326
      %v1359 = vmax.f32 %v1295, %v1327
      %v1360 = vmax.f32 %v1296, %v1328
      %v1361 = vmax.f32 %v1297, %v1329
      %v1362 = vmax.f32 %v1298, %v1330
      %v1363 = vmax.f32 %v1299, %v1331
      %v1364 = vmax.f32 %v1300, %v1332
      %v1365 = vmax.f32 %v1301, %v1333
      %v1366 = vmax.f32 %v1302, %v1334
      %v1367 = vmax.f32 %v1303, %v1335
      %v1368 = vmax.f32 %v1304, %v1336
      %v1369 = vmax.f32 %v1305, %v1337
      %v1370 = vmax.f32 %v1306, %v1338
      %v1371 = vmax.f32 %v1307, %v1339
      %v1372 = vmax.f32 %v1308, %v1340
      %v1373 = vmax.f32 %v1309, %v1341
      %v1374 = vmax.f32 %v1310, %v1342
      %v1375 = vmax.f32 %v1343, %v1247
      %v1376 = vmax.f32 %v1344, %v1248
      %v1377 = vmax.f32 %v1345, %v1249
      %v1378 = vmax.f32 %v1346, %v1250
      %v1379 = vmax.f32 %v1347, %v1251
      %v1380 = vmax.f32 %v1348, %v1252
      %v1381 = vmax.f32 %v1349, %v1253
      %v1382 = vmax.f32 %v1350, %v1254
      %v1383 = vmax.f32 %v1351, %v1255
      %v1384 = vmax.f32 %v1352, %v1256
      %v1385 = vmax.f32 %v1353, %v1257
      %v1386 = vmax.f32 %v1354, %v1258
      %v1387 = vmax.f32 %v1355, %v1259
      %v1388 = vmax.f32 %v1356, %v1260
      %v1389 = vmax.f32 %v1357, %v1261
      %v1390 = vmax.f32 %v1358, %v1262
      %v1391 = vmax.f32 %v1359, %v1263
      %v1392 = vmax.f32 %v1360, %v1264
      %v1393 = vmax.f32 %v1361, %v1265
      %v1394 = vmax.f32 %v1362, %v1266
      %v1395 = vmax.f32 %v1363, %v1267
      %v1396 = vmax.f32 %v1364, %v1268
      %v1397 = vmax.f32 %v1365, %v1269
      %v1398 = vmax.f32 %v1366, %v1270
      %v1399 = vmax.f32 %v1367, %v1271
      %v1400 = vmax.f32 %v1368, %v1272
      %v1401 = vmax.f32 %v1369, %v1273
      %v1402 = vmax.f32 %v1370, %v1274
      %v1403 = vmax.f32 %v1371, %v1275
      %v1404 = vmax.f32 %v1372, %v1276
      %v1405 = vmax.f32 %v1373, %v1277
      %v1406 = vmax.f32 %v1374, %v1278
      %1407 = vst.msk [vmem:[%s763] sm:$0xff] %vm720, %v1375
      %1408 = vst.msk [vmem:[%s763 + $0x8] sm:$0xff] %vm720, %v1376
      %1409 = vst.msk [vmem:[%s763 + $0x10] sm:$0xff] %vm720, %v1377
      %1410 = vst.msk [vmem:[%s763 + $0x18] sm:$0xff] %vm720, %v1378
      %1411 = vst.msk [vmem:[%s763 + $0x20] sm:$0xff] %vm720, %v1379
      %1412 = vst.msk [vmem:[%s763 + $0x28] sm:$0xff] %vm720, %v1380
      %1413 = vst.msk [vmem:[%s763 + $0x30] sm:$0xff] %vm720, %v1381
      %1414 = vst.msk [vmem:[%s763 + $0x38] sm:$0xff] %vm720, %v1382
      %1415 = vst.msk [vmem:[%s763 + $0x40] sm:$0xff] %vm720, %v1383
      %1416 = vst.msk [vmem:[%s763 + $0x48] sm:$0xff] %vm720, %v1384
      %1417 = vst.msk [vmem:[%s763 + $0x50] sm:$0xff] %vm720, %v1385
      %1418 = vst.msk [vmem:[%s763 + $0x58] sm:$0xff] %vm720, %v1386
      %1419 = vst.msk [vmem:[%s763 + $0x60] sm:$0xff] %vm720, %v1387
      %1420 = vst.msk [vmem:[%s763 + $0x68] sm:$0xff] %vm720, %v1388
      %1421 = vst.msk [vmem:[%s763 + $0x70] sm:$0xff] %vm720, %v1389
      %1422 = vst.msk [vmem:[%s763 + $0x78] sm:$0xff] %vm720, %v1390
      %1423 = vst.msk [vmem:[%s763 + $0x80] sm:$0xff] %vm720, %v1391
      %1424 = vst.msk [vmem:[%s763 + $0x88] sm:$0xff] %vm720, %v1392
      %1425 = vst.msk [vmem:[%s763 + $0x90] sm:$0xff] %vm720, %v1393
      %1426 = vst.msk [vmem:[%s763 + $0x98] sm:$0xff] %vm720, %v1394
      %1427 = vst.msk [vmem:[%s763 + $0xa0] sm:$0xff] %vm720, %v1395
      %1428 = vst.msk [vmem:[%s763 + $0xa8] sm:$0xff] %vm720, %v1396
      %1429 = vst.msk [vmem:[%s763 + $0xb0] sm:$0xff] %vm720, %v1397
      %1430 = vst.msk [vmem:[%s763 + $0xb8] sm:$0xff] %vm720, %v1398
      %1431 = vst.msk [vmem:[%s763 + $0xc0] sm:$0xff] %vm720, %v1399
      %1432 = vst.msk [vmem:[%s763 + $0xc8] sm:$0xff] %vm720, %v1400
      %1433 = vst.msk [vmem:[%s763 + $0xd0] sm:$0xff] %vm720, %v1401
      %1434 = vst.msk [vmem:[%s763 + $0xd8] sm:$0xff] %vm720, %v1402
      %1435 = vst.msk [vmem:[%s763 + $0xe0] sm:$0xff] %vm720, %v1403
      %1436 = vst.msk [vmem:[%s763 + $0xe8] sm:$0xff] %vm720, %v1404
      %1437 = vst.msk [vmem:[%s763 + $0xf0] sm:$0xff] %vm720, %v1405
      %1438 = vst.msk [vmem:[%s763 + $0xf8] sm:$0xff] %vm720, %v1406
      %v1439 = vld [vmem:[#allocation2] sm:$0xff]
      %v1440 = vld [vmem:[#allocation2 + $0x8] sm:$0xff]
      %v1441 = vld [vmem:[#allocation2 + $0x10] sm:$0xff]
      %v1442 = vld [vmem:[#allocation2 + $0x18] sm:$0xff]
      %v1443 = vld [vmem:[#allocation2 + $0x20] sm:$0xff]
      %v1444 = vld [vmem:[#allocation2 + $0x28] sm:$0xff]
      %v1445 = vld [vmem:[#allocation2 + $0x30] sm:$0xff]
      %v1446 = vld [vmem:[#allocation2 + $0x38] sm:$0xff]
      %v1447 = vld [vmem:[#allocation2 + $0x40] sm:$0xff]
      %v1448 = vld [vmem:[#allocation2 + $0x48] sm:$0xff]
      %v1449 = vld [vmem:[#allocation2 + $0x50] sm:$0xff]
      %v1450 = vld [vmem:[#allocation2 + $0x58] sm:$0xff]
      %v1451 = vld [vmem:[#allocation2 + $0x60] sm:$0xff]
      %v1452 = vld [vmem:[#allocation2 + $0x68] sm:$0xff]
      %v1453 = vld [vmem:[#allocation2 + $0x70] sm:$0xff]
      %v1454 = vld [vmem:[#allocation2 + $0x78] sm:$0xff]
      %v1455 = vld [vmem:[#allocation2 + $0x80] sm:$0xff]
      %v1456 = vld [vmem:[#allocation2 + $0x88] sm:$0xff]
      %v1457 = vld [vmem:[#allocation2 + $0x90] sm:$0xff]
      %v1458 = vld [vmem:[#allocation2 + $0x98] sm:$0xff]
      %v1459 = vld [vmem:[#allocation2 + $0xa0] sm:$0xff]
      %v1460 = vld [vmem:[#allocation2 + $0xa8] sm:$0xff]
      %v1461 = vld [vmem:[#allocation2 + $0xb0] sm:$0xff]
      %v1462 = vld [vmem:[#allocation2 + $0xb8] sm:$0xff]
      %v1463 = vld [vmem:[#allocation2 + $0xc0] sm:$0xff]
      %v1464 = vld [vmem:[#allocation2 + $0xc8] sm:$0xff]
      %v1465 = vld [vmem:[#allocation2 + $0xd0] sm:$0xff]
      %v1466 = vld [vmem:[#allocation2 + $0xd8] sm:$0xff]
      %v1467 = vld [vmem:[#allocation2 + $0xe0] sm:$0xff]
      %v1468 = vld [vmem:[#allocation2 + $0xe8] sm:$0xff]
      %v1469 = vld [vmem:[#allocation2 + $0xf0] sm:$0xff]
      %v1470 = vld [vmem:[#allocation2 + $0xf8] sm:$0xff]
      %v1471 = vld [vmem:[%s828] sm:$0xff]
      %v1472 = vld [vmem:[%s828 + $0x8] sm:$0xff]
      %v1473 = vld [vmem:[%s828 + $0x10] sm:$0xff]
      %v1474 = vld [vmem:[%s828 + $0x18] sm:$0xff]
      %v1475 = vld [vmem:[%s828 + $0x20] sm:$0xff]
      %v1476 = vld [vmem:[%s828 + $0x28] sm:$0xff]
      %v1477 = vld [vmem:[%s828 + $0x30] sm:$0xff]
      %v1478 = vld [vmem:[%s828 + $0x38] sm:$0xff]
      %v1479 = vld [vmem:[%s828 + $0x40] sm:$0xff]
      %v1480 = vld [vmem:[%s828 + $0x48] sm:$0xff]
      %v1481 = vld [vmem:[%s828 + $0x50] sm:$0xff]
      %v1482 = vld [vmem:[%s828 + $0x58] sm:$0xff]
      %v1483 = vld [vmem:[%s828 + $0x60] sm:$0xff]
      %v1484 = vld [vmem:[%s828 + $0x68] sm:$0xff]
      %v1485 = vld [vmem:[%s828 + $0x70] sm:$0xff]
      %v1486 = vld [vmem:[%s828 + $0x78] sm:$0xff]
      %v1487 = vld [vmem:[%s828 + $0x80] sm:$0xff]
      %v1488 = vld [vmem:[%s828 + $0x88] sm:$0xff]
      %v1489 = vld [vmem:[%s828 + $0x90] sm:$0xff]
      %v1490 = vld [vmem:[%s828 + $0x98] sm:$0xff]
      %v1491 = vld [vmem:[%s828 + $0xa0] sm:$0xff]
      %v1492 = vld [vmem:[%s828 + $0xa8] sm:$0xff]
      %v1493 = vld [vmem:[%s828 + $0xb0] sm:$0xff]
      %v1494 = vld [vmem:[%s828 + $0xb8] sm:$0xff]
      %v1495 = vld [vmem:[%s828 + $0xc0] sm:$0xff]
      %v1496 = vld [vmem:[%s828 + $0xc8] sm:$0xff]
      %v1497 = vld [vmem:[%s828 + $0xd0] sm:$0xff]
      %v1498 = vld [vmem:[%s828 + $0xd8] sm:$0xff]
      %v1499 = vld [vmem:[%s828 + $0xe0] sm:$0xff]
      %v1500 = vld [vmem:[%s828 + $0xe8] sm:$0xff]
      %v1501 = vld [vmem:[%s828 + $0xf0] sm:$0xff]
      %v1502 = vld [vmem:[%s828 + $0xf8] sm:$0xff]
      %v1503 = vld [vmem:[%s763] sm:$0xff]
      %v1504 = vld [vmem:[%s763 + $0x8] sm:$0xff]
      %v1505 = vld [vmem:[%s763 + $0x10] sm:$0xff]
      %v1506 = vld [vmem:[%s763 + $0x18] sm:$0xff]
      %v1507 = vld [vmem:[%s763 + $0x20] sm:$0xff]
      %v1508 = vld [vmem:[%s763 + $0x28] sm:$0xff]
      %v1509 = vld [vmem:[%s763 + $0x30] sm:$0xff]
      %v1510 = vld [vmem:[%s763 + $0x38] sm:$0xff]
      %v1511 = vld [vmem:[%s763 + $0x40] sm:$0xff]
      %v1512 = vld [vmem:[%s763 + $0x48] sm:$0xff]
      %v1513 = vld [vmem:[%s763 + $0x50] sm:$0xff]
      %v1514 = vld [vmem:[%s763 + $0x58] sm:$0xff]
      %v1515 = vld [vmem:[%s763 + $0x60] sm:$0xff]
      %v1516 = vld [vmem:[%s763 + $0x68] sm:$0xff]
      %v1517 = vld [vmem:[%s763 + $0x70] sm:$0xff]
      %v1518 = vld [vmem:[%s763 + $0x78] sm:$0xff]
      %v1519 = vld [vmem:[%s763 + $0x80] sm:$0xff]
      %v1520 = vld [vmem:[%s763 + $0x88] sm:$0xff]
      %v1521 = vld [vmem:[%s763 + $0x90] sm:$0xff]
      %v1522 = vld [vmem:[%s763 + $0x98] sm:$0xff]
      %v1523 = vld [vmem:[%s763 + $0xa0] sm:$0xff]
      %v1524 = vld [vmem:[%s763 + $0xa8] sm:$0xff]
      %v1525 = vld [vmem:[%s763 + $0xb0] sm:$0xff]
      %v1526 = vld [vmem:[%s763 + $0xb8] sm:$0xff]
      %v1527 = vld [vmem:[%s763 + $0xc0] sm:$0xff]
      %v1528 = vld [vmem:[%s763 + $0xc8] sm:$0xff]
      %v1529 = vld [vmem:[%s763 + $0xd0] sm:$0xff]
      %v1530 = vld [vmem:[%s763 + $0xd8] sm:$0xff]
      %v1531 = vld [vmem:[%s763 + $0xe0] sm:$0xff]
      %v1532 = vld [vmem:[%s763 + $0xe8] sm:$0xff]
      %v1533 = vld [vmem:[%s763 + $0xf0] sm:$0xff]
      %v1534 = vld [vmem:[%s763 + $0xf8] sm:$0xff]
      %v1535 = vld [vmem:[%s893] sm:$0xff]
      %v1536 = vld [vmem:[%s893 + $0x8] sm:$0xff]
      %v1537 = vld [vmem:[%s893 + $0x10] sm:$0xff]
      %v1538 = vld [vmem:[%s893 + $0x18] sm:$0xff]
      %v1539 = vld [vmem:[%s893 + $0x20] sm:$0xff]
      %v1540 = vld [vmem:[%s893 + $0x28] sm:$0xff]
      %v1541 = vld [vmem:[%s893 + $0x30] sm:$0xff]
      %v1542 = vld [vmem:[%s893 + $0x38] sm:$0xff]
      %v1543 = vld [vmem:[%s893 + $0x40] sm:$0xff]
      %v1544 = vld [vmem:[%s893 + $0x48] sm:$0xff]
      %v1545 = vld [vmem:[%s893 + $0x50] sm:$0xff]
      %v1546 = vld [vmem:[%s893 + $0x58] sm:$0xff]
      %v1547 = vld [vmem:[%s893 + $0x60] sm:$0xff]
      %v1548 = vld [vmem:[%s893 + $0x68] sm:$0xff]
      %v1549 = vld [vmem:[%s893 + $0x70] sm:$0xff]
      %v1550 = vld [vmem:[%s893 + $0x78] sm:$0xff]
      %v1551 = vld [vmem:[%s893 + $0x80] sm:$0xff]
      %v1552 = vld [vmem:[%s893 + $0x88] sm:$0xff]
      %v1553 = vld [vmem:[%s893 + $0x90] sm:$0xff]
      %v1554 = vld [vmem:[%s893 + $0x98] sm:$0xff]
      %v1555 = vld [vmem:[%s893 + $0xa0] sm:$0xff]
      %v1556 = vld [vmem:[%s893 + $0xa8] sm:$0xff]
      %v1557 = vld [vmem:[%s893 + $0xb0] sm:$0xff]
      %v1558 = vld [vmem:[%s893 + $0xb8] sm:$0xff]
      %v1559 = vld [vmem:[%s893 + $0xc0] sm:$0xff]
      %v1560 = vld [vmem:[%s893 + $0xc8] sm:$0xff]
      %v1561 = vld [vmem:[%s893 + $0xd0] sm:$0xff]
      %v1562 = vld [vmem:[%s893 + $0xd8] sm:$0xff]
      %v1563 = vld [vmem:[%s893 + $0xe0] sm:$0xff]
      %v1564 = vld [vmem:[%s893 + $0xe8] sm:$0xff]
      %v1565 = vld [vmem:[%s893 + $0xf0] sm:$0xff]
      %v1566 = vld [vmem:[%s893 + $0xf8] sm:$0xff]
      %v1567 = vld [vmem:[%s926] sm:$0xff]
      %v1568 = vld [vmem:[%s926 + $0x8] sm:$0xff]
      %v1569 = vld [vmem:[%s926 + $0x10] sm:$0xff]
      %v1570 = vld [vmem:[%s926 + $0x18] sm:$0xff]
      %v1571 = vld [vmem:[%s926 + $0x20] sm:$0xff]
      %v1572 = vld [vmem:[%s926 + $0x28] sm:$0xff]
      %v1573 = vld [vmem:[%s926 + $0x30] sm:$0xff]
      %v1574 = vld [vmem:[%s926 + $0x38] sm:$0xff]
      %v1575 = vld [vmem:[%s926 + $0x40] sm:$0xff]
      %v1576 = vld [vmem:[%s926 + $0x48] sm:$0xff]
      %v1577 = vld [vmem:[%s926 + $0x50] sm:$0xff]
      %v1578 = vld [vmem:[%s926 + $0x58] sm:$0xff]
      %v1579 = vld [vmem:[%s926 + $0x60] sm:$0xff]
      %v1580 = vld [vmem:[%s926 + $0x68] sm:$0xff]
      %v1581 = vld [vmem:[%s926 + $0x70] sm:$0xff]
      %v1582 = vld [vmem:[%s926 + $0x78] sm:$0xff]
      %v1583 = vld [vmem:[%s926 + $0x80] sm:$0xff]
      %v1584 = vld [vmem:[%s926 + $0x88] sm:$0xff]
      %v1585 = vld [vmem:[%s926 + $0x90] sm:$0xff]
      %v1586 = vld [vmem:[%s926 + $0x98] sm:$0xff]
      %v1587 = vld [vmem:[%s926 + $0xa0] sm:$0xff]
      %v1588 = vld [vmem:[%s926 + $0xa8] sm:$0xff]
      %v1589 = vld [vmem:[%s926 + $0xb0] sm:$0xff]
      %v1590 = vld [vmem:[%s926 + $0xb8] sm:$0xff]
      %v1591 = vld [vmem:[%s926 + $0xc0] sm:$0xff]
      %v1592 = vld [vmem:[%s926 + $0xc8] sm:$0xff]
      %v1593 = vld [vmem:[%s926 + $0xd0] sm:$0xff]
      %v1594 = vld [vmem:[%s926 + $0xd8] sm:$0xff]
      %v1595 = vld [vmem:[%s926 + $0xe0] sm:$0xff]
      %v1596 = vld [vmem:[%s926 + $0xe8] sm:$0xff]
      %v1597 = vld [vmem:[%s926 + $0xf0] sm:$0xff]
      %v1598 = vld [vmem:[%s926 + $0xf8] sm:$0xff]
      %v1599 = vmax.f32 %v1439, %v1471
      %v1600 = vmax.f32 %v1440, %v1472
      %v1601 = vmax.f32 %v1441, %v1473
      %v1602 = vmax.f32 %v1442, %v1474
      %v1603 = vmax.f32 %v1443, %v1475
      %v1604 = vmax.f32 %v1444, %v1476
      %v1605 = vmax.f32 %v1445, %v1477
      %v1606 = vmax.f32 %v1446, %v1478
      %v1607 = vmax.f32 %v1447, %v1479
      %v1608 = vmax.f32 %v1448, %v1480
      %v1609 = vmax.f32 %v1449, %v1481
      %v1610 = vmax.f32 %v1450, %v1482
      %v1611 = vmax.f32 %v1451, %v1483
      %v1612 = vmax.f32 %v1452, %v1484
      %v1613 = vmax.f32 %v1453, %v1485
      %v1614 = vmax.f32 %v1454, %v1486
      %v1615 = vmax.f32 %v1455, %v1487
      %v1616 = vmax.f32 %v1456, %v1488
      %v1617 = vmax.f32 %v1457, %v1489
      %v1618 = vmax.f32 %v1458, %v1490
      %v1619 = vmax.f32 %v1459, %v1491
      %v1620 = vmax.f32 %v1460, %v1492
      %v1621 = vmax.f32 %v1461, %v1493
      %v1622 = vmax.f32 %v1462, %v1494
      %v1623 = vmax.f32 %v1463, %v1495
      %v1624 = vmax.f32 %v1464, %v1496
      %v1625 = vmax.f32 %v1465, %v1497
      %v1626 = vmax.f32 %v1466, %v1498
      %v1627 = vmax.f32 %v1467, %v1499
      %v1628 = vmax.f32 %v1468, %v1500
      %v1629 = vmax.f32 %v1469, %v1501
      %v1630 = vmax.f32 %v1470, %v1502
      %v1631 = vmax.f32 %v1503, %v1535
      %v1632 = vmax.f32 %v1504, %v1536
      %v1633 = vmax.f32 %v1505, %v1537
      %v1634 = vmax.f32 %v1506, %v1538
      %v1635 = vmax.f32 %v1507, %v1539
      %v1636 = vmax.f32 %v1508, %v1540
      %v1637 = vmax.f32 %v1509, %v1541
      %v1638 = vmax.f32 %v1510, %v1542
      %v1639 = vmax.f32 %v1511, %v1543
      %v1640 = vmax.f32 %v1512, %v1544
      %v1641 = vmax.f32 %v1513, %v1545
      %v1642 = vmax.f32 %v1514, %v1546
      %v1643 = vmax.f32 %v1515, %v1547
      %v1644 = vmax.f32 %v1516, %v1548
      %v1645 = vmax.f32 %v1517, %v1549
      %v1646 = vmax.f32 %v1518, %v1550
      %v1647 = vmax.f32 %v1519, %v1551
      %v1648 = vmax.f32 %v1520, %v1552
      %v1649 = vmax.f32 %v1521, %v1553
      %v1650 = vmax.f32 %v1522, %v1554
      %v1651 = vmax.f32 %v1523, %v1555
      %v1652 = vmax.f32 %v1524, %v1556
      %v1653 = vmax.f32 %v1525, %v1557
      %v1654 = vmax.f32 %v1526, %v1558
      %v1655 = vmax.f32 %v1527, %v1559
      %v1656 = vmax.f32 %v1528, %v1560
      %v1657 = vmax.f32 %v1529, %v1561
      %v1658 = vmax.f32 %v1530, %v1562
      %v1659 = vmax.f32 %v1531, %v1563
      %v1660 = vmax.f32 %v1532, %v1564
      %v1661 = vmax.f32 %v1533, %v1565
      %v1662 = vmax.f32 %v1534, %v1566
      %v1663 = vmax.f32 %v1599, %v1631
      %v1664 = vmax.f32 %v1600, %v1632
      %v1665 = vmax.f32 %v1601, %v1633
      %v1666 = vmax.f32 %v1602, %v1634
      %v1667 = vmax.f32 %v1603, %v1635
      %v1668 = vmax.f32 %v1604, %v1636
      %v1669 = vmax.f32 %v1605, %v1637
      %v1670 = vmax.f32 %v1606, %v1638
      %v1671 = vmax.f32 %v1607, %v1639
      %v1672 = vmax.f32 %v1608, %v1640
      %v1673 = vmax.f32 %v1609, %v1641
      %v1674 = vmax.f32 %v1610, %v1642
      %v1675 = vmax.f32 %v1611, %v1643
      %v1676 = vmax.f32 %v1612, %v1644
      %v1677 = vmax.f32 %v1613, %v1645
      %v1678 = vmax.f32 %v1614, %v1646
      %v1679 = vmax.f32 %v1615, %v1647
      %v1680 = vmax.f32 %v1616, %v1648
      %v1681 = vmax.f32 %v1617, %v1649
      %v1682 = vmax.f32 %v1618, %v1650
      %v1683 = vmax.f32 %v1619, %v1651
      %v1684 = vmax.f32 %v1620, %v1652
      %v1685 = vmax.f32 %v1621, %v1653
      %v1686 = vmax.f32 %v1622, %v1654
      %v1687 = vmax.f32 %v1623, %v1655
      %v1688 = vmax.f32 %v1624, %v1656
      %v1689 = vmax.f32 %v1625, %v1657
      %v1690 = vmax.f32 %v1626, %v1658
      %v1691 = vmax.f32 %v1627, %v1659
      %v1692 = vmax.f32 %v1628, %v1660
      %v1693 = vmax.f32 %v1629, %v1661
      %v1694 = vmax.f32 %v1630, %v1662
      %v1695 = vmax.f32 %v1663, %v1567
      %v1696 = vmax.f32 %v1664, %v1568
      %v1697 = vmax.f32 %v1665, %v1569
      %v1698 = vmax.f32 %v1666, %v1570
      %v1699 = vmax.f32 %v1667, %v1571
      %v1700 = vmax.f32 %v1668, %v1572
      %v1701 = vmax.f32 %v1669, %v1573
      %v1702 = vmax.f32 %v1670, %v1574
      %v1703 = vmax.f32 %v1671, %v1575
      %v1704 = vmax.f32 %v1672, %v1576
      %v1705 = vmax.f32 %v1673, %v1577
      %v1706 = vmax.f32 %v1674, %v1578
      %v1707 = vmax.f32 %v1675, %v1579
      %v1708 = vmax.f32 %v1676, %v1580
      %v1709 = vmax.f32 %v1677, %v1581
      %v1710 = vmax.f32 %v1678, %v1582
      %v1711 = vmax.f32 %v1679, %v1583
      %v1712 = vmax.f32 %v1680, %v1584
      %v1713 = vmax.f32 %v1681, %v1585
      %v1714 = vmax.f32 %v1682, %v1586
      %v1715 = vmax.f32 %v1683, %v1587
      %v1716 = vmax.f32 %v1684, %v1588
      %v1717 = vmax.f32 %v1685, %v1589
      %v1718 = vmax.f32 %v1686, %v1590
      %v1719 = vmax.f32 %v1687, %v1591
      %v1720 = vmax.f32 %v1688, %v1592
      %v1721 = vmax.f32 %v1689, %v1593
      %v1722 = vmax.f32 %v1690, %v1594
      %v1723 = vmax.f32 %v1691, %v1595
      %v1724 = vmax.f32 %v1692, %v1596
      %v1725 = vmax.f32 %v1693, %v1597
      %v1726 = vmax.f32 %v1694, %v1598
      %1727 = vst.msk [vmem:[#allocation3 + $0x2] sm:$0xff] %vm720, %v1695
      %1728 = vst.msk [vmem:[#allocation3 + $0xa] sm:$0xff] %vm720, %v1696
      %1729 = vst.msk [vmem:[#allocation3 + $0x1a] sm:$0xff] %vm720, %v1697
      %1730 = vst.msk [vmem:[#allocation3 + $0x22] sm:$0xff] %vm720, %v1698
      %1731 = vst.msk [vmem:[#allocation3 + $0x32] sm:$0xff] %vm720, %v1699
      %1732 = vst.msk [vmem:[#allocation3 + $0x3a] sm:$0xff] %vm720, %v1700
      %1733 = vst.msk [vmem:[#allocation3 + $0x4a] sm:$0xff] %vm720, %v1701
      %1734 = vst.msk [vmem:[#allocation3 + $0x52] sm:$0xff] %vm720, %v1702
      %1735 = vst.msk [vmem:[#allocation3 + $0x62] sm:$0xff] %vm720, %v1703
      %1736 = vst.msk [vmem:[#allocation3 + $0x6a] sm:$0xff] %vm720, %v1704
      %1737 = vst.msk [vmem:[#allocation3 + $0x7a] sm:$0xff] %vm720, %v1705
      %1738 = vst.msk [vmem:[#allocation3 + $0x82] sm:$0xff] %vm720, %v1706
      %1739 = vst.msk [vmem:[#allocation3 + $0x92] sm:$0xff] %vm720, %v1707
      %1740 = vst.msk [vmem:[#allocation3 + $0x9a] sm:$0xff] %vm720, %v1708
      %1741 = vst.msk [vmem:[#allocation3 + $0xaa] sm:$0xff] %vm720, %v1709
      %1742 = vst.msk [vmem:[#allocation3 + $0xb2] sm:$0xff] %vm720, %v1710
      %1743 = vst.msk [vmem:[#allocation3 + $0xc2] sm:$0xff] %vm720, %v1711
      %1744 = vst.msk [vmem:[#allocation3 + $0xca] sm:$0xff] %vm720, %v1712
      %1745 = vst.msk [vmem:[#allocation3 + $0xda] sm:$0xff] %vm720, %v1713
      %1746 = vst.msk [vmem:[#allocation3 + $0xe2] sm:$0xff] %vm720, %v1714
      %1747 = vst.msk [vmem:[#allocation3 + $0xf2] sm:$0xff] %vm720, %v1715
      %1748 = vst.msk [vmem:[#allocation3 + $0xfa] sm:$0xff] %vm720, %v1716
      %1749 = vst.msk [vmem:[#allocation3 + $0x10a] sm:$0xff] %vm720, %v1717
      %1750 = vst.msk [vmem:[#allocation3 + $0x112] sm:$0xff] %vm720, %v1718
      %1751 = vst.msk [vmem:[#allocation3 + $0x122] sm:$0xff] %vm720, %v1719
      %1752 = vst.msk [vmem:[#allocation3 + $0x12a] sm:$0xff] %vm720, %v1720
      %1753 = vst.msk [vmem:[#allocation3 + $0x13a] sm:$0xff] %vm720, %v1721
      %1754 = vst.msk [vmem:[#allocation3 + $0x142] sm:$0xff] %vm720, %v1722
      %1755 = vst.msk [vmem:[#allocation3 + $0x152] sm:$0xff] %vm720, %v1723
      %1756 = vst.msk [vmem:[#allocation3 + $0x15a] sm:$0xff] %vm720, %v1724
      %1757 = vst.msk [vmem:[#allocation3 + $0x16a] sm:$0xff] %vm720, %v1725
      %1758 = vst.msk [vmem:[#allocation3 + $0x172] sm:$0xff] %vm720, %v1726
      %v1759 = vld [vmem:[#allocation3] sm:$0xff]
      %v1760 = vld [vmem:[#allocation3 + $0x8] sm:$0xff]
      %v1761 = vld [vmem:[#allocation3 + $0x18] sm:$0xff]
      %v1762 = vld [vmem:[#allocation3 + $0x20] sm:$0xff]
      %v1763 = vld [vmem:[#allocation3 + $0x30] sm:$0xff]
      %v1764 = vld [vmem:[#allocation3 + $0x38] sm:$0xff]
      %v1765 = vld [vmem:[#allocation3 + $0x48] sm:$0xff]
      %v1766 = vld [vmem:[#allocation3 + $0x50] sm:$0xff]
      %v1767 = vld [vmem:[#allocation3 + $0x60] sm:$0xff]
      %v1768 = vld [vmem:[#allocation3 + $0x68] sm:$0xff]
      %v1769 = vld [vmem:[#allocation3 + $0x78] sm:$0xff]
      %v1770 = vld [vmem:[#allocation3 + $0x80] sm:$0xff]
      %v1771 = vld [vmem:[#allocation3 + $0x90] sm:$0xff]
      %v1772 = vld [vmem:[#allocation3 + $0x98] sm:$0xff]
      %v1773 = vld [vmem:[#allocation3 + $0xa8] sm:$0xff]
      %v1774 = vld [vmem:[#allocation3 + $0xb0] sm:$0xff]
      %v1775 = vld [vmem:[#allocation3 + $0xc0] sm:$0xff]
      %v1776 = vld [vmem:[#allocation3 + $0xc8] sm:$0xff]
      %v1777 = vld [vmem:[#allocation3 + $0xd8] sm:$0xff]
      %v1778 = vld [vmem:[#allocation3 + $0xe0] sm:$0xff]
      %v1779 = vld [vmem:[#allocation3 + $0xf0] sm:$0xff]
      %v1780 = vld [vmem:[#allocation3 + $0xf8] sm:$0xff]
      %v1781 = vld [vmem:[#allocation3 + $0x108] sm:$0xff]
      %v1782 = vld [vmem:[#allocation3 + $0x110] sm:$0xff]
      %v1783 = vld [vmem:[#allocation3 + $0x120] sm:$0xff]
      %v1784 = vld [vmem:[#allocation3 + $0x128] sm:$0xff]
      %v1785 = vld [vmem:[#allocation3 + $0x138] sm:$0xff]
      %v1786 = vld [vmem:[#allocation3 + $0x140] sm:$0xff]
      %v1787 = vld [vmem:[#allocation3 + $0x150] sm:$0xff]
      %v1788 = vld [vmem:[#allocation3 + $0x158] sm:$0xff]
      %v1789 = vld [vmem:[#allocation3 + $0x168] sm:$0xff]
      %v1790 = vld [vmem:[#allocation3 + $0x170] sm:$0xff]
      %v1791 = vld [vmem:[#allocation3 + $0x1] sm:$0xff]
      %v1792 = vld [vmem:[#allocation3 + $0x9] sm:$0xff]
      %v1793 = vld [vmem:[#allocation3 + $0x19] sm:$0xff]
      %v1794 = vld [vmem:[#allocation3 + $0x21] sm:$0xff]
      %v1795 = vld [vmem:[#allocation3 + $0x31] sm:$0xff]
      %v1796 = vld [vmem:[#allocation3 + $0x39] sm:$0xff]
      %v1797 = vld [vmem:[#allocation3 + $0x49] sm:$0xff]
      %v1798 = vld [vmem:[#allocation3 + $0x51] sm:$0xff]
      %v1799 = vld [vmem:[#allocation3 + $0x61] sm:$0xff]
      %v1800 = vld [vmem:[#allocation3 + $0x69] sm:$0xff]
      %v1801 = vld [vmem:[#allocation3 + $0x79] sm:$0xff]
      %v1802 = vld [vmem:[#allocation3 + $0x81] sm:$0xff]
      %v1803 = vld [vmem:[#allocation3 + $0x91] sm:$0xff]
      %v1804 = vld [vmem:[#allocation3 + $0x99] sm:$0xff]
      %v1805 = vld [vmem:[#allocation3 + $0xa9] sm:$0xff]
      %v1806 = vld [vmem:[#allocation3 + $0xb1] sm:$0xff]
      %v1807 = vld [vmem:[#allocation3 + $0xc1] sm:$0xff]
      %v1808 = vld [vmem:[#allocation3 + $0xc9] sm:$0xff]
      %v1809 = vld [vmem:[#allocation3 + $0xd9] sm:$0xff]
      %v1810 = vld [vmem:[#allocation3 + $0xe1] sm:$0xff]
      %v1811 = vld [vmem:[#allocation3 + $0xf1] sm:$0xff]
      %v1812 = vld [vmem:[#allocation3 + $0xf9] sm:$0xff]
      %v1813 = vld [vmem:[#allocation3 + $0x109] sm:$0xff]
      %v1814 = vld [vmem:[#allocation3 + $0x111] sm:$0xff]
      %v1815 = vld [vmem:[#allocation3 + $0x121] sm:$0xff]
      %v1816 = vld [vmem:[#allocation3 + $0x129] sm:$0xff]
      %v1817 = vld [vmem:[#allocation3 + $0x139] sm:$0xff]
      %v1818 = vld [vmem:[#allocation3 + $0x141] sm:$0xff]
      %v1819 = vld [vmem:[#allocation3 + $0x151] sm:$0xff]
      %v1820 = vld [vmem:[#allocation3 + $0x159] sm:$0xff]
      %v1821 = vld [vmem:[#allocation3 + $0x169] sm:$0xff]
      %v1822 = vld [vmem:[#allocation3 + $0x171] sm:$0xff]
      %v1823 = vld [vmem:[#allocation3 + $0x2] sm:$0xff]
      %v1824 = vld [vmem:[#allocation3 + $0xa] sm:$0xff]
      %v1825 = vld [vmem:[#allocation3 + $0x1a] sm:$0xff]
      %v1826 = vld [vmem:[#allocation3 + $0x22] sm:$0xff]
      %v1827 = vld [vmem:[#allocation3 + $0x32] sm:$0xff]
      %v1828 = vld [vmem:[#allocation3 + $0x3a] sm:$0xff]
      %v1829 = vld [vmem:[#allocation3 + $0x4a] sm:$0xff]
      %v1830 = vld [vmem:[#allocation3 + $0x52] sm:$0xff]
      %v1831 = vld [vmem:[#allocation3 + $0x62] sm:$0xff]
      %v1832 = vld [vmem:[#allocation3 + $0x6a] sm:$0xff]
      %v1833 = vld [vmem:[#allocation3 + $0x7a] sm:$0xff]
      %v1834 = vld [vmem:[#allocation3 + $0x82] sm:$0xff]
      %v1835 = vld [vmem:[#allocation3 + $0x92] sm:$0xff]
      %v1836 = vld [vmem:[#allocation3 + $0x9a] sm:$0xff]
      %v1837 = vld [vmem:[#allocation3 + $0xaa] sm:$0xff]
      %v1838 = vld [vmem:[#allocation3 + $0xb2] sm:$0xff]
      %v1839 = vld [vmem:[#allocation3 + $0xc2] sm:$0xff]
      %v1840 = vld [vmem:[#allocation3 + $0xca] sm:$0xff]
      %v1841 = vld [vmem:[#allocation3 + $0xda] sm:$0xff]
      %v1842 = vld [vmem:[#allocation3 + $0xe2] sm:$0xff]
      %v1843 = vld [vmem:[#allocation3 + $0xf2] sm:$0xff]
      %v1844 = vld [vmem:[#allocation3 + $0xfa] sm:$0xff]
      %v1845 = vld [vmem:[#allocation3 + $0x10a] sm:$0xff]
      %v1846 = vld [vmem:[#allocation3 + $0x112] sm:$0xff]
      %v1847 = vld [vmem:[#allocation3 + $0x122] sm:$0xff]
      %v1848 = vld [vmem:[#allocation3 + $0x12a] sm:$0xff]
      %v1849 = vld [vmem:[#allocation3 + $0x13a] sm:$0xff]
      %v1850 = vld [vmem:[#allocation3 + $0x142] sm:$0xff]
      %v1851 = vld [vmem:[#allocation3 + $0x152] sm:$0xff]
      %v1852 = vld [vmem:[#allocation3 + $0x15a] sm:$0xff]
      %v1853 = vld [vmem:[#allocation3 + $0x16a] sm:$0xff]
      %v1854 = vld [vmem:[#allocation3 + $0x172] sm:$0xff]
      %v1855 = vld [vmem:[#allocation3 + $0x3] sm:$0xff]
      %v1856 = vld [vmem:[#allocation3 + $0xb] sm:$0xff]
      %v1857 = vld [vmem:[#allocation3 + $0x1b] sm:$0xff]
      %v1858 = vld [vmem:[#allocation3 + $0x23] sm:$0xff]
      %v1859 = vld [vmem:[#allocation3 + $0x33] sm:$0xff]
      %v1860 = vld [vmem:[#allocation3 + $0x3b] sm:$0xff]
      %v1861 = vld [vmem:[#allocation3 + $0x4b] sm:$0xff]
      %v1862 = vld [vmem:[#allocation3 + $0x53] sm:$0xff]
      %v1863 = vld [vmem:[#allocation3 + $0x63] sm:$0xff]
      %v1864 = vld [vmem:[#allocation3 + $0x6b] sm:$0xff]
      %v1865 = vld [vmem:[#allocation3 + $0x7b] sm:$0xff]
      %v1866 = vld [vmem:[#allocation3 + $0x83] sm:$0xff]
      %v1867 = vld [vmem:[#allocation3 + $0x93] sm:$0xff]
      %v1868 = vld [vmem:[#allocation3 + $0x9b] sm:$0xff]
      %v1869 = vld [vmem:[#allocation3 + $0xab] sm:$0xff]
      %v1870 = vld [vmem:[#allocation3 + $0xb3] sm:$0xff]
      %v1871 = vld [vmem:[#allocation3 + $0xc3] sm:$0xff]
      %v1872 = vld [vmem:[#allocation3 + $0xcb] sm:$0xff]
      %v1873 = vld [vmem:[#allocation3 + $0xdb] sm:$0xff]
      %v1874 = vld [vmem:[#allocation3 + $0xe3] sm:$0xff]
      %v1875 = vld [vmem:[#allocation3 + $0xf3] sm:$0xff]
      %v1876 = vld [vmem:[#allocation3 + $0xfb] sm:$0xff]
      %v1877 = vld [vmem:[#allocation3 + $0x10b] sm:$0xff]
      %v1878 = vld [vmem:[#allocation3 + $0x113] sm:$0xff]
      %v1879 = vld [vmem:[#allocation3 + $0x123] sm:$0xff]
      %v1880 = vld [vmem:[#allocation3 + $0x12b] sm:$0xff]
      %v1881 = vld [vmem:[#allocation3 + $0x13b] sm:$0xff]
      %v1882 = vld [vmem:[#allocation3 + $0x143] sm:$0xff]
      %v1883 = vld [vmem:[#allocation3 + $0x153] sm:$0xff]
      %v1884 = vld [vmem:[#allocation3 + $0x15b] sm:$0xff]
      %v1885 = vld [vmem:[#allocation3 + $0x16b] sm:$0xff]
      %v1886 = vld [vmem:[#allocation3 + $0x173] sm:$0xff]
      %v1887 = vld [vmem:[#allocation3 + $0x4] sm:$0xff]
      %v1888 = vld [vmem:[#allocation3 + $0xc] sm:$0xff]
      %v1889 = vld [vmem:[#allocation3 + $0x1c] sm:$0xff]
      %v1890 = vld [vmem:[#allocation3 + $0x24] sm:$0xff]
      %v1891 = vld [vmem:[#allocation3 + $0x34] sm:$0xff]
      %v1892 = vld [vmem:[#allocation3 + $0x3c] sm:$0xff]
      %v1893 = vld [vmem:[#allocation3 + $0x4c] sm:$0xff]
      %v1894 = vld [vmem:[#allocation3 + $0x54] sm:$0xff]
      %v1895 = vld [vmem:[#allocation3 + $0x64] sm:$0xff]
      %v1896 = vld [vmem:[#allocation3 + $0x6c] sm:$0xff]
      %v1897 = vld [vmem:[#allocation3 + $0x7c] sm:$0xff]
      %v1898 = vld [vmem:[#allocation3 + $0x84] sm:$0xff]
      %v1899 = vld [vmem:[#allocation3 + $0x94] sm:$0xff]
      %v1900 = vld [vmem:[#allocation3 + $0x9c] sm:$0xff]
      %v1901 = vld [vmem:[#allocation3 + $0xac] sm:$0xff]
      %v1902 = vld [vmem:[#allocation3 + $0xb4] sm:$0xff]
      %v1903 = vld [vmem:[#allocation3 + $0xc4] sm:$0xff]
      %v1904 = vld [vmem:[#allocation3 + $0xcc] sm:$0xff]
      %v1905 = vld [vmem:[#allocation3 + $0xdc] sm:$0xff]
      %v1906 = vld [vmem:[#allocation3 + $0xe4] sm:$0xff]
      %v1907 = vld [vmem:[#allocation3 + $0xf4] sm:$0xff]
      %v1908 = vld [vmem:[#allocation3 + $0xfc] sm:$0xff]
      %v1909 = vld [vmem:[#allocation3 + $0x10c] sm:$0xff]
      %v1910 = vld [vmem:[#allocation3 + $0x114] sm:$0xff]
      %v1911 = vld [vmem:[#allocation3 + $0x124] sm:$0xff]
      %v1912 = vld [vmem:[#allocation3 + $0x12c] sm:$0xff]
      %v1913 = vld [vmem:[#allocation3 + $0x13c] sm:$0xff]
      %v1914 = vld [vmem:[#allocation3 + $0x144] sm:$0xff]
      %v1915 = vld [vmem:[#allocation3 + $0x154] sm:$0xff]
      %v1916 = vld [vmem:[#allocation3 + $0x15c] sm:$0xff]
      %v1917 = vld [vmem:[#allocation3 + $0x16c] sm:$0xff]
      %v1918 = vld [vmem:[#allocation3 + $0x174] sm:$0xff]
      %v1919 = vmax.f32 %v1759, %v1791
      %v1920 = vmax.f32 %v1760, %v1792
      %v1921 = vmax.f32 %v1761, %v1793
      %v1922 = vmax.f32 %v1762, %v1794
      %v1923 = vmax.f32 %v1763, %v1795
      %v1924 = vmax.f32 %v1764, %v1796
      %v1925 = vmax.f32 %v1765, %v1797
      %v1926 = vmax.f32 %v1766, %v1798
      %v1927 = vmax.f32 %v1767, %v1799
      %v1928 = vmax.f32 %v1768, %v1800
      %v1929 = vmax.f32 %v1769, %v1801
      %v1930 = vmax.f32 %v1770, %v1802
      %v1931 = vmax.f32 %v1771, %v1803
      %v1932 = vmax.f32 %v1772, %v1804
      %v1933 = vmax.f32 %v1773, %v1805
      %v1934 = vmax.f32 %v1774, %v1806
      %v1935 = vmax.f32 %v1775, %v1807
      %v1936 = vmax.f32 %v1776, %v1808
      %v1937 = vmax.f32 %v1777, %v1809
      %v1938 = vmax.f32 %v1778, %v1810
      %v1939 = vmax.f32 %v1779, %v1811
      %v1940 = vmax.f32 %v1780, %v1812
      %v1941 = vmax.f32 %v1781, %v1813
      %v1942 = vmax.f32 %v1782, %v1814
      %v1943 = vmax.f32 %v1783, %v1815
      %v1944 = vmax.f32 %v1784, %v1816
      %v1945 = vmax.f32 %v1785, %v1817
      %v1946 = vmax.f32 %v1786, %v1818
      %v1947 = vmax.f32 %v1787, %v1819
      %v1948 = vmax.f32 %v1788, %v1820
      %v1949 = vmax.f32 %v1789, %v1821
      %v1950 = vmax.f32 %v1790, %v1822
      %v1951 = vmax.f32 %v1823, %v1855
      %v1952 = vmax.f32 %v1824, %v1856
      %v1953 = vmax.f32 %v1825, %v1857
      %v1954 = vmax.f32 %v1826, %v1858
      %v1955 = vmax.f32 %v1827, %v1859
      %v1956 = vmax.f32 %v1828, %v1860
      %v1957 = vmax.f32 %v1829, %v1861
      %v1958 = vmax.f32 %v1830, %v1862
      %v1959 = vmax.f32 %v1831, %v1863
      %v1960 = vmax.f32 %v1832, %v1864
      %v1961 = vmax.f32 %v1833, %v1865
      %v1962 = vmax.f32 %v1834, %v1866
      %v1963 = vmax.f32 %v1835, %v1867
      %v1964 = vmax.f32 %v1836, %v1868
      %v1965 = vmax.f32 %v1837, %v1869
      %v1966 = vmax.f32 %v1838, %v1870
      %v1967 = vmax.f32 %v1839, %v1871
      %v1968 = vmax.f32 %v1840, %v1872
      %v1969 = vmax.f32 %v1841, %v1873
      %v1970 = vmax.f32 %v1842, %v1874
      %v1971 = vmax.f32 %v1843, %v1875
      %v1972 = vmax.f32 %v1844, %v1876
      %v1973 = vmax.f32 %v1845, %v1877
      %v1974 = vmax.f32 %v1846, %v1878
      %v1975 = vmax.f32 %v1847, %v1879
      %v1976 = vmax.f32 %v1848, %v1880
      %v1977 = vmax.f32 %v1849, %v1881
      %v1978 = vmax.f32 %v1850, %v1882
      %v1979 = vmax.f32 %v1851, %v1883
      %v1980 = vmax.f32 %v1852, %v1884
      %v1981 = vmax.f32 %v1853, %v1885
      %v1982 = vmax.f32 %v1854, %v1886
      %v1983 = vmax.f32 %v1919, %v1951
      %v1984 = vmax.f32 %v1920, %v1952
      %v1985 = vmax.f32 %v1921, %v1953
      %v1986 = vmax.f32 %v1922, %v1954
      %v1987 = vmax.f32 %v1923, %v1955
      %v1988 = vmax.f32 %v1924, %v1956
      %v1989 = vmax.f32 %v1925, %v1957
      %v1990 = vmax.f32 %v1926, %v1958
      %v1991 = vmax.f32 %v1927, %v1959
      %v1992 = vmax.f32 %v1928, %v1960
      %v1993 = vmax.f32 %v1929, %v1961
      %v1994 = vmax.f32 %v1930, %v1962
      %v1995 = vmax.f32 %v1931, %v1963
      %v1996 = vmax.f32 %v1932, %v1964
      %v1997 = vmax.f32 %v1933, %v1965
      %v1998 = vmax.f32 %v1934, %v1966
      %v1999 = vmax.f32 %v1935, %v1967
      %v2000 = vmax.f32 %v1936, %v1968
      %v2001 = vmax.f32 %v1937, %v1969
      %v2002 = vmax.f32 %v1938, %v1970
      %v2003 = vmax.f32 %v1939, %v1971
      %v2004 = vmax.f32 %v1940, %v1972
      %v2005 = vmax.f32 %v1941, %v1973
      %v2006 = vmax.f32 %v1942, %v1974
      %v2007 = vmax.f32 %v1943, %v1975
      %v2008 = vmax.f32 %v1944, %v1976
      %v2009 = vmax.f32 %v1945, %v1977
      %v2010 = vmax.f32 %v1946, %v1978
      %v2011 = vmax.f32 %v1947, %v1979
      %v2012 = vmax.f32 %v1948, %v1980
      %v2013 = vmax.f32 %v1949, %v1981
      %v2014 = vmax.f32 %v1950, %v1982
      %v2015 = vmax.f32 %v1983, %v1887
      %v2016 = vmax.f32 %v1984, %v1888
      %v2017 = vmax.f32 %v1985, %v1889
      %v2018 = vmax.f32 %v1986, %v1890
      %v2019 = vmax.f32 %v1987, %v1891
      %v2020 = vmax.f32 %v1988, %v1892
      %v2021 = vmax.f32 %v1989, %v1893
      %v2022 = vmax.f32 %v1990, %v1894
      %v2023 = vmax.f32 %v1991, %v1895
      %v2024 = vmax.f32 %v1992, %v1896
      %v2025 = vmax.f32 %v1993, %v1897
      %v2026 = vmax.f32 %v1994, %v1898
      %v2027 = vmax.f32 %v1995, %v1899
      %v2028 = vmax.f32 %v1996, %v1900
      %v2029 = vmax.f32 %v1997, %v1901
      %v2030 = vmax.f32 %v1998, %v1902
      %v2031 = vmax.f32 %v1999, %v1903
      %v2032 = vmax.f32 %v2000, %v1904
      %v2033 = vmax.f32 %v2001, %v1905
      %v2034 = vmax.f32 %v2002, %v1906
      %v2035 = vmax.f32 %v2003, %v1907
      %v2036 = vmax.f32 %v2004, %v1908
      %v2037 = vmax.f32 %v2005, %v1909
      %v2038 = vmax.f32 %v2006, %v1910
      %v2039 = vmax.f32 %v2007, %v1911
      %v2040 = vmax.f32 %v2008, %v1912
      %v2041 = vmax.f32 %v2009, %v1913
      %v2042 = vmax.f32 %v2010, %v1914
      %v2043 = vmax.f32 %v2011, %v1915
      %v2044 = vmax.f32 %v2012, %v1916
      %v2045 = vmax.f32 %v2013, %v1917
      %v2046 = vmax.f32 %v2014, %v1918
      %2047 = vst.msk [vmem:[%s763] sm:$0xff] %vm720, %v2015
      %2048 = vst.msk [vmem:[%s763 + $0x8] sm:$0xff] %vm720, %v2016
      %2049 = vst.msk [vmem:[%s763 + $0x10] sm:$0xff] %vm720, %v2017
      %2050 = vst.msk [vmem:[%s763 + $0x18] sm:$0xff] %vm720, %v2018
      %2051 = vst.msk [vmem:[%s763 + $0x20] sm:$0xff] %vm720, %v2019
      %2052 = vst.msk [vmem:[%s763 + $0x28] sm:$0xff] %vm720, %v2020
      %2053 = vst.msk [vmem:[%s763 + $0x30] sm:$0xff] %vm720, %v2021
      %2054 = vst.msk [vmem:[%s763 + $0x38] sm:$0xff] %vm720, %v2022
      %2055 = vst.msk [vmem:[%s763 + $0x40] sm:$0xff] %vm720, %v2023
      %2056 = vst.msk [vmem:[%s763 + $0x48] sm:$0xff] %vm720, %v2024
      %2057 = vst.msk [vmem:[%s763 + $0x50] sm:$0xff] %vm720, %v2025
      %2058 = vst.msk [vmem:[%s763 + $0x58] sm:$0xff] %vm720, %v2026
      %2059 = vst.msk [vmem:[%s763 + $0x60] sm:$0xff] %vm720, %v2027
      %2060 = vst.msk [vmem:[%s763 + $0x68] sm:$0xff] %vm720, %v2028
      %2061 = vst.msk [vmem:[%s763 + $0x70] sm:$0xff] %vm720, %v2029
      %2062 = vst.msk [vmem:[%s763 + $0x78] sm:$0xff] %vm720, %v2030
      %2063 = vst.msk [vmem:[%s763 + $0x80] sm:$0xff] %vm720, %v2031
      %2064 = vst.msk [vmem:[%s763 + $0x88] sm:$0xff] %vm720, %v2032
      %2065 = vst.msk [vmem:[%s763 + $0x90] sm:$0xff] %vm720, %v2033
      %2066 = vst.msk [vmem:[%s763 + $0x98] sm:$0xff] %vm720, %v2034
      %2067 = vst.msk [vmem:[%s763 + $0xa0] sm:$0xff] %vm720, %v2035
      %2068 = vst.msk [vmem:[%s763 + $0xa8] sm:$0xff] %vm720, %v2036
      %2069 = vst.msk [vmem:[%s763 + $0xb0] sm:$0xff] %vm720, %v2037
      %2070 = vst.msk [vmem:[%s763 + $0xb8] sm:$0xff] %vm720, %v2038
      %2071 = vst.msk [vmem:[%s763 + $0xc0] sm:$0xff] %vm720, %v2039
      %2072 = vst.msk [vmem:[%s763 + $0xc8] sm:$0xff] %vm720, %v2040
      %2073 = vst.msk [vmem:[%s763 + $0xd0] sm:$0xff] %vm720, %v2041
      %2074 = vst.msk [vmem:[%s763 + $0xd8] sm:$0xff] %vm720, %v2042
      %2075 = vst.msk [vmem:[%s763 + $0xe0] sm:$0xff] %vm720, %v2043
      %2076 = vst.msk [vmem:[%s763 + $0xe8] sm:$0xff] %vm720, %v2044
      %2077 = vst.msk [vmem:[%s763 + $0xf0] sm:$0xff] %vm720, %v2045
      %2078 = vst.msk [vmem:[%s763 + $0xf8] sm:$0xff] %vm720, %v2046
      %v2079 = vld [vmem:[#allocation2] sm:$0xff]
      %v2080 = vld [vmem:[#allocation2 + $0x8] sm:$0xff]
      %v2081 = vld [vmem:[#allocation2 + $0x10] sm:$0xff]
      %v2082 = vld [vmem:[#allocation2 + $0x18] sm:$0xff]
      %v2083 = vld [vmem:[#allocation2 + $0x20] sm:$0xff]
      %v2084 = vld [vmem:[#allocation2 + $0x28] sm:$0xff]
      %v2085 = vld [vmem:[#allocation2 + $0x30] sm:$0xff]
      %v2086 = vld [vmem:[#allocation2 + $0x38] sm:$0xff]
      %v2087 = vld [vmem:[#allocation2 + $0x40] sm:$0xff]
      %v2088 = vld [vmem:[#allocation2 + $0x48] sm:$0xff]
      %v2089 = vld [vmem:[#allocation2 + $0x50] sm:$0xff]
      %v2090 = vld [vmem:[#allocation2 + $0x58] sm:$0xff]
      %v2091 = vld [vmem:[#allocation2 + $0x60] sm:$0xff]
      %v2092 = vld [vmem:[#allocation2 + $0x68] sm:$0xff]
      %v2093 = vld [vmem:[#allocation2 + $0x70] sm:$0xff]
      %v2094 = vld [vmem:[#allocation2 + $0x78] sm:$0xff]
      %v2095 = vld [vmem:[#allocation2 + $0x80] sm:$0xff]
      %v2096 = vld [vmem:[#allocation2 + $0x88] sm:$0xff]
      %v2097 = vld [vmem:[#allocation2 + $0x90] sm:$0xff]
      %v2098 = vld [vmem:[#allocation2 + $0x98] sm:$0xff]
      %v2099 = vld [vmem:[#allocation2 + $0xa0] sm:$0xff]
      %v2100 = vld [vmem:[#allocation2 + $0xa8] sm:$0xff]
      %v2101 = vld [vmem:[#allocation2 + $0xb0] sm:$0xff]
      %v2102 = vld [vmem:[#allocation2 + $0xb8] sm:$0xff]
      %v2103 = vld [vmem:[#allocation2 + $0xc0] sm:$0xff]
      %v2104 = vld [vmem:[#allocation2 + $0xc8] sm:$0xff]
      %v2105 = vld [vmem:[#allocation2 + $0xd0] sm:$0xff]
      %v2106 = vld [vmem:[#allocation2 + $0xd8] sm:$0xff]
      %v2107 = vld [vmem:[#allocation2 + $0xe0] sm:$0xff]
      %v2108 = vld [vmem:[#allocation2 + $0xe8] sm:$0xff]
      %v2109 = vld [vmem:[#allocation2 + $0xf0] sm:$0xff]
      %v2110 = vld [vmem:[#allocation2 + $0xf8] sm:$0xff]
      %v2111 = vld [vmem:[%s828] sm:$0xff]
      %v2112 = vld [vmem:[%s828 + $0x8] sm:$0xff]
      %v2113 = vld [vmem:[%s828 + $0x10] sm:$0xff]
      %v2114 = vld [vmem:[%s828 + $0x18] sm:$0xff]
      %v2115 = vld [vmem:[%s828 + $0x20] sm:$0xff]
      %v2116 = vld [vmem:[%s828 + $0x28] sm:$0xff]
      %v2117 = vld [vmem:[%s828 + $0x30] sm:$0xff]
      %v2118 = vld [vmem:[%s828 + $0x38] sm:$0xff]
      %v2119 = vld [vmem:[%s828 + $0x40] sm:$0xff]
      %v2120 = vld [vmem:[%s828 + $0x48] sm:$0xff]
      %v2121 = vld [vmem:[%s828 + $0x50] sm:$0xff]
      %v2122 = vld [vmem:[%s828 + $0x58] sm:$0xff]
      %v2123 = vld [vmem:[%s828 + $0x60] sm:$0xff]
      %v2124 = vld [vmem:[%s828 + $0x68] sm:$0xff]
      %v2125 = vld [vmem:[%s828 + $0x70] sm:$0xff]
      %v2126 = vld [vmem:[%s828 + $0x78] sm:$0xff]
      %v2127 = vld [vmem:[%s828 + $0x80] sm:$0xff]
      %v2128 = vld [vmem:[%s828 + $0x88] sm:$0xff]
      %v2129 = vld [vmem:[%s828 + $0x90] sm:$0xff]
      %v2130 = vld [vmem:[%s828 + $0x98] sm:$0xff]
      %v2131 = vld [vmem:[%s828 + $0xa0] sm:$0xff]
      %v2132 = vld [vmem:[%s828 + $0xa8] sm:$0xff]
      %v2133 = vld [vmem:[%s828 + $0xb0] sm:$0xff]
      %v2134 = vld [vmem:[%s828 + $0xb8] sm:$0xff]
      %v2135 = vld [vmem:[%s828 + $0xc0] sm:$0xff]
      %v2136 = vld [vmem:[%s828 + $0xc8] sm:$0xff]
      %v2137 = vld [vmem:[%s828 + $0xd0] sm:$0xff]
      %v2138 = vld [vmem:[%s828 + $0xd8] sm:$0xff]
      %v2139 = vld [vmem:[%s828 + $0xe0] sm:$0xff]
      %v2140 = vld [vmem:[%s828 + $0xe8] sm:$0xff]
      %v2141 = vld [vmem:[%s828 + $0xf0] sm:$0xff]
      %v2142 = vld [vmem:[%s828 + $0xf8] sm:$0xff]
      %v2143 = vld [vmem:[%s763] sm:$0xff]
      %v2144 = vld [vmem:[%s763 + $0x8] sm:$0xff]
      %v2145 = vld [vmem:[%s763 + $0x10] sm:$0xff]
      %v2146 = vld [vmem:[%s763 + $0x18] sm:$0xff]
      %v2147 = vld [vmem:[%s763 + $0x20] sm:$0xff]
      %v2148 = vld [vmem:[%s763 + $0x28] sm:$0xff]
      %v2149 = vld [vmem:[%s763 + $0x30] sm:$0xff]
      %v2150 = vld [vmem:[%s763 + $0x38] sm:$0xff]
      %v2151 = vld [vmem:[%s763 + $0x40] sm:$0xff]
      %v2152 = vld [vmem:[%s763 + $0x48] sm:$0xff]
      %v2153 = vld [vmem:[%s763 + $0x50] sm:$0xff]
      %v2154 = vld [vmem:[%s763 + $0x58] sm:$0xff]
      %v2155 = vld [vmem:[%s763 + $0x60] sm:$0xff]
      %v2156 = vld [vmem:[%s763 + $0x68] sm:$0xff]
      %v2157 = vld [vmem:[%s763 + $0x70] sm:$0xff]
      %v2158 = vld [vmem:[%s763 + $0x78] sm:$0xff]
      %v2159 = vld [vmem:[%s763 + $0x80] sm:$0xff]
      %v2160 = vld [vmem:[%s763 + $0x88] sm:$0xff]
      %v2161 = vld [vmem:[%s763 + $0x90] sm:$0xff]
      %v2162 = vld [vmem:[%s763 + $0x98] sm:$0xff]
      %v2163 = vld [vmem:[%s763 + $0xa0] sm:$0xff]
      %v2164 = vld [vmem:[%s763 + $0xa8] sm:$0xff]
      %v2165 = vld [vmem:[%s763 + $0xb0] sm:$0xff]
      %v2166 = vld [vmem:[%s763 + $0xb8] sm:$0xff]
      %v2167 = vld [vmem:[%s763 + $0xc0] sm:$0xff]
      %v2168 = vld [vmem:[%s763 + $0xc8] sm:$0xff]
      %v2169 = vld [vmem:[%s763 + $0xd0] sm:$0xff]
      %v2170 = vld [vmem:[%s763 + $0xd8] sm:$0xff]
      %v2171 = vld [vmem:[%s763 + $0xe0] sm:$0xff]
      %v2172 = vld [vmem:[%s763 + $0xe8] sm:$0xff]
      %v2173 = vld [vmem:[%s763 + $0xf0] sm:$0xff]
      %v2174 = vld [vmem:[%s763 + $0xf8] sm:$0xff]
      %v2175 = vld [vmem:[%s893] sm:$0xff]
      %v2176 = vld [vmem:[%s893 + $0x8] sm:$0xff]
      %v2177 = vld [vmem:[%s893 + $0x10] sm:$0xff]
      %v2178 = vld [vmem:[%s893 + $0x18] sm:$0xff]
      %v2179 = vld [vmem:[%s893 + $0x20] sm:$0xff]
      %v2180 = vld [vmem:[%s893 + $0x28] sm:$0xff]
      %v2181 = vld [vmem:[%s893 + $0x30] sm:$0xff]
      %v2182 = vld [vmem:[%s893 + $0x38] sm:$0xff]
      %v2183 = vld [vmem:[%s893 + $0x40] sm:$0xff]
      %v2184 = vld [vmem:[%s893 + $0x48] sm:$0xff]
      %v2185 = vld [vmem:[%s893 + $0x50] sm:$0xff]
      %v2186 = vld [vmem:[%s893 + $0x58] sm:$0xff]
      %v2187 = vld [vmem:[%s893 + $0x60] sm:$0xff]
      %v2188 = vld [vmem:[%s893 + $0x68] sm:$0xff]
      %v2189 = vld [vmem:[%s893 + $0x70] sm:$0xff]
      %v2190 = vld [vmem:[%s893 + $0x78] sm:$0xff]
      %v2191 = vld [vmem:[%s893 + $0x80] sm:$0xff]
      %v2192 = vld [vmem:[%s893 + $0x88] sm:$0xff]
      %v2193 = vld [vmem:[%s893 + $0x90] sm:$0xff]
      %v2194 = vld [vmem:[%s893 + $0x98] sm:$0xff]
      %v2195 = vld [vmem:[%s893 + $0xa0] sm:$0xff]
      %v2196 = vld [vmem:[%s893 + $0xa8] sm:$0xff]
      %v2197 = vld [vmem:[%s893 + $0xb0] sm:$0xff]
      %v2198 = vld [vmem:[%s893 + $0xb8] sm:$0xff]
      %v2199 = vld [vmem:[%s893 + $0xc0] sm:$0xff]
      %v2200 = vld [vmem:[%s893 + $0xc8] sm:$0xff]
      %v2201 = vld [vmem:[%s893 + $0xd0] sm:$0xff]
      %v2202 = vld [vmem:[%s893 + $0xd8] sm:$0xff]
      %v2203 = vld [vmem:[%s893 + $0xe0] sm:$0xff]
      %v2204 = vld [vmem:[%s893 + $0xe8] sm:$0xff]
      %v2205 = vld [vmem:[%s893 + $0xf0] sm:$0xff]
      %v2206 = vld [vmem:[%s893 + $0xf8] sm:$0xff]
      %v2207 = vld [vmem:[%s926] sm:$0xff]
      %v2208 = vld [vmem:[%s926 + $0x8] sm:$0xff]
      %v2209 = vld [vmem:[%s926 + $0x10] sm:$0xff]
      %v2210 = vld [vmem:[%s926 + $0x18] sm:$0xff]
      %v2211 = vld [vmem:[%s926 + $0x20] sm:$0xff]
      %v2212 = vld [vmem:[%s926 + $0x28] sm:$0xff]
      %v2213 = vld [vmem:[%s926 + $0x30] sm:$0xff]
      %v2214 = vld [vmem:[%s926 + $0x38] sm:$0xff]
      %v2215 = vld [vmem:[%s926 + $0x40] sm:$0xff]
      %v2216 = vld [vmem:[%s926 + $0x48] sm:$0xff]
      %v2217 = vld [vmem:[%s926 + $0x50] sm:$0xff]
      %v2218 = vld [vmem:[%s926 + $0x58] sm:$0xff]
      %v2219 = vld [vmem:[%s926 + $0x60] sm:$0xff]
      %v2220 = vld [vmem:[%s926 + $0x68] sm:$0xff]
      %v2221 = vld [vmem:[%s926 + $0x70] sm:$0xff]
      %v2222 = vld [vmem:[%s926 + $0x78] sm:$0xff]
      %v2223 = vld [vmem:[%s926 + $0x80] sm:$0xff]
      %v2224 = vld [vmem:[%s926 + $0x88] sm:$0xff]
      %v2225 = vld [vmem:[%s926 + $0x90] sm:$0xff]
      %v2226 = vld [vmem:[%s926 + $0x98] sm:$0xff]
      %v2227 = vld [vmem:[%s926 + $0xa0] sm:$0xff]
      %v2228 = vld [vmem:[%s926 + $0xa8] sm:$0xff]
      %v2229 = vld [vmem:[%s926 + $0xb0] sm:$0xff]
      %v2230 = vld [vmem:[%s926 + $0xb8] sm:$0xff]
      %v2231 = vld [vmem:[%s926 + $0xc0] sm:$0xff]
      %v2232 = vld [vmem:[%s926 + $0xc8] sm:$0xff]
      %v2233 = vld [vmem:[%s926 + $0xd0] sm:$0xff]
      %v2234 = vld [vmem:[%s926 + $0xd8] sm:$0xff]
      %v2235 = vld [vmem:[%s926 + $0xe0] sm:$0xff]
      %v2236 = vld [vmem:[%s926 + $0xe8] sm:$0xff]
      %v2237 = vld [vmem:[%s926 + $0xf0] sm:$0xff]
      %v2238 = vld [vmem:[%s926 + $0xf8] sm:$0xff]
      %v2239 = vmax.f32 %v2079, %v2111
      %v2240 = vmax.f32 %v2080, %v2112
      %v2241 = vmax.f32 %v2081, %v2113
      %v2242 = vmax.f32 %v2082, %v2114
      %v2243 = vmax.f32 %v2083, %v2115
      %v2244 = vmax.f32 %v2084, %v2116
      %v2245 = vmax.f32 %v2085, %v2117
      %v2246 = vmax.f32 %v2086, %v2118
      %v2247 = vmax.f32 %v2087, %v2119
      %v2248 = vmax.f32 %v2088, %v2120
      %v2249 = vmax.f32 %v2089, %v2121
      %v2250 = vmax.f32 %v2090, %v2122
      %v2251 = vmax.f32 %v2091, %v2123
      %v2252 = vmax.f32 %v2092, %v2124
      %v2253 = vmax.f32 %v2093, %v2125
      %v2254 = vmax.f32 %v2094, %v2126
      %v2255 = vmax.f32 %v2095, %v2127
      %v2256 = vmax.f32 %v2096, %v2128
      %v2257 = vmax.f32 %v2097, %v2129
      %v2258 = vmax.f32 %v2098, %v2130
      %v2259 = vmax.f32 %v2099, %v2131
      %v2260 = vmax.f32 %v2100, %v2132
      %v2261 = vmax.f32 %v2101, %v2133
      %v2262 = vmax.f32 %v2102, %v2134
      %v2263 = vmax.f32 %v2103, %v2135
      %v2264 = vmax.f32 %v2104, %v2136
      %v2265 = vmax.f32 %v2105, %v2137
      %v2266 = vmax.f32 %v2106, %v2138
      %v2267 = vmax.f32 %v2107, %v2139
      %v2268 = vmax.f32 %v2108, %v2140
      %v2269 = vmax.f32 %v2109, %v2141
      %v2270 = vmax.f32 %v2110, %v2142
      %v2271 = vmax.f32 %v2143, %v2175
      %v2272 = vmax.f32 %v2144, %v2176
      %v2273 = vmax.f32 %v2145, %v2177
      %v2274 = vmax.f32 %v2146, %v2178
      %v2275 = vmax.f32 %v2147, %v2179
      %v2276 = vmax.f32 %v2148, %v2180
      %v2277 = vmax.f32 %v2149, %v2181
      %v2278 = vmax.f32 %v2150, %v2182
      %v2279 = vmax.f32 %v2151, %v2183
      %v2280 = vmax.f32 %v2152, %v2184
      %v2281 = vmax.f32 %v2153, %v2185
      %v2282 = vmax.f32 %v2154, %v2186
      %v2283 = vmax.f32 %v2155, %v2187
      %v2284 = vmax.f32 %v2156, %v2188
      %v2285 = vmax.f32 %v2157, %v2189
      %v2286 = vmax.f32 %v2158, %v2190
      %v2287 = vmax.f32 %v2159, %v2191
      %v2288 = vmax.f32 %v2160, %v2192
      %v2289 = vmax.f32 %v2161, %v2193
      %v2290 = vmax.f32 %v2162, %v2194
      %v2291 = vmax.f32 %v2163, %v2195
      %v2292 = vmax.f32 %v2164, %v2196
      %v2293 = vmax.f32 %v2165, %v2197
      %v2294 = vmax.f32 %v2166, %v2198
      %v2295 = vmax.f32 %v2167, %v2199
      %v2296 = vmax.f32 %v2168, %v2200
      %v2297 = vmax.f32 %v2169, %v2201
      %v2298 = vmax.f32 %v2170, %v2202
      %v2299 = vmax.f32 %v2171, %v2203
      %v2300 = vmax.f32 %v2172, %v2204
      %v2301 = vmax.f32 %v2173, %v2205
      %v2302 = vmax.f32 %v2174, %v2206
      %v2303 = vmax.f32 %v2239, %v2271
      %v2304 = vmax.f32 %v2240, %v2272
      %v2305 = vmax.f32 %v2241, %v2273
      %v2306 = vmax.f32 %v2242, %v2274
      %v2307 = vmax.f32 %v2243, %v2275
      %v2308 = vmax.f32 %v2244, %v2276
      %v2309 = vmax.f32 %v2245, %v2277
      %v2310 = vmax.f32 %v2246, %v2278
      %v2311 = vmax.f32 %v2247, %v2279
      %v2312 = vmax.f32 %v2248, %v2280
      %v2313 = vmax.f32 %v2249, %v2281
      %v2314 = vmax.f32 %v2250, %v2282
      %v2315 = vmax.f32 %v2251, %v2283
      %v2316 = vmax.f32 %v2252, %v2284
      %v2317 = vmax.f32 %v2253, %v2285
      %v2318 = vmax.f32 %v2254, %v2286
      %v2319 = vmax.f32 %v2255, %v2287
      %v2320 = vmax.f32 %v2256, %v2288
      %v2321 = vmax.f32 %v2257, %v2289
      %v2322 = vmax.f32 %v2258, %v2290
      %v2323 = vmax.f32 %v2259, %v2291
      %v2324 = vmax.f32 %v2260, %v2292
      %v2325 = vmax.f32 %v2261, %v2293
      %v2326 = vmax.f32 %v2262, %v2294
      %v2327 = vmax.f32 %v2263, %v2295
      %v2328 = vmax.f32 %v2264, %v2296
      %v2329 = vmax.f32 %v2265, %v2297
      %v2330 = vmax.f32 %v2266, %v2298
      %v2331 = vmax.f32 %v2267, %v2299
      %v2332 = vmax.f32 %v2268, %v2300
      %v2333 = vmax.f32 %v2269, %v2301
      %v2334 = vmax.f32 %v2270, %v2302
      %v2335 = vmax.f32 %v2303, %v2207
      %v2336 = vmax.f32 %v2304, %v2208
      %v2337 = vmax.f32 %v2305, %v2209
      %v2338 = vmax.f32 %v2306, %v2210
      %v2339 = vmax.f32 %v2307, %v2211
      %v2340 = vmax.f32 %v2308, %v2212
      %v2341 = vmax.f32 %v2309, %v2213
      %v2342 = vmax.f32 %v2310, %v2214
      %v2343 = vmax.f32 %v2311, %v2215
      %v2344 = vmax.f32 %v2312, %v2216
      %v2345 = vmax.f32 %v2313, %v2217
      %v2346 = vmax.f32 %v2314, %v2218
      %v2347 = vmax.f32 %v2315, %v2219
      %v2348 = vmax.f32 %v2316, %v2220
      %v2349 = vmax.f32 %v2317, %v2221
      %v2350 = vmax.f32 %v2318, %v2222
      %v2351 = vmax.f32 %v2319, %v2223
      %v2352 = vmax.f32 %v2320, %v2224
      %v2353 = vmax.f32 %v2321, %v2225
      %v2354 = vmax.f32 %v2322, %v2226
      %v2355 = vmax.f32 %v2323, %v2227
      %v2356 = vmax.f32 %v2324, %v2228
      %v2357 = vmax.f32 %v2325, %v2229
      %v2358 = vmax.f32 %v2326, %v2230
      %v2359 = vmax.f32 %v2327, %v2231
      %v2360 = vmax.f32 %v2328, %v2232
      %v2361 = vmax.f32 %v2329, %v2233
      %v2362 = vmax.f32 %v2330, %v2234
      %v2363 = vmax.f32 %v2331, %v2235
      %v2364 = vmax.f32 %v2332, %v2236
      %v2365 = vmax.f32 %v2333, %v2237
      %v2366 = vmax.f32 %v2334, %v2238
      %2367 = vst.msk [vmem:[#allocation3 + $0x2] sm:$0xff] %vm720, %v2335
      %2368 = vst.msk [vmem:[#allocation3 + $0xa] sm:$0xff] %vm720, %v2336
      %2369 = vst.msk [vmem:[#allocation3 + $0x1a] sm:$0xff] %vm720, %v2337
      %2370 = vst.msk [vmem:[#allocation3 + $0x22] sm:$0xff] %vm720, %v2338
      %2371 = vst.msk [vmem:[#allocation3 + $0x32] sm:$0xff] %vm720, %v2339
      %2372 = vst.msk [vmem:[#allocation3 + $0x3a] sm:$0xff] %vm720, %v2340
      %2373 = vst.msk [vmem:[#allocation3 + $0x4a] sm:$0xff] %vm720, %v2341
      %2374 = vst.msk [vmem:[#allocation3 + $0x52] sm:$0xff] %vm720, %v2342
      %2375 = vst.msk [vmem:[#allocation3 + $0x62] sm:$0xff] %vm720, %v2343
      %2376 = vst.msk [vmem:[#allocation3 + $0x6a] sm:$0xff] %vm720, %v2344
      %2377 = vst.msk [vmem:[#allocation3 + $0x7a] sm:$0xff] %vm720, %v2345
      %2378 = vst.msk [vmem:[#allocation3 + $0x82] sm:$0xff] %vm720, %v2346
      %2379 = vst.msk [vmem:[#allocation3 + $0x92] sm:$0xff] %vm720, %v2347
      %2380 = vst.msk [vmem:[#allocation3 + $0x9a] sm:$0xff] %vm720, %v2348
      %2381 = vst.msk [vmem:[#allocation3 + $0xaa] sm:$0xff] %vm720, %v2349
      %2382 = vst.msk [vmem:[#allocation3 + $0xb2] sm:$0xff] %vm720, %v2350
      %2383 = vst.msk [vmem:[#allocation3 + $0xc2] sm:$0xff] %vm720, %v2351
      %2384 = vst.msk [vmem:[#allocation3 + $0xca] sm:$0xff] %vm720, %v2352
      %2385 = vst.msk [vmem:[#allocation3 + $0xda] sm:$0xff] %vm720, %v2353
      %2386 = vst.msk [vmem:[#allocation3 + $0xe2] sm:$0xff] %vm720, %v2354
      %2387 = vst.msk [vmem:[#allocation3 + $0xf2] sm:$0xff] %vm720, %v2355
      %2388 = vst.msk [vmem:[#allocation3 + $0xfa] sm:$0xff] %vm720, %v2356
      %2389 = vst.msk [vmem:[#allocation3 + $0x10a] sm:$0xff] %vm720, %v2357
      %2390 = vst.msk [vmem:[#allocation3 + $0x112] sm:$0xff] %vm720, %v2358
      %2391 = vst.msk [vmem:[#allocation3 + $0x122] sm:$0xff] %vm720, %v2359
      %2392 = vst.msk [vmem:[#allocation3 + $0x12a] sm:$0xff] %vm720, %v2360
      %2393 = vst.msk [vmem:[#allocation3 + $0x13a] sm:$0xff] %vm720, %v2361
      %2394 = vst.msk [vmem:[#allocation3 + $0x142] sm:$0xff] %vm720, %v2362
      %2395 = vst.msk [vmem:[#allocation3 + $0x152] sm:$0xff] %vm720, %v2363
      %2396 = vst.msk [vmem:[#allocation3 + $0x15a] sm:$0xff] %vm720, %v2364
      %2397 = vst.msk [vmem:[#allocation3 + $0x16a] sm:$0xff] %vm720, %v2365
      %2398 = vst.msk [vmem:[#allocation3 + $0x172] sm:$0xff] %vm720, %v2366
      %v2399 = vld [vmem:[#allocation3] sm:$0xff]
      %v2400 = vld [vmem:[#allocation3 + $0x8] sm:$0xff]
      %v2401 = vld [vmem:[#allocation3 + $0x18] sm:$0xff]
      %v2402 = vld [vmem:[#allocation3 + $0x20] sm:$0xff]
      %v2403 = vld [vmem:[#allocation3 + $0x30] sm:$0xff]
      %v2404 = vld [vmem:[#allocation3 + $0x38] sm:$0xff]
      %v2405 = vld [vmem:[#allocation3 + $0x48] sm:$0xff]
      %v2406 = vld [vmem:[#allocation3 + $0x50] sm:$0xff]
      %v2407 = vld [vmem:[#allocation3 + $0x60] sm:$0xff]
      %v2408 = vld [vmem:[#allocation3 + $0x68] sm:$0xff]
      %v2409 = vld [vmem:[#allocation3 + $0x78] sm:$0xff]
      %v2410 = vld [vmem:[#allocation3 + $0x80] sm:$0xff]
      %v2411 = vld [vmem:[#allocation3 + $0x90] sm:$0xff]
      %v2412 = vld [vmem:[#allocation3 + $0x98] sm:$0xff]
      %v2413 = vld [vmem:[#allocation3 + $0xa8] sm:$0xff]
      %v2414 = vld [vmem:[#allocation3 + $0xb0] sm:$0xff]
      %v2415 = vld [vmem:[#allocation3 + $0xc0] sm:$0xff]
      %v2416 = vld [vmem:[#allocation3 + $0xc8] sm:$0xff]
      %v2417 = vld [vmem:[#allocation3 + $0xd8] sm:$0xff]
      %v2418 = vld [vmem:[#allocation3 + $0xe0] sm:$0xff]
      %v2419 = vld [vmem:[#allocation3 + $0xf0] sm:$0xff]
      %v2420 = vld [vmem:[#allocation3 + $0xf8] sm:$0xff]
      %v2421 = vld [vmem:[#allocation3 + $0x108] sm:$0xff]
      %v2422 = vld [vmem:[#allocation3 + $0x110] sm:$0xff]
      %v2423 = vld [vmem:[#allocation3 + $0x120] sm:$0xff]
      %v2424 = vld [vmem:[#allocation3 + $0x128] sm:$0xff]
      %v2425 = vld [vmem:[#allocation3 + $0x138] sm:$0xff]
      %v2426 = vld [vmem:[#allocation3 + $0x140] sm:$0xff]
      %v2427 = vld [vmem:[#allocation3 + $0x150] sm:$0xff]
      %v2428 = vld [vmem:[#allocation3 + $0x158] sm:$0xff]
      %v2429 = vld [vmem:[#allocation3 + $0x168] sm:$0xff]
      %v2430 = vld [vmem:[#allocation3 + $0x170] sm:$0xff]
      %v2431 = vld [vmem:[#allocation3 + $0x1] sm:$0xff]
      %v2432 = vld [vmem:[#allocation3 + $0x9] sm:$0xff]
      %v2433 = vld [vmem:[#allocation3 + $0x19] sm:$0xff]
      %v2434 = vld [vmem:[#allocation3 + $0x21] sm:$0xff]
      %v2435 = vld [vmem:[#allocation3 + $0x31] sm:$0xff]
      %v2436 = vld [vmem:[#allocation3 + $0x39] sm:$0xff]
      %v2437 = vld [vmem:[#allocation3 + $0x49] sm:$0xff]
      %v2438 = vld [vmem:[#allocation3 + $0x51] sm:$0xff]
      %v2439 = vld [vmem:[#allocation3 + $0x61] sm:$0xff]
      %v2440 = vld [vmem:[#allocation3 + $0x69] sm:$0xff]
      %v2441 = vld [vmem:[#allocation3 + $0x79] sm:$0xff]
      %v2442 = vld [vmem:[#allocation3 + $0x81] sm:$0xff]
      %v2443 = vld [vmem:[#allocation3 + $0x91] sm:$0xff]
      %v2444 = vld [vmem:[#allocation3 + $0x99] sm:$0xff]
      %v2445 = vld [vmem:[#allocation3 + $0xa9] sm:$0xff]
      %v2446 = vld [vmem:[#allocation3 + $0xb1] sm:$0xff]
      %v2447 = vld [vmem:[#allocation3 + $0xc1] sm:$0xff]
      %v2448 = vld [vmem:[#allocation3 + $0xc9] sm:$0xff]
      %v2449 = vld [vmem:[#allocation3 + $0xd9] sm:$0xff]
      %v2450 = vld [vmem:[#allocation3 + $0xe1] sm:$0xff]
      %v2451 = vld [vmem:[#allocation3 + $0xf1] sm:$0xff]
      %v2452 = vld [vmem:[#allocation3 + $0xf9] sm:$0xff]
      %v2453 = vld [vmem:[#allocation3 + $0x109] sm:$0xff]
      %v2454 = vld [vmem:[#allocation3 + $0x111] sm:$0xff]
      %v2455 = vld [vmem:[#allocation3 + $0x121] sm:$0xff]
      %v2456 = vld [vmem:[#allocation3 + $0x129] sm:$0xff]
      %v2457 = vld [vmem:[#allocation3 + $0x139] sm:$0xff]
      %v2458 = vld [vmem:[#allocation3 + $0x141] sm:$0xff]
      %v2459 = vld [vmem:[#allocation3 + $0x151] sm:$0xff]
      %v2460 = vld [vmem:[#allocation3 + $0x159] sm:$0xff]
      %v2461 = vld [vmem:[#allocation3 + $0x169] sm:$0xff]
      %v2462 = vld [vmem:[#allocation3 + $0x171] sm:$0xff]
      %v2463 = vld [vmem:[#allocation3 + $0x2] sm:$0xff]
      %v2464 = vld [vmem:[#allocation3 + $0xa] sm:$0xff]
      %v2465 = vld [vmem:[#allocation3 + $0x1a] sm:$0xff]
      %v2466 = vld [vmem:[#allocation3 + $0x22] sm:$0xff]
      %v2467 = vld [vmem:[#allocation3 + $0x32] sm:$0xff]
      %v2468 = vld [vmem:[#allocation3 + $0x3a] sm:$0xff]
      %v2469 = vld [vmem:[#allocation3 + $0x4a] sm:$0xff]
      %v2470 = vld [vmem:[#allocation3 + $0x52] sm:$0xff]
      %v2471 = vld [vmem:[#allocation3 + $0x62] sm:$0xff]
      %v2472 = vld [vmem:[#allocation3 + $0x6a] sm:$0xff]
      %v2473 = vld [vmem:[#allocation3 + $0x7a] sm:$0xff]
      %v2474 = vld [vmem:[#allocation3 + $0x82] sm:$0xff]
      %v2475 = vld [vmem:[#allocation3 + $0x92] sm:$0xff]
      %v2476 = vld [vmem:[#allocation3 + $0x9a] sm:$0xff]
      %v2477 = vld [vmem:[#allocation3 + $0xaa] sm:$0xff]
      %v2478 = vld [vmem:[#allocation3 + $0xb2] sm:$0xff]
      %v2479 = vld [vmem:[#allocation3 + $0xc2] sm:$0xff]
      %v2480 = vld [vmem:[#allocation3 + $0xca] sm:$0xff]
      %v2481 = vld [vmem:[#allocation3 + $0xda] sm:$0xff]
      %v2482 = vld [vmem:[#allocation3 + $0xe2] sm:$0xff]
      %v2483 = vld [vmem:[#allocation3 + $0xf2] sm:$0xff]
      %v2484 = vld [vmem:[#allocation3 + $0xfa] sm:$0xff]
      %v2485 = vld [vmem:[#allocation3 + $0x10a] sm:$0xff]
      %v2486 = vld [vmem:[#allocation3 + $0x112] sm:$0xff]
      %v2487 = vld [vmem:[#allocation3 + $0x122] sm:$0xff]
      %v2488 = vld [vmem:[#allocation3 + $0x12a] sm:$0xff]
      %v2489 = vld [vmem:[#allocation3 + $0x13a] sm:$0xff]
      %v2490 = vld [vmem:[#allocation3 + $0x142] sm:$0xff]
      %v2491 = vld [vmem:[#allocation3 + $0x152] sm:$0xff]
      %v2492 = vld [vmem:[#allocation3 + $0x15a] sm:$0xff]
      %v2493 = vld [vmem:[#allocation3 + $0x16a] sm:$0xff]
      %v2494 = vld [vmem:[#allocation3 + $0x172] sm:$0xff]
      %v2495 = vld [vmem:[#allocation3 + $0x3] sm:$0xff]
      %v2496 = vld [vmem:[#allocation3 + $0xb] sm:$0xff]
      %v2497 = vld [vmem:[#allocation3 + $0x1b] sm:$0xff]
      %v2498 = vld [vmem:[#allocation3 + $0x23] sm:$0xff]
      %v2499 = vld [vmem:[#allocation3 + $0x33] sm:$0xff]
      %v2500 = vld [vmem:[#allocation3 + $0x3b] sm:$0xff]
      %v2501 = vld [vmem:[#allocation3 + $0x4b] sm:$0xff]
      %v2502 = vld [vmem:[#allocation3 + $0x53] sm:$0xff]
      %v2503 = vld [vmem:[#allocation3 + $0x63] sm:$0xff]
      %v2504 = vld [vmem:[#allocation3 + $0x6b] sm:$0xff]
      %v2505 = vld [vmem:[#allocation3 + $0x7b] sm:$0xff]
      %v2506 = vld [vmem:[#allocation3 + $0x83] sm:$0xff]
      %v2507 = vld [vmem:[#allocation3 + $0x93] sm:$0xff]
      %v2508 = vld [vmem:[#allocation3 + $0x9b] sm:$0xff]
      %v2509 = vld [vmem:[#allocation3 + $0xab] sm:$0xff]
      %v2510 = vld [vmem:[#allocation3 + $0xb3] sm:$0xff]
      %v2511 = vld [vmem:[#allocation3 + $0xc3] sm:$0xff]
      %v2512 = vld [vmem:[#allocation3 + $0xcb] sm:$0xff]
      %v2513 = vld [vmem:[#allocation3 + $0xdb] sm:$0xff]
      %v2514 = vld [vmem:[#allocation3 + $0xe3] sm:$0xff]
      %v2515 = vld [vmem:[#allocation3 + $0xf3] sm:$0xff]
      %v2516 = vld [vmem:[#allocation3 + $0xfb] sm:$0xff]
      %v2517 = vld [vmem:[#allocation3 + $0x10b] sm:$0xff]
      %v2518 = vld [vmem:[#allocation3 + $0x113] sm:$0xff]
      %v2519 = vld [vmem:[#allocation3 + $0x123] sm:$0xff]
      %v2520 = vld [vmem:[#allocation3 + $0x12b] sm:$0xff]
      %v2521 = vld [vmem:[#allocation3 + $0x13b] sm:$0xff]
      %v2522 = vld [vmem:[#allocation3 + $0x143] sm:$0xff]
      %v2523 = vld [vmem:[#allocation3 + $0x153] sm:$0xff]
      %v2524 = vld [vmem:[#allocation3 + $0x15b] sm:$0xff]
      %v2525 = vld [vmem:[#allocation3 + $0x16b] sm:$0xff]
      %v2526 = vld [vmem:[#allocation3 + $0x173] sm:$0xff]
      %v2527 = vld [vmem:[#allocation3 + $0x4] sm:$0xff]
      %v2528 = vld [vmem:[#allocation3 + $0xc] sm:$0xff]
      %v2529 = vld [vmem:[#allocation3 + $0x1c] sm:$0xff]
      %v2530 = vld [vmem:[#allocation3 + $0x24] sm:$0xff]
      %v2531 = vld [vmem:[#allocation3 + $0x34] sm:$0xff]
      %v2532 = vld [vmem:[#allocation3 + $0x3c] sm:$0xff]
      %v2533 = vld [vmem:[#allocation3 + $0x4c] sm:$0xff]
      %v2534 = vld [vmem:[#allocation3 + $0x54] sm:$0xff]
      %v2535 = vld [vmem:[#allocation3 + $0x64] sm:$0xff]
      %v2536 = vld [vmem:[#allocation3 + $0x6c] sm:$0xff]
      %v2537 = vld [vmem:[#allocation3 + $0x7c] sm:$0xff]
      %v2538 = vld [vmem:[#allocation3 + $0x84] sm:$0xff]
      %v2539 = vld [vmem:[#allocation3 + $0x94] sm:$0xff]
      %v2540 = vld [vmem:[#allocation3 + $0x9c] sm:$0xff]
      %v2541 = vld [vmem:[#allocation3 + $0xac] sm:$0xff]
      %v2542 = vld [vmem:[#allocation3 + $0xb4] sm:$0xff]
      %v2543 = vld [vmem:[#allocation3 + $0xc4] sm:$0xff]
      %v2544 = vld [vmem:[#allocation3 + $0xcc] sm:$0xff]
      %v2545 = vld [vmem:[#allocation3 + $0xdc] sm:$0xff]
      %v2546 = vld [vmem:[#allocation3 + $0xe4] sm:$0xff]
      %v2547 = vld [vmem:[#allocation3 + $0xf4] sm:$0xff]
      %v2548 = vld [vmem:[#allocation3 + $0xfc] sm:$0xff]
      %v2549 = vld [vmem:[#allocation3 + $0x10c] sm:$0xff]
      %v2550 = vld [vmem:[#allocation3 + $0x114] sm:$0xff]
      %v2551 = vld [vmem:[#allocation3 + $0x124] sm:$0xff]
      %v2552 = vld [vmem:[#allocation3 + $0x12c] sm:$0xff]
      %v2553 = vld [vmem:[#allocation3 + $0x13c] sm:$0xff]
      %v2554 = vld [vmem:[#allocation3 + $0x144] sm:$0xff]
      %v2555 = vld [vmem:[#allocation3 + $0x154] sm:$0xff]
      %v2556 = vld [vmem:[#allocation3 + $0x15c] sm:$0xff]
      %v2557 = vld [vmem:[#allocation3 + $0x16c] sm:$0xff]
      %v2558 = vld [vmem:[#allocation3 + $0x174] sm:$0xff]
      %v2559 = vmax.f32 %v2399, %v2431
      %v2560 = vmax.f32 %v2400, %v2432
      %v2561 = vmax.f32 %v2401, %v2433
      %v2562 = vmax.f32 %v2402, %v2434
      %v2563 = vmax.f32 %v2403, %v2435
      %v2564 = vmax.f32 %v2404, %v2436
      %v2565 = vmax.f32 %v2405, %v2437
      %v2566 = vmax.f32 %v2406, %v2438
      %v2567 = vmax.f32 %v2407, %v2439
      %v2568 = vmax.f32 %v2408, %v2440
      %v2569 = vmax.f32 %v2409, %v2441
      %v2570 = vmax.f32 %v2410, %v2442
      %v2571 = vmax.f32 %v2411, %v2443
      %v2572 = vmax.f32 %v2412, %v2444
      %v2573 = vmax.f32 %v2413, %v2445
      %v2574 = vmax.f32 %v2414, %v2446
      %v2575 = vmax.f32 %v2415, %v2447
      %v2576 = vmax.f32 %v2416, %v2448
      %v2577 = vmax.f32 %v2417, %v2449
      %v2578 = vmax.f32 %v2418, %v2450
      %v2579 = vmax.f32 %v2419, %v2451
      %v2580 = vmax.f32 %v2420, %v2452
      %v2581 = vmax.f32 %v2421, %v2453
      %v2582 = vmax.f32 %v2422, %v2454
      %v2583 = vmax.f32 %v2423, %v2455
      %v2584 = vmax.f32 %v2424, %v2456
      %v2585 = vmax.f32 %v2425, %v2457
      %v2586 = vmax.f32 %v2426, %v2458
      %v2587 = vmax.f32 %v2427, %v2459
      %v2588 = vmax.f32 %v2428, %v2460
      %v2589 = vmax.f32 %v2429, %v2461
      %v2590 = vmax.f32 %v2430, %v2462
      %v2591 = vmax.f32 %v2463, %v2495
      %v2592 = vmax.f32 %v2464, %v2496
      %v2593 = vmax.f32 %v2465, %v2497
      %v2594 = vmax.f32 %v2466, %v2498
      %v2595 = vmax.f32 %v2467, %v2499
      %v2596 = vmax.f32 %v2468, %v2500
      %v2597 = vmax.f32 %v2469, %v2501
      %v2598 = vmax.f32 %v2470, %v2502
      %v2599 = vmax.f32 %v2471, %v2503
      %v2600 = vmax.f32 %v2472, %v2504
      %v2601 = vmax.f32 %v2473, %v2505
      %v2602 = vmax.f32 %v2474, %v2506
      %v2603 = vmax.f32 %v2475, %v2507
      %v2604 = vmax.f32 %v2476, %v2508
      %v2605 = vmax.f32 %v2477, %v2509
      %v2606 = vmax.f32 %v2478, %v2510
      %v2607 = vmax.f32 %v2479, %v2511
      %v2608 = vmax.f32 %v2480, %v2512
      %v2609 = vmax.f32 %v2481, %v2513
      %v2610 = vmax.f32 %v2482, %v2514
      %v2611 = vmax.f32 %v2483, %v2515
      %v2612 = vmax.f32 %v2484, %v2516
      %v2613 = vmax.f32 %v2485, %v2517
      %v2614 = vmax.f32 %v2486, %v2518
      %v2615 = vmax.f32 %v2487, %v2519
      %v2616 = vmax.f32 %v2488, %v2520
      %v2617 = vmax.f32 %v2489, %v2521
      %v2618 = vmax.f32 %v2490, %v2522
      %v2619 = vmax.f32 %v2491, %v2523
      %v2620 = vmax.f32 %v2492, %v2524
      %v2621 = vmax.f32 %v2493, %v2525
      %v2622 = vmax.f32 %v2494, %v2526
      %v2623 = vmax.f32 %v2559, %v2591
      %v2624 = vmax.f32 %v2560, %v2592
      %v2625 = vmax.f32 %v2561, %v2593
      %v2626 = vmax.f32 %v2562, %v2594
      %v2627 = vmax.f32 %v2563, %v2595
      %v2628 = vmax.f32 %v2564, %v2596
      %v2629 = vmax.f32 %v2565, %v2597
      %v2630 = vmax.f32 %v2566, %v2598
      %v2631 = vmax.f32 %v2567, %v2599
      %v2632 = vmax.f32 %v2568, %v2600
      %v2633 = vmax.f32 %v2569, %v2601
      %v2634 = vmax.f32 %v2570, %v2602
      %v2635 = vmax.f32 %v2571, %v2603
      %v2636 = vmax.f32 %v2572, %v2604
      %v2637 = vmax.f32 %v2573, %v2605
      %v2638 = vmax.f32 %v2574, %v2606
      %v2639 = vmax.f32 %v2575, %v2607
      %v2640 = vmax.f32 %v2576, %v2608
      %v2641 = vmax.f32 %v2577, %v2609
      %v2642 = vmax.f32 %v2578, %v2610
      %v2643 = vmax.f32 %v2579, %v2611
      %v2644 = vmax.f32 %v2580, %v2612
      %v2645 = vmax.f32 %v2581, %v2613
      %v2646 = vmax.f32 %v2582, %v2614
      %v2647 = vmax.f32 %v2583, %v2615
      %v2648 = vmax.f32 %v2584, %v2616
      %v2649 = vmax.f32 %v2585, %v2617
      %v2650 = vmax.f32 %v2586, %v2618
      %v2651 = vmax.f32 %v2587, %v2619
      %v2652 = vmax.f32 %v2588, %v2620
      %v2653 = vmax.f32 %v2589, %v2621
      %v2654 = vmax.f32 %v2590, %v2622
      %v2655 = vmax.f32 %v2623, %v2527
      %v2656 = vmax.f32 %v2624, %v2528
      %v2657 = vmax.f32 %v2625, %v2529
      %v2658 = vmax.f32 %v2626, %v2530
      %v2659 = vmax.f32 %v2627, %v2531
      %v2660 = vmax.f32 %v2628, %v2532
      %v2661 = vmax.f32 %v2629, %v2533
      %v2662 = vmax.f32 %v2630, %v2534
      %v2663 = vmax.f32 %v2631, %v2535
      %v2664 = vmax.f32 %v2632, %v2536
      %v2665 = vmax.f32 %v2633, %v2537
      %v2666 = vmax.f32 %v2634, %v2538
      %v2667 = vmax.f32 %v2635, %v2539
      %v2668 = vmax.f32 %v2636, %v2540
      %v2669 = vmax.f32 %v2637, %v2541
      %v2670 = vmax.f32 %v2638, %v2542
      %v2671 = vmax.f32 %v2639, %v2543
      %v2672 = vmax.f32 %v2640, %v2544
      %v2673 = vmax.f32 %v2641, %v2545
      %v2674 = vmax.f32 %v2642, %v2546
      %v2675 = vmax.f32 %v2643, %v2547
      %v2676 = vmax.f32 %v2644, %v2548
      %v2677 = vmax.f32 %v2645, %v2549
      %v2678 = vmax.f32 %v2646, %v2550
      %v2679 = vmax.f32 %v2647, %v2551
      %v2680 = vmax.f32 %v2648, %v2552
      %v2681 = vmax.f32 %v2649, %v2553
      %v2682 = vmax.f32 %v2650, %v2554
      %v2683 = vmax.f32 %v2651, %v2555
      %v2684 = vmax.f32 %v2652, %v2556
      %v2685 = vmax.f32 %v2653, %v2557
      %v2686 = vmax.f32 %v2654, %v2558
      %v2687 = vpack.c.bf16 %v689, %v688
      %v2688 = vpack.c.bf16 %v691, %v690
      %v2689 = vpack.c.bf16 %v693, %v692
      %v2690 = vpack.c.bf16 %v695, %v694
      %v2691 = vpack.c.bf16 %v697, %v696
      %v2692 = vpack.c.bf16 %v699, %v698
      %v2693 = vpack.c.bf16 %v701, %v700
      %v2694 = vpack.c.bf16 %v703, %v702
      %v2695 = vpack.c.bf16 %v705, %v704
      %v2696 = vpack.c.bf16 %v707, %v706
      %v2697 = vpack.c.bf16 %v709, %v708
      %v2698 = vpack.c.bf16 %v711, %v710
      %v2699 = vpack.c.bf16 %v713, %v712
      %v2700 = vpack.c.bf16 %v715, %v714
      %v2701 = vpack.c.bf16 %v717, %v716
      %v2702 = vpack.c.bf16 %v719, %v718
      %v2703 = vld [vmem:[%s3] sm:$0x3]
      %v2704 = vpack.c.bf16 %v1376, %v1375
      %v2705 = vpack.c.bf16 %v1378, %v1377
      %v2706 = vpack.c.bf16 %v1380, %v1379
      %v2707 = vpack.c.bf16 %v1382, %v1381
      %v2708 = vpack.c.bf16 %v1384, %v1383
      %v2709 = vpack.c.bf16 %v1386, %v1385
      %v2710 = vpack.c.bf16 %v1388, %v1387
      %v2711 = vpack.c.bf16 %v1390, %v1389
      %v2712 = vpack.c.bf16 %v1392, %v1391
      %v2713 = vpack.c.bf16 %v1394, %v1393
      %v2714 = vpack.c.bf16 %v1396, %v1395
      %v2715 = vpack.c.bf16 %v1398, %v1397
      %v2716 = vpack.c.bf16 %v1400, %v1399
      %v2717 = vpack.c.bf16 %v1402, %v1401
      %v2718 = vpack.c.bf16 %v1404, %v1403
      %v2719 = vpack.c.bf16 %v1406, %v1405
      %s2720 = scalar_lea.vmem %s3, 2
      %v2721 = vld [vmem:[%s2720] sm:$0x3]
      %v2723 = vsel %vm720, %v2704, 0
      %v2726 = vsel %vm720, %v2705, 0
      %v2729 = vsel %vm720, %v2706, 0
      %v2732 = vsel %vm720, %v2707, 0
      %v2735 = vsel %vm720, %v2708, 0
      %v2738 = vsel %vm720, %v2709, 0
      %v2741 = vsel %vm720, %v2710, 0
      %v2744 = vsel %vm720, %v2711, 0
      %v2747 = vsel %vm720, %v2712, 0
      %v2750 = vsel %vm720, %v2713, 0
      %v2753 = vsel %vm720, %v2714, 0
      %v2756 = vsel %vm720, %v2715, 0
      %v2759 = vsel %vm720, %v2716, 0
      %v2762 = vsel %vm720, %v2717, 0
      %v2765 = vsel %vm720, %v2718, 0
      %v2768 = vsel %vm720, %v2719, 0
      %vm2770 = vcmask 1041408
      %v2772 = vsel %vm2770, %v2721, 0
      %2774 = vmatprep.subr.bf16.mxu0 0
      %2775 = vmatpush1.bf16.msra.mxu0 %v2772
      %2776 = vmatprep.subr.bf16.mxu0 0
      %2777 = vmatpush1.bf16.msra.mxu0 0
      %2778 = vmatprep.subr.bf16.mxu0 0
      %2779 = vmatpush1.bf16.msra.mxu0 0
      %2780 = vmatprep.subr.bf16.mxu0 0
      %2781 = vmatpush1.bf16.msra.mxu0 0
      %2782 = vmatprep.subr.bf16.mxu0 0
      %2783 = vmatpush1.bf16.msra.mxu0 0
      %2784 = vmatprep.subr.bf16.mxu0 0
      %2785 = vmatpush1.bf16.msra.mxu0 0
      %2786 = vmatprep.subr.bf16.mxu0 0
      %2787 = vmatpush1.bf16.msra.mxu0 0
      %2788 = vmatprep.subr.bf16.mxu0 0
      %2789 = vmatpush1.bf16.msra.mxu0 0
      %2790 = vmatprep.subr.bf16.mxu0 0
      %2791 = vmatpush1.bf16.msra.mxu0 0
      %2792 = vmatprep.subr.bf16.mxu0 0
      %2793 = vmatpush1.bf16.msra.mxu0 0
      %2794 = vmatprep.subr.bf16.mxu0 0
      %2795 = vmatpush1.bf16.msra.mxu0 0
      %2796 = vmatprep.subr.bf16.mxu0 0
      %2797 = vmatpush1.bf16.msra.mxu0 0
      %2798 = vmatprep.subr.bf16.mxu0 0
      %2799 = vmatpush1.bf16.msra.mxu0 0
      %2800 = vmatprep.subr.bf16.mxu0 0
      %2801 = vmatpush1.bf16.msra.mxu0 0
      %2802 = vmatprep.subr.bf16.mxu0 0
      %2803 = vmatpush1.bf16.msra.mxu0 0
      %2804 = vmatprep.subr.bf16.mxu0 0
      %2805 = vmatpush1.bf16.msra.mxu0 0
      %2806 = vmatprep.mubr.bf16.mxu0 0
      %2807 = vmatmul.mubr.bf16.gmra.mrb[0].mxu0 %v2723
      %v2808 = vpop.f32.mrb[0].mxu0
      %v2809 = vadd.f32 0.0, %v2808
      %v2810 = vpop.f32.mrb[0].mxu0
      %v2811 = vpop.f32.mrb[0].mxu0
      %v2812 = vadd.f32 0.0, %v2811
      %v2813 = vpop.f32.mrb[0].mxu0
      %2814 = vmatprep.mubr.bf16.mxu0 0
      %2815 = vmatmul.mubr.bf16.gmra.mrb[0].mxu0 %v2726
      %v2816 = vpop.f32.mrb[0].mxu0
      %v2817 = vadd.f32 0.0, %v2816
      %v2818 = vpop.f32.mrb[0].mxu0
      %v2819 = vpop.f32.mrb[0].mxu0
      %v2820 = vadd.f32 0.0, %v2819
      %v2821 = vpop.f32.mrb[0].mxu0
      %2822 = vmatprep.mubr.bf16.mxu0 0
      %2823 = vmatmul.mubr.bf16.gmra.mrb[0].mxu0 %v2729
      %v2824 = vpop.f32.mrb[0].mxu0
      %v2825 = vadd.f32 0.0, %v2824
      %v2826 = vpop.f32.mrb[0].mxu0
      %v2827 = vpop.f32.mrb[0].mxu0
      %v2828 = vadd.f32 0.0, %v2827
      %v2829 = vpop.f32.mrb[0].mxu0
      %2830 = vmatprep.mubr.bf16.mxu0 0
      %2831 = vmatmul.mubr.bf16.gmra.mrb[0].mxu0 %v2732
      %v2832 = vpop.f32.mrb[0].mxu0
      %v2833 = vadd.f32 0.0, %v2832
      %v2834 = vpop.f32.mrb[0].mxu0
      %v2835 = vpop.f32.mrb[0].mxu0
      %v2836 = vadd.f32 0.0, %v2835
      %v2837 = vpop.f32.mrb[0].mxu0
      %2838 = vmatprep.mubr.bf16.mxu0 0
      %2839 = vmatmul.mubr.bf16.gmra.mrb[0].mxu0 %v2735
      %v2840 = vpop.f32.mrb[0].mxu0
      %v2841 = vadd.f32 0.0, %v2840
      %v2842 = vpop.f32.mrb[0].mxu0
      %v2843 = vpop.f32.mrb[0].mxu0
      %v2844 = vadd.f32 0.0, %v2843
      %v2845 = vpop.f32.mrb[0].mxu0
      %2846 = vmatprep.mubr.bf16.mxu0 0
      %2847 = vmatmul.mubr.bf16.gmra.mrb[0].mxu0 %v2738
      %v2848 = vpop.f32.mrb[0].mxu0
      %v2849 = vadd.f32 0.0, %v2848
      %v2850 = vpop.f32.mrb[0].mxu0
      %v2851 = vpop.f32.mrb[0].mxu0
      %v2852 = vadd.f32 0.0, %v2851
      %v2853 = vpop.f32.mrb[0].mxu0
      %2854 = vmatprep.mubr.bf16.mxu0 0
      %2855 = vmatmul.mubr.bf16.gmra.mrb[0].mxu0 %v2741
      %v2856 = vpop.f32.mrb[0].mxu0
      %v2857 = vadd.f32 0.0, %v2856
      %v2858 = vpop.f32.mrb[0].mxu0
      %v2859 = vpop.f32.mrb[0].mxu0
      %v2860 = vadd.f32 0.0, %v2859
      %v2861 = vpop.f32.mrb[0].mxu0
      %2862 = vmatprep.mubr.bf16.mxu0 0
      %2863 = vmatmul.mubr.bf16.gmra.mrb[0].mxu0 %v2744
      %v2864 = vpop.f32.mrb[0].mxu0
      %v2865 = vadd.f32 0.0, %v2864
      %v2866 = vpop.f32.mrb[0].mxu0
      %v2867 = vpop.f32.mrb[0].mxu0
      %v2868 = vadd.f32 0.0, %v2867
      %v2869 = vpop.f32.mrb[0].mxu0
      %2870 = vmatprep.mubr.bf16.mxu0 0
      %2871 = vmatmul.mubr.bf16.gmra.mrb[0].mxu0 %v2747
      %v2872 = vpop.f32.mrb[0].mxu0
      %v2873 = vadd.f32 0.0, %v2872
      %v2874 = vpop.f32.mrb[0].mxu0
      %v2875 = vpop.f32.mrb[0].mxu0
      %v2876 = vadd.f32 0.0, %v2875
      %v2877 = vpop.f32.mrb[0].mxu0
      %2878 = vmatprep.mubr.bf16.mxu0 0
      %2879 = vmatmul.mubr.bf16.gmra.mrb[0].mxu0 %v2750
      %v2880 = vpop.f32.mrb[0].mxu0
      %v2881 = vadd.f32 0.0, %v2880
      %v2882 = vpop.f32.mrb[0].mxu0
      %v2883 = vpop.f32.mrb[0].mxu0
      %v2884 = vadd.f32 0.0, %v2883
      %v2885 = vpop.f32.mrb[0].mxu0
      %2886 = vmatprep.mubr.bf16.mxu0 0
      %2887 = vmatmul.mubr.bf16.gmra.mrb[0].mxu0 %v2753
      %v2888 = vpop.f32.mrb[0].mxu0
      %v2889 = vadd.f32 0.0, %v2888
      %v2890 = vpop.f32.mrb[0].mxu0
      %v2891 = vpop.f32.mrb[0].mxu0
      %v2892 = vadd.f32 0.0, %v2891
      %v2893 = vpop.f32.mrb[0].mxu0
      %2894 = vmatprep.mubr.bf16.mxu0 0
      %2895 = vmatmul.mubr.bf16.gmra.mrb[0].mxu0 %v2756
      %v2896 = vpop.f32.mrb[0].mxu0
      %v2897 = vadd.f32 0.0, %v2896
      %v2898 = vpop.f32.mrb[0].mxu0
      %v2899 = vpop.f32.mrb[0].mxu0
      %v2900 = vadd.f32 0.0, %v2899
      %v2901 = vpop.f32.mrb[0].mxu0
      %2902 = vmatprep.mubr.bf16.mxu0 0
      %2903 = vmatmul.mubr.bf16.gmra.mrb[0].mxu0 %v2759
      %v2904 = vpop.f32.mrb[0].mxu0
      %v2905 = vadd.f32 0.0, %v2904
      %v2906 = vpop.f32.mrb[0].mxu0
      %v2907 = vpop.f32.mrb[0].mxu0
      %v2908 = vadd.f32 0.0, %v2907
      %v2909 = vpop.f32.mrb[0].mxu0
      %2910 = vmatprep.mubr.bf16.mxu0 0
      %2911 = vmatmul.mubr.bf16.gmra.mrb[0].mxu0 %v2762
      %v2912 = vpop.f32.mrb[0].mxu0
      %v2913 = vadd.f32 0.0, %v2912
      %v2914 = vpop.f32.mrb[0].mxu0
      %v2915 = vpop.f32.mrb[0].mxu0
      %v2916 = vadd.f32 0.0, %v2915
      %v2917 = vpop.f32.mrb[0].mxu0
      %2918 = vmatprep.mubr.bf16.mxu0 0
      %2919 = vmatmul.mubr.bf16.gmra.mrb[0].mxu0 %v2765
      %v2920 = vpop.f32.mrb[0].mxu0
      %v2921 = vadd.f32 0.0, %v2920
      %v2922 = vpop.f32.mrb[0].mxu0
      %v2923 = vpop.f32.mrb[0].mxu0
      %v2924 = vadd.f32 0.0, %v2923
      %v2925 = vpop.f32.mrb[0].mxu0
      %2926 = vmatprep.mubr.bf16.mxu0 0
      %2927 = vmatmul.mubr.bf16.gmra.mrb[0].mxu0 %v2768
      %v2928 = vpop.f32.mrb[0].mxu0
      %v2929 = vadd.f32 0.0, %v2928
      %v2930 = vpop.f32.mrb[0].mxu0
      %v2931 = vpop.f32.mrb[0].mxu0
      %v2932 = vadd.f32 0.0, %v2931
      %v2933 = vpop.f32.mrb[0].mxu0
      %2934 = vdwg.mxu0
      %v2936 = vsel %vm720, %v2687, 0
      %v2939 = vsel %vm720, %v2688, 0
      %v2942 = vsel %vm720, %v2689, 0
      %v2945 = vsel %vm720, %v2690, 0
      %v2948 = vsel %vm720, %v2691, 0
      %v2951 = vsel %vm720, %v2692, 0
      %v2954 = vsel %vm720, %v2693, 0
      %v2957 = vsel %vm720, %v2694, 0
      %v2960 = vsel %vm720, %v2695, 0
      %v2963 = vsel %vm720, %v2696, 0
      %v2966 = vsel %vm720, %v2697, 0
      %v2969 = vsel %vm720, %v2698, 0
      %v2972 = vsel %vm720, %v2699, 0
      %v2975 = vsel %vm720, %v2700, 0
      %v2978 = vsel %vm720, %v2701, 0
      %v2981 = vsel %vm720, %v2702, 0
      %v2984 = vsel %vm2770, %v2703, 0
      %2986 = vmatprep.subr.bf16.mxu0 0
      %2987 = vmatpush1.bf16.msra.mxu0 %v2984
      %2988 = vmatprep.subr.bf16.mxu0 0
      %2989 = vmatpush1.bf16.msra.mxu0 0
      %2990 = vmatprep.subr.bf16.mxu0 0
      %2991 = vmatpush1.bf16.msra.mxu0 0
      %2992 = vmatprep.subr.bf16.mxu0 0
      %2993 = vmatpush1.bf16.msra.mxu0 0
      %2994 = vmatprep.subr.bf16.mxu0 0
      %2995 = vmatpush1.bf16.msra.mxu0 0
      %2996 = vmatprep.subr.bf16.mxu0 0
      %2997 = vmatpush1.bf16.msra.mxu0 0
      %2998 = vmatprep.subr.bf16.mxu0 0
      %2999 = vmatpush1.bf16.msra.mxu0 0
      %3000 = vmatprep.subr.bf16.mxu0 0
      %3001 = vmatpush1.bf16.msra.mxu0 0
      %3002 = vmatprep.subr.bf16.mxu0 0
      %3003 = vmatpush1.bf16.msra.mxu0 0
      %3004 = vmatprep.subr.bf16.mxu0 0
      %3005 = vmatpush1.bf16.msra.mxu0 0
      %3006 = vmatprep.subr.bf16.mxu0 0
      %3007 = vmatpush1.bf16.msra.mxu0 0
      %3008 = vmatprep.subr.bf16.mxu0 0
      %3009 = vmatpush1.bf16.msra.mxu0 0
      %3010 = vmatprep.subr.bf16.mxu0 0
      %3011 = vmatpush1.bf16.msra.mxu0 0
      %3012 = vmatprep.subr.bf16.mxu0 0
      %3013 = vmatpush1.bf16.msra.mxu0 0
      %3014 = vmatprep.subr.bf16.mxu0 0
      %3015 = vmatpush1.bf16.msra.mxu0 0
      %3016 = vmatprep.subr.bf16.mxu0 0
      %3017 = vmatpush1.bf16.msra.mxu0 0
      %3018 = vmatprep.mubr.bf16.mxu0 0
      %3019 = vmatmul.mubr.bf16.gmra.mrb[0].mxu0 %v2936
      %v3020 = vpop.f32.mrb[0].mxu0
      %v3021 = vadd.f32 %v2809, %v3020
      %v3022 = vpop.f32.mrb[0].mxu0
      %v3023 = vpop.f32.mrb[0].mxu0
      %v3024 = vadd.f32 %v2812, %v3023
      %v3025 = vpop.f32.mrb[0].mxu0
      %3026 = vmatprep.mubr.bf16.mxu0 0
      %3027 = vmatmul.mubr.bf16.gmra.mrb[0].mxu0 %v2939
      %v3028 = vpop.f32.mrb[0].mxu0
      %v3029 = vadd.f32 %v2817, %v3028
      %v3030 = vpop.f32.mrb[0].mxu0
      %v3031 = vpop.f32.mrb[0].mxu0
      %v3032 = vadd.f32 %v2820, %v3031
      %v3033 = vpop.f32.mrb[0].mxu0
      %3034 = vmatprep.mubr.bf16.mxu0 0
      %3035 = vmatmul.mubr.bf16.gmra.mrb[0].mxu0 %v2942
      %v3036 = vpop.f32.mrb[0].mxu0
      %v3037 = vadd.f32 %v2825, %v3036
      %v3038 = vpop.f32.mrb[0].mxu0
      %v3039 = vpop.f32.mrb[0].mxu0
      %v3040 = vadd.f32 %v2828, %v3039
      %v3041 = vpop.f32.mrb[0].mxu0
      %3042 = vmatprep.mubr.bf16.mxu0 0
      %3043 = vmatmul.mubr.bf16.gmra.mrb[0].mxu0 %v2945
      %v3044 = vpop.f32.mrb[0].mxu0
      %v3045 = vadd.f32 %v2833, %v3044
      %v3046 = vpop.f32.mrb[0].mxu0
      %v3047 = vpop.f32.mrb[0].mxu0
      %v3048 = vadd.f32 %v2836, %v3047
      %v3049 = vpop.f32.mrb[0].mxu0
      %3050 = vmatprep.mubr.bf16.mxu0 0
      %3051 = vmatmul.mubr.bf16.gmra.mrb[0].mxu0 %v2948
      %v3052 = vpop.f32.mrb[0].mxu0
      %v3053 = vadd.f32 %v2841, %v3052
      %v3054 = vpop.f32.mrb[0].mxu0
      %v3055 = vpop.f32.mrb[0].mxu0
      %v3056 = vadd.f32 %v2844, %v3055
      %v3057 = vpop.f32.mrb[0].mxu0
      %3058 = vmatprep.mubr.bf16.mxu0 0
      %3059 = vmatmul.mubr.bf16.gmra.mrb[0].mxu0 %v2951
      %v3060 = vpop.f32.mrb[0].mxu0
      %v3061 = vadd.f32 %v2849, %v3060
      %v3062 = vpop.f32.mrb[0].mxu0
      %v3063 = vpop.f32.mrb[0].mxu0
      %v3064 = vadd.f32 %v2852, %v3063
      %v3065 = vpop.f32.mrb[0].mxu0
      %3066 = vmatprep.mubr.bf16.mxu0 0
      %3067 = vmatmul.mubr.bf16.gmra.mrb[0].mxu0 %v2954
      %v3068 = vpop.f32.mrb[0].mxu0
      %v3069 = vadd.f32 %v2857, %v3068
      %v3070 = vpop.f32.mrb[0].mxu0
      %v3071 = vpop.f32.mrb[0].mxu0
      %v3072 = vadd.f32 %v2860, %v3071
      %v3073 = vpop.f32.mrb[0].mxu0
      %3074 = vmatprep.mubr.bf16.mxu0 0
      %3075 = vmatmul.mubr.bf16.gmra.mrb[0].mxu0 %v2957
      %v3076 = vpop.f32.mrb[0].mxu0
      %v3077 = vadd.f32 %v2865, %v3076
      %v3078 = vpop.f32.mrb[0].mxu0
      %v3079 = vpop.f32.mrb[0].mxu0
      %v3080 = vadd.f32 %v2868, %v3079
      %v3081 = vpop.f32.mrb[0].mxu0
      %3082 = vmatprep.mubr.bf16.mxu0 0
      %3083 = vmatmul.mubr.bf16.gmra.mrb[0].mxu0 %v2960
      %v3084 = vpop.f32.mrb[0].mxu0
      %v3085 = vadd.f32 %v2873, %v3084
      %v3086 = vpop.f32.mrb[0].mxu0
      %v3087 = vpop.f32.mrb[0].mxu0
      %v3088 = vadd.f32 %v2876, %v3087
      %v3089 = vpop.f32.mrb[0].mxu0
      %3090 = vmatprep.mubr.bf16.mxu0 0
      %3091 = vmatmul.mubr.bf16.gmra.mrb[0].mxu0 %v2963
      %v3092 = vpop.f32.mrb[0].mxu0
      %v3093 = vadd.f32 %v2881, %v3092
      %v3094 = vpop.f32.mrb[0].mxu0
      %v3095 = vpop.f32.mrb[0].mxu0
      %v3096 = vadd.f32 %v2884, %v3095
      %v3097 = vpop.f32.mrb[0].mxu0
      %3098 = vmatprep.mubr.bf16.mxu0 0
      %3099 = vmatmul.mubr.bf16.gmra.mrb[0].mxu0 %v2966
      %v3100 = vpop.f32.mrb[0].mxu0
      %v3101 = vadd.f32 %v2889, %v3100
      %v3102 = vpop.f32.mrb[0].mxu0
      %v3103 = vpop.f32.mrb[0].mxu0
      %v3104 = vadd.f32 %v2892, %v3103
      %v3105 = vpop.f32.mrb[0].mxu0
      %3106 = vmatprep.mubr.bf16.mxu0 0
      %3107 = vmatmul.mubr.bf16.gmra.mrb[0].mxu0 %v2969
      %v3108 = vpop.f32.mrb[0].mxu0
      %v3109 = vadd.f32 %v2897, %v3108
      %v3110 = vpop.f32.mrb[0].mxu0
      %v3111 = vpop.f32.mrb[0].mxu0
      %v3112 = vadd.f32 %v2900, %v3111
      %v3113 = vpop.f32.mrb[0].mxu0
      %3114 = vmatprep.mubr.bf16.mxu0 0
      %3115 = vmatmul.mubr.bf16.gmra.mrb[0].mxu0 %v2972
      %v3116 = vpop.f32.mrb[0].mxu0
      %v3117 = vadd.f32 %v2905, %v3116
      %v3118 = vpop.f32.mrb[0].mxu0
      %v3119 = vpop.f32.mrb[0].mxu0
      %v3120 = vadd.f32 %v2908, %v3119
      %v3121 = vpop.f32.mrb[0].mxu0
      %3122 = vmatprep.mubr.bf16.mxu0 0
      %3123 = vmatmul.mubr.bf16.gmra.mrb[0].mxu0 %v2975
      %v3124 = vpop.f32.mrb[0].mxu0
      %v3125 = vadd.f32 %v2913, %v3124
      %v3126 = vpop.f32.mrb[0].mxu0
      %v3127 = vpop.f32.mrb[0].mxu0
      %v3128 = vadd.f32 %v2916, %v3127
      %v3129 = vpop.f32.mrb[0].mxu0
      %3130 = vmatprep.mubr.bf16.mxu0 0
      %3131 = vmatmul.mubr.bf16.gmra.mrb[0].mxu0 %v2978
      %v3132 = vpop.f32.mrb[0].mxu0
      %v3133 = vadd.f32 %v2921, %v3132
      %v3134 = vpop.f32.mrb[0].mxu0
      %v3135 = vpop.f32.mrb[0].mxu0
      %v3136 = vadd.f32 %v2924, %v3135
      %v3137 = vpop.f32.mrb[0].mxu0
      %3138 = vmatprep.mubr.bf16.mxu0 0
      %3139 = vmatmul.mubr.bf16.gmra.mrb[0].mxu0 %v2981
      %v3140 = vpop.f32.mrb[0].mxu0
      %v3141 = vadd.f32 %v2929, %v3140
      %v3142 = vpop.f32.mrb[0].mxu0
      %v3143 = vpop.f32.mrb[0].mxu0
      %v3144 = vadd.f32 %v2932, %v3143
      %v3145 = vpop.f32.mrb[0].mxu0
      %3146 = vdwg.mxu0
      %v3147 = vpack.c.bf16 %v2016, %v2015
      %v3148 = vpack.c.bf16 %v2018, %v2017
      %v3149 = vpack.c.bf16 %v2020, %v2019
      %v3150 = vpack.c.bf16 %v2022, %v2021
      %v3151 = vpack.c.bf16 %v2024, %v2023
      %v3152 = vpack.c.bf16 %v2026, %v2025
      %v3153 = vpack.c.bf16 %v2028, %v2027
      %v3154 = vpack.c.bf16 %v2030, %v2029
      %v3155 = vpack.c.bf16 %v2032, %v2031
      %v3156 = vpack.c.bf16 %v2034, %v2033
      %v3157 = vpack.c.bf16 %v2036, %v2035
      %v3158 = vpack.c.bf16 %v2038, %v2037
      %v3159 = vpack.c.bf16 %v2040, %v2039
      %v3160 = vpack.c.bf16 %v2042, %v2041
      %v3161 = vpack.c.bf16 %v2044, %v2043
      %v3162 = vpack.c.bf16 %v2046, %v2045
      %s3163 = scalar_lea.vmem %s3, 4
      %v3164 = vld [vmem:[%s3163] sm:$0x3]
      %v3166 = vsel %vm720, %v3147, 0
      %v3169 = vsel %vm720, %v3148, 0
      %v3172 = vsel %vm720, %v3149, 0
      %v3175 = vsel %vm720, %v3150, 0
      %v3178 = vsel %vm720, %v3151, 0
      %v3181 = vsel %vm720, %v3152, 0
      %v3184 = vsel %vm720, %v3153, 0
      %v3187 = vsel %vm720, %v3154, 0
      %v3190 = vsel %vm720, %v3155, 0
      %v3193 = vsel %vm720, %v3156, 0
      %v3196 = vsel %vm720, %v3157, 0
      %v3199 = vsel %vm720, %v3158, 0
      %v3202 = vsel %vm720, %v3159, 0
      %v3205 = vsel %vm720, %v3160, 0
      %v3208 = vsel %vm720, %v3161, 0
      %v3211 = vsel %vm720, %v3162, 0
      %v3214 = vsel %vm2770, %v3164, 0
      %3216 = vmatprep.subr.bf16.mxu0 0
      %3217 = vmatpush1.bf16.msra.mxu0 %v3214
      %3218 = vmatprep.subr.bf16.mxu0 0
      %3219 = vmatpush1.bf16.msra.mxu0 0
      %3220 = vmatprep.subr.bf16.mxu0 0
      %3221 = vmatpush1.bf16.msra.mxu0 0
      %3222 = vmatprep.subr.bf16.mxu0 0
      %3223 = vmatpush1.bf16.msra.mxu0 0
      %3224 = vmatprep.subr.bf16.mxu0 0
      %3225 = vmatpush1.bf16.msra.mxu0 0
      %3226 = vmatprep.subr.bf16.mxu0 0
      %3227 = vmatpush1.bf16.msra.mxu0 0
      %3228 = vmatprep.subr.bf16.mxu0 0
      %3229 = vmatpush1.bf16.msra.mxu0 0
      %3230 = vmatprep.subr.bf16.mxu0 0
      %3231 = vmatpush1.bf16.msra.mxu0 0
      %3232 = vmatprep.subr.bf16.mxu0 0
      %3233 = vmatpush1.bf16.msra.mxu0 0
      %3234 = vmatprep.subr.bf16.mxu0 0
      %3235 = vmatpush1.bf16.msra.mxu0 0
      %3236 = vmatprep.subr.bf16.mxu0 0
      %3237 = vmatpush1.bf16.msra.mxu0 0
      %3238 = vmatprep.subr.bf16.mxu0 0
      %3239 = vmatpush1.bf16.msra.mxu0 0
      %3240 = vmatprep.subr.bf16.mxu0 0
      %3241 = vmatpush1.bf16.msra.mxu0 0
      %3242 = vmatprep.subr.bf16.mxu0 0
      %3243 = vmatpush1.bf16.msra.mxu0 0
      %3244 = vmatprep.subr.bf16.mxu0 0
      %3245 = vmatpush1.bf16.msra.mxu0 0
      %3246 = vmatprep.subr.bf16.mxu0 0
      %3247 = vmatpush1.bf16.msra.mxu0 0
      %3248 = vmatprep.mubr.bf16.mxu0 0
      %3249 = vmatmul.mubr.bf16.gmra.mrb[0].mxu0 %v3166
      %v3250 = vpop.f32.mrb[0].mxu0
      %v3251 = vadd.f32 0.0, %v3250
      %v3252 = vpop.f32.mrb[0].mxu0
      %v3253 = vpop.f32.mrb[0].mxu0
      %v3254 = vadd.f32 0.0, %v3253
      %v3255 = vpop.f32.mrb[0].mxu0
      %3256 = vmatprep.mubr.bf16.mxu0 0
      %3257 = vmatmul.mubr.bf16.gmra.mrb[0].mxu0 %v3169
      %v3258 = vpop.f32.mrb[0].mxu0
      %v3259 = vadd.f32 0.0, %v3258
      %v3260 = vpop.f32.mrb[0].mxu0
      %v3261 = vpop.f32.mrb[0].mxu0
      %v3262 = vadd.f32 0.0, %v3261
      %v3263 = vpop.f32.mrb[0].mxu0
      %3264 = vmatprep.mubr.bf16.mxu0 0
      %3265 = vmatmul.mubr.bf16.gmra.mrb[0].mxu0 %v3172
      %v3266 = vpop.f32.mrb[0].mxu0
      %v3267 = vadd.f32 0.0, %v3266
      %v3268 = vpop.f32.mrb[0].mxu0
      %v3269 = vpop.f32.mrb[0].mxu0
      %v3270 = vadd.f32 0.0, %v3269
      %v3271 = vpop.f32.mrb[0].mxu0
      %3272 = vmatprep.mubr.bf16.mxu0 0
      %3273 = vmatmul.mubr.bf16.gmra.mrb[0].mxu0 %v3175
      %v3274 = vpop.f32.mrb[0].mxu0
      %v3275 = vadd.f32 0.0, %v3274
      %v3276 = vpop.f32.mrb[0].mxu0
      %v3277 = vpop.f32.mrb[0].mxu0
      %v3278 = vadd.f32 0.0, %v3277
      %v3279 = vpop.f32.mrb[0].mxu0
      %3280 = vmatprep.mubr.bf16.mxu0 0
      %3281 = vmatmul.mubr.bf16.gmra.mrb[0].mxu0 %v3178
      %v3282 = vpop.f32.mrb[0].mxu0
      %v3283 = vadd.f32 0.0, %v3282
      %v3284 = vpop.f32.mrb[0].mxu0
      %v3285 = vpop.f32.mrb[0].mxu0
      %v3286 = vadd.f32 0.0, %v3285
      %v3287 = vpop.f32.mrb[0].mxu0
      %3288 = vmatprep.mubr.bf16.mxu0 0
      %3289 = vmatmul.mubr.bf16.gmra.mrb[0].mxu0 %v3181
      %v3290 = vpop.f32.mrb[0].mxu0
      %v3291 = vadd.f32 0.0, %v3290
      %v3292 = vpop.f32.mrb[0].mxu0
      %v3293 = vpop.f32.mrb[0].mxu0
      %v3294 = vadd.f32 0.0, %v3293
      %v3295 = vpop.f32.mrb[0].mxu0
      %3296 = vmatprep.mubr.bf16.mxu0 0
      %3297 = vmatmul.mubr.bf16.gmra.mrb[0].mxu0 %v3184
      %v3298 = vpop.f32.mrb[0].mxu0
      %v3299 = vadd.f32 0.0, %v3298
      %v3300 = vpop.f32.mrb[0].mxu0
      %v3301 = vpop.f32.mrb[0].mxu0
      %v3302 = vadd.f32 0.0, %v3301
      %v3303 = vpop.f32.mrb[0].mxu0
      %3304 = vmatprep.mubr.bf16.mxu0 0
      %3305 = vmatmul.mubr.bf16.gmra.mrb[0].mxu0 %v3187
      %v3306 = vpop.f32.mrb[0].mxu0
      %v3307 = vadd.f32 0.0, %v3306
      %v3308 = vpop.f32.mrb[0].mxu0
      %v3309 = vpop.f32.mrb[0].mxu0
      %v3310 = vadd.f32 0.0, %v3309
      %v3311 = vpop.f32.mrb[0].mxu0
      %3312 = vmatprep.mubr.bf16.mxu0 0
      %3313 = vmatmul.mubr.bf16.gmra.mrb[0].mxu0 %v3190
      %v3314 = vpop.f32.mrb[0].mxu0
      %v3315 = vadd.f32 0.0, %v3314
      %v3316 = vpop.f32.mrb[0].mxu0
      %v3317 = vpop.f32.mrb[0].mxu0
      %v3318 = vadd.f32 0.0, %v3317
      %v3319 = vpop.f32.mrb[0].mxu0
      %3320 = vmatprep.mubr.bf16.mxu0 0
      %3321 = vmatmul.mubr.bf16.gmra.mrb[0].mxu0 %v3193
      %v3322 = vpop.f32.mrb[0].mxu0
      %v3323 = vadd.f32 0.0, %v3322
      %v3324 = vpop.f32.mrb[0].mxu0
      %v3325 = vpop.f32.mrb[0].mxu0
      %v3326 = vadd.f32 0.0, %v3325
      %v3327 = vpop.f32.mrb[0].mxu0
      %3328 = vmatprep.mubr.bf16.mxu0 0
      %3329 = vmatmul.mubr.bf16.gmra.mrb[0].mxu0 %v3196
      %v3330 = vpop.f32.mrb[0].mxu0
      %v3331 = vadd.f32 0.0, %v3330
      %v3332 = vpop.f32.mrb[0].mxu0
      %v3333 = vpop.f32.mrb[0].mxu0
      %v3334 = vadd.f32 0.0, %v3333
      %v3335 = vpop.f32.mrb[0].mxu0
      %3336 = vmatprep.mubr.bf16.mxu0 0
      %3337 = vmatmul.mubr.bf16.gmra.mrb[0].mxu0 %v3199
      %v3338 = vpop.f32.mrb[0].mxu0
      %v3339 = vadd.f32 0.0, %v3338
      %v3340 = vpop.f32.mrb[0].mxu0
      %v3341 = vpop.f32.mrb[0].mxu0
      %v3342 = vadd.f32 0.0, %v3341
      %v3343 = vpop.f32.mrb[0].mxu0
      %3344 = vmatprep.mubr.bf16.mxu0 0
      %3345 = vmatmul.mubr.bf16.gmra.mrb[0].mxu0 %v3202
      %v3346 = vpop.f32.mrb[0].mxu0
      %v3347 = vadd.f32 0.0, %v3346
      %v3348 = vpop.f32.mrb[0].mxu0
      %v3349 = vpop.f32.mrb[0].mxu0
      %v3350 = vadd.f32 0.0, %v3349
      %v3351 = vpop.f32.mrb[0].mxu0
      %3352 = vmatprep.mubr.bf16.mxu0 0
      %3353 = vmatmul.mubr.bf16.gmra.mrb[0].mxu0 %v3205
      %v3354 = vpop.f32.mrb[0].mxu0
      %v3355 = vadd.f32 0.0, %v3354
      %v3356 = vpop.f32.mrb[0].mxu0
      %v3357 = vpop.f32.mrb[0].mxu0
      %v3358 = vadd.f32 0.0, %v3357
      %v3359 = vpop.f32.mrb[0].mxu0
      %3360 = vmatprep.mubr.bf16.mxu0 0
      %3361 = vmatmul.mubr.bf16.gmra.mrb[0].mxu0 %v3208
      %v3362 = vpop.f32.mrb[0].mxu0
      %v3363 = vadd.f32 0.0, %v3362
      %v3364 = vpop.f32.mrb[0].mxu0
      %v3365 = vpop.f32.mrb[0].mxu0
      %v3366 = vadd.f32 0.0, %v3365
      %v3367 = vpop.f32.mrb[0].mxu0
      %3368 = vmatprep.mubr.bf16.mxu0 0
      %3369 = vmatmul.mubr.bf16.gmra.mrb[0].mxu0 %v3211
      %v3370 = vpop.f32.mrb[0].mxu0
      %v3371 = vadd.f32 0.0, %v3370
      %v3372 = vpop.f32.mrb[0].mxu0
      %v3373 = vpop.f32.mrb[0].mxu0
      %v3374 = vadd.f32 0.0, %v3373
      %v3375 = vpop.f32.mrb[0].mxu0
      %3376 = vdwg.mxu0
      %v3377 = vadd.f32 %v3021, %v3251
      %v3378 = vadd.f32 %v3024, %v3254
      %v3379 = vadd.f32 %v3029, %v3259
      %v3380 = vadd.f32 %v3032, %v3262
      %v3381 = vadd.f32 %v3037, %v3267
      %v3382 = vadd.f32 %v3040, %v3270
      %v3383 = vadd.f32 %v3045, %v3275
      %v3384 = vadd.f32 %v3048, %v3278
      %v3385 = vadd.f32 %v3053, %v3283
      %v3386 = vadd.f32 %v3056, %v3286
      %v3387 = vadd.f32 %v3061, %v3291
      %v3388 = vadd.f32 %v3064, %v3294
      %v3389 = vadd.f32 %v3069, %v3299
      %v3390 = vadd.f32 %v3072, %v3302
      %v3391 = vadd.f32 %v3077, %v3307
      %v3392 = vadd.f32 %v3080, %v3310
      %v3393 = vadd.f32 %v3085, %v3315
      %v3394 = vadd.f32 %v3088, %v3318
      %v3395 = vadd.f32 %v3093, %v3323
      %v3396 = vadd.f32 %v3096, %v3326
      %v3397 = vadd.f32 %v3101, %v3331
      %v3398 = vadd.f32 %v3104, %v3334
      %v3399 = vadd.f32 %v3109, %v3339
      %v3400 = vadd.f32 %v3112, %v3342
      %v3401 = vadd.f32 %v3117, %v3347
      %v3402 = vadd.f32 %v3120, %v3350
      %v3403 = vadd.f32 %v3125, %v3355
      %v3404 = vadd.f32 %v3128, %v3358
      %v3405 = vadd.f32 %v3133, %v3363
      %v3406 = vadd.f32 %v3136, %v3366
      %v3407 = vadd.f32 %v3141, %v3371
      %v3408 = vadd.f32 %v3144, %v3374
      %v3409 = vpack.c.bf16 %v2656, %v2655
      %v3410 = vpack.c.bf16 %v2658, %v2657
      %v3411 = vpack.c.bf16 %v2660, %v2659
      %v3412 = vpack.c.bf16 %v2662, %v2661
      %v3413 = vpack.c.bf16 %v2664, %v2663
      %v3414 = vpack.c.bf16 %v2666, %v2665
      %v3415 = vpack.c.bf16 %v2668, %v2667
      %v3416 = vpack.c.bf16 %v2670, %v2669
      %v3417 = vpack.c.bf16 %v2672, %v2671
      %v3418 = vpack.c.bf16 %v2674, %v2673
      %v3419 = vpack.c.bf16 %v2676, %v2675
      %v3420 = vpack.c.bf16 %v2678, %v2677
      %v3421 = vpack.c.bf16 %v2680, %v2679
      %v3422 = vpack.c.bf16 %v2682, %v2681
      %v3423 = vpack.c.bf16 %v2684, %v2683
      %v3424 = vpack.c.bf16 %v2686, %v2685
      %s3425 = scalar_lea.vmem %s3, 6
      %v3426 = vld [vmem:[%s3425] sm:$0x3]
      %v3428 = vsel %vm720, %v3409, 0
      %v3431 = vsel %vm720, %v3410, 0
      %v3434 = vsel %vm720, %v3411, 0
      %v3437 = vsel %vm720, %v3412, 0
      %v3440 = vsel %vm720, %v3413, 0
      %v3443 = vsel %vm720, %v3414, 0
      %v3446 = vsel %vm720, %v3415, 0
      %v3449 = vsel %vm720, %v3416, 0
      %v3452 = vsel %vm720, %v3417, 0
      %v3455 = vsel %vm720, %v3418, 0
      %v3458 = vsel %vm720, %v3419, 0
      %v3461 = vsel %vm720, %v3420, 0
      %v3464 = vsel %vm720, %v3421, 0
      %v3467 = vsel %vm720, %v3422, 0
      %v3470 = vsel %vm720, %v3423, 0
      %v3473 = vsel %vm720, %v3424, 0
      %v3476 = vsel %vm2770, %v3426, 0
      %3478 = vmatprep.subr.bf16.mxu0 0
      %3479 = vmatpush1.bf16.msra.mxu0 %v3476
      %3480 = vmatprep.subr.bf16.mxu0 0
      %3481 = vmatpush1.bf16.msra.mxu0 0
      %3482 = vmatprep.subr.bf16.mxu0 0
      %3483 = vmatpush1.bf16.msra.mxu0 0
      %3484 = vmatprep.subr.bf16.mxu0 0
      %3485 = vmatpush1.bf16.msra.mxu0 0
      %3486 = vmatprep.subr.bf16.mxu0 0
      %3487 = vmatpush1.bf16.msra.mxu0 0
      %3488 = vmatprep.subr.bf16.mxu0 0
      %3489 = vmatpush1.bf16.msra.mxu0 0
      %3490 = vmatprep.subr.bf16.mxu0 0
      %3491 = vmatpush1.bf16.msra.mxu0 0
      %3492 = vmatprep.subr.bf16.mxu0 0
      %3493 = vmatpush1.bf16.msra.mxu0 0
      %3494 = vmatprep.subr.bf16.mxu0 0
      %3495 = vmatpush1.bf16.msra.mxu0 0
      %3496 = vmatprep.subr.bf16.mxu0 0
      %3497 = vmatpush1.bf16.msra.mxu0 0
      %3498 = vmatprep.subr.bf16.mxu0 0
      %3499 = vmatpush1.bf16.msra.mxu0 0
      %3500 = vmatprep.subr.bf16.mxu0 0
      %3501 = vmatpush1.bf16.msra.mxu0 0
      %3502 = vmatprep.subr.bf16.mxu0 0
      %3503 = vmatpush1.bf16.msra.mxu0 0
      %3504 = vmatprep.subr.bf16.mxu0 0
      %3505 = vmatpush1.bf16.msra.mxu0 0
      %3506 = vmatprep.subr.bf16.mxu0 0
      %3507 = vmatpush1.bf16.msra.mxu0 0
      %3508 = vmatprep.subr.bf16.mxu0 0
      %3509 = vmatpush1.bf16.msra.mxu0 0
      %3510 = vmatprep.mubr.bf16.mxu0 0
      %3511 = vmatmul.mubr.bf16.gmra.mrb[0].mxu0 %v3428
      %v3512 = vpop.f32.mrb[0].mxu0
      %v3513 = vadd.f32 0.0, %v3512
      %v3514 = vpop.f32.mrb[0].mxu0
      %v3515 = vpop.f32.mrb[0].mxu0
      %v3516 = vadd.f32 0.0, %v3515
      %v3517 = vpop.f32.mrb[0].mxu0
      %3518 = vmatprep.mubr.bf16.mxu0 0
      %3519 = vmatmul.mubr.bf16.gmra.mrb[0].mxu0 %v3431
      %v3520 = vpop.f32.mrb[0].mxu0
      %v3521 = vadd.f32 0.0, %v3520
      %v3522 = vpop.f32.mrb[0].mxu0
      %v3523 = vpop.f32.mrb[0].mxu0
      %v3524 = vadd.f32 0.0, %v3523
      %v3525 = vpop.f32.mrb[0].mxu0
      %3526 = vmatprep.mubr.bf16.mxu0 0
      %3527 = vmatmul.mubr.bf16.gmra.mrb[0].mxu0 %v3434
      %v3528 = vpop.f32.mrb[0].mxu0
      %v3529 = vadd.f32 0.0, %v3528
      %v3530 = vpop.f32.mrb[0].mxu0
      %v3531 = vpop.f32.mrb[0].mxu0
      %v3532 = vadd.f32 0.0, %v3531
      %v3533 = vpop.f32.mrb[0].mxu0
      %3534 = vmatprep.mubr.bf16.mxu0 0
      %3535 = vmatmul.mubr.bf16.gmra.mrb[0].mxu0 %v3437
      %v3536 = vpop.f32.mrb[0].mxu0
      %v3537 = vadd.f32 0.0, %v3536
      %v3538 = vpop.f32.mrb[0].mxu0
      %v3539 = vpop.f32.mrb[0].mxu0
      %v3540 = vadd.f32 0.0, %v3539
      %v3541 = vpop.f32.mrb[0].mxu0
      %3542 = vmatprep.mubr.bf16.mxu0 0
      %3543 = vmatmul.mubr.bf16.gmra.mrb[0].mxu0 %v3440
      %v3544 = vpop.f32.mrb[0].mxu0
      %v3545 = vadd.f32 0.0, %v3544
      %v3546 = vpop.f32.mrb[0].mxu0
      %v3547 = vpop.f32.mrb[0].mxu0
      %v3548 = vadd.f32 0.0, %v3547
      %v3549 = vpop.f32.mrb[0].mxu0
      %3550 = vmatprep.mubr.bf16.mxu0 0
      %3551 = vmatmul.mubr.bf16.gmra.mrb[0].mxu0 %v3443
      %v3552 = vpop.f32.mrb[0].mxu0
      %v3553 = vadd.f32 0.0, %v3552
      %v3554 = vpop.f32.mrb[0].mxu0
      %v3555 = vpop.f32.mrb[0].mxu0
      %v3556 = vadd.f32 0.0, %v3555
      %v3557 = vpop.f32.mrb[0].mxu0
      %3558 = vmatprep.mubr.bf16.mxu0 0
      %3559 = vmatmul.mubr.bf16.gmra.mrb[0].mxu0 %v3446
      %v3560 = vpop.f32.mrb[0].mxu0
      %v3561 = vadd.f32 0.0, %v3560
      %v3562 = vpop.f32.mrb[0].mxu0
      %v3563 = vpop.f32.mrb[0].mxu0
      %v3564 = vadd.f32 0.0, %v3563
      %v3565 = vpop.f32.mrb[0].mxu0
      %3566 = vmatprep.mubr.bf16.mxu0 0
      %3567 = vmatmul.mubr.bf16.gmra.mrb[0].mxu0 %v3449
      %v3568 = vpop.f32.mrb[0].mxu0
      %v3569 = vadd.f32 0.0, %v3568
      %v3570 = vpop.f32.mrb[0].mxu0
      %v3571 = vpop.f32.mrb[0].mxu0
      %v3572 = vadd.f32 0.0, %v3571
      %v3573 = vpop.f32.mrb[0].mxu0
      %3574 = vmatprep.mubr.bf16.mxu0 0
      %3575 = vmatmul.mubr.bf16.gmra.mrb[0].mxu0 %v3452
      %v3576 = vpop.f32.mrb[0].mxu0
      %v3577 = vadd.f32 0.0, %v3576
      %v3578 = vpop.f32.mrb[0].mxu0
      %v3579 = vpop.f32.mrb[0].mxu0
      %v3580 = vadd.f32 0.0, %v3579
      %v3581 = vpop.f32.mrb[0].mxu0
      %3582 = vmatprep.mubr.bf16.mxu0 0
      %3583 = vmatmul.mubr.bf16.gmra.mrb[0].mxu0 %v3455
      %v3584 = vpop.f32.mrb[0].mxu0
      %v3585 = vadd.f32 0.0, %v3584
      %v3586 = vpop.f32.mrb[0].mxu0
      %v3587 = vpop.f32.mrb[0].mxu0
      %v3588 = vadd.f32 0.0, %v3587
      %v3589 = vpop.f32.mrb[0].mxu0
      %3590 = vmatprep.mubr.bf16.mxu0 0
      %3591 = vmatmul.mubr.bf16.gmra.mrb[0].mxu0 %v3458
      %v3592 = vpop.f32.mrb[0].mxu0
      %v3593 = vadd.f32 0.0, %v3592
      %v3594 = vpop.f32.mrb[0].mxu0
      %v3595 = vpop.f32.mrb[0].mxu0
      %v3596 = vadd.f32 0.0, %v3595
      %v3597 = vpop.f32.mrb[0].mxu0
      %3598 = vmatprep.mubr.bf16.mxu0 0
      %3599 = vmatmul.mubr.bf16.gmra.mrb[0].mxu0 %v3461
      %v3600 = vpop.f32.mrb[0].mxu0
      %v3601 = vadd.f32 0.0, %v3600
      %v3602 = vpop.f32.mrb[0].mxu0
      %v3603 = vpop.f32.mrb[0].mxu0
      %v3604 = vadd.f32 0.0, %v3603
      %v3605 = vpop.f32.mrb[0].mxu0
      %3606 = vmatprep.mubr.bf16.mxu0 0
      %3607 = vmatmul.mubr.bf16.gmra.mrb[0].mxu0 %v3464
      %v3608 = vpop.f32.mrb[0].mxu0
      %v3609 = vadd.f32 0.0, %v3608
      %v3610 = vpop.f32.mrb[0].mxu0
      %v3611 = vpop.f32.mrb[0].mxu0
      %v3612 = vadd.f32 0.0, %v3611
      %v3613 = vpop.f32.mrb[0].mxu0
      %3614 = vmatprep.mubr.bf16.mxu0 0
      %3615 = vmatmul.mubr.bf16.gmra.mrb[0].mxu0 %v3467
      %v3616 = vpop.f32.mrb[0].mxu0
      %v3617 = vadd.f32 0.0, %v3616
      %v3618 = vpop.f32.mrb[0].mxu0
      %v3619 = vpop.f32.mrb[0].mxu0
      %v3620 = vadd.f32 0.0, %v3619
      %v3621 = vpop.f32.mrb[0].mxu0
      %3622 = vmatprep.mubr.bf16.mxu0 0
      %3623 = vmatmul.mubr.bf16.gmra.mrb[0].mxu0 %v3470
      %v3624 = vpop.f32.mrb[0].mxu0
      %v3625 = vadd.f32 0.0, %v3624
      %v3626 = vpop.f32.mrb[0].mxu0
      %v3627 = vpop.f32.mrb[0].mxu0
      %v3628 = vadd.f32 0.0, %v3627
      %v3629 = vpop.f32.mrb[0].mxu0
      %3630 = vmatprep.mubr.bf16.mxu0 0
      %3631 = vmatmul.mubr.bf16.gmra.mrb[0].mxu0 %v3473
      %v3632 = vpop.f32.mrb[0].mxu0
      %v3633 = vadd.f32 0.0, %v3632
      %v3634 = vpop.f32.mrb[0].mxu0
      %v3635 = vpop.f32.mrb[0].mxu0
      %v3636 = vadd.f32 0.0, %v3635
      %v3637 = vpop.f32.mrb[0].mxu0
      %3638 = vdwg.mxu0
      %v3639 = vadd.f32 %v3377, %v3513
      %v3640 = vadd.f32 %v3378, %v3516
      %v3641 = vadd.f32 %v3379, %v3521
      %v3642 = vadd.f32 %v3380, %v3524
      %v3643 = vadd.f32 %v3381, %v3529
      %v3644 = vadd.f32 %v3382, %v3532
      %v3645 = vadd.f32 %v3383, %v3537
      %v3646 = vadd.f32 %v3384, %v3540
      %v3647 = vadd.f32 %v3385, %v3545
      %v3648 = vadd.f32 %v3386, %v3548
      %v3649 = vadd.f32 %v3387, %v3553
      %v3650 = vadd.f32 %v3388, %v3556
      %v3651 = vadd.f32 %v3389, %v3561
      %v3652 = vadd.f32 %v3390, %v3564
      %v3653 = vadd.f32 %v3391, %v3569
      %v3654 = vadd.f32 %v3392, %v3572
      %v3655 = vadd.f32 %v3393, %v3577
      %v3656 = vadd.f32 %v3394, %v3580
      %v3657 = vadd.f32 %v3395, %v3585
      %v3658 = vadd.f32 %v3396, %v3588
      %v3659 = vadd.f32 %v3397, %v3593
      %v3660 = vadd.f32 %v3398, %v3596
      %v3661 = vadd.f32 %v3399, %v3601
      %v3662 = vadd.f32 %v3400, %v3604
      %v3663 = vadd.f32 %v3401, %v3609
      %v3664 = vadd.f32 %v3402, %v3612
      %v3665 = vadd.f32 %v3403, %v3617
      %v3666 = vadd.f32 %v3404, %v3620
      %v3667 = vadd.f32 %v3405, %v3625
      %v3668 = vadd.f32 %v3406, %v3628
      %v3669 = vadd.f32 %v3407, %v3633
      %v3670 = vadd.f32 %v3408, %v3636
      %v3671 = vld [vmem:[%s4] sm:$0x1]
      %v3673 = vlaneseq
      %v3674 = vshrl.u32 %v3673, 7
      %v3675 = vsub.s32 0, %v3674
      %v3676 = vrot.slane %v3671, %v3675
      %v3678 = vadd.f32 %v3639, %v3676
      %v3679 = vadd.f32 %v3640, %v3676
      %v3680 = vadd.f32 %v3641, %v3676
      %v3681 = vadd.f32 %v3642, %v3676
      %v3682 = vadd.f32 %v3643, %v3676
      %v3683 = vadd.f32 %v3644, %v3676
      %v3684 = vadd.f32 %v3645, %v3676
      %v3685 = vadd.f32 %v3646, %v3676
      %v3686 = vadd.f32 %v3647, %v3676
      %v3687 = vadd.f32 %v3648, %v3676
      %v3688 = vadd.f32 %v3649, %v3676
      %v3689 = vadd.f32 %v3650, %v3676
      %v3690 = vadd.f32 %v3651, %v3676
      %v3691 = vadd.f32 %v3652, %v3676
      %v3692 = vadd.f32 %v3653, %v3676
      %v3693 = vadd.f32 %v3654, %v3676
      %v3694 = vadd.f32 %v3655, %v3676
      %v3695 = vadd.f32 %v3656, %v3676
      %v3696 = vadd.f32 %v3657, %v3676
      %v3697 = vadd.f32 %v3658, %v3676
      %v3698 = vadd.f32 %v3659, %v3676
      %v3699 = vadd.f32 %v3660, %v3676
      %v3700 = vadd.f32 %v3661, %v3676
      %v3701 = vadd.f32 %v3662, %v3676
      %v3702 = vadd.f32 %v3663, %v3676
      %v3703 = vadd.f32 %v3664, %v3676
      %v3704 = vadd.f32 %v3665, %v3676
      %v3705 = vadd.f32 %v3666, %v3676
      %v3706 = vadd.f32 %v3667, %v3676
      %v3707 = vadd.f32 %v3668, %v3676
      %v3708 = vadd.f32 %v3669, %v3676
      %v3709 = vadd.f32 %v3670, %v3676
      %v3710 = vxor.u32 %v3678, 2147483648
      %v3711 = vxor.u32 %v3679, 2147483648
      %v3712 = vxor.u32 %v3680, 2147483648
      %v3713 = vxor.u32 %v3681, 2147483648
      %v3714 = vxor.u32 %v3682, 2147483648
      %v3715 = vxor.u32 %v3683, 2147483648
      %v3716 = vxor.u32 %v3684, 2147483648
      %v3717 = vxor.u32 %v3685, 2147483648
      %v3718 = vxor.u32 %v3686, 2147483648
      %v3719 = vxor.u32 %v3687, 2147483648
      %v3720 = vxor.u32 %v3688, 2147483648
      %v3721 = vxor.u32 %v3689, 2147483648
      %v3722 = vxor.u32 %v3690, 2147483648
      %v3723 = vxor.u32 %v3691, 2147483648
      %v3724 = vxor.u32 %v3692, 2147483648
      %v3725 = vxor.u32 %v3693, 2147483648
      %v3726 = vxor.u32 %v3694, 2147483648
      %v3727 = vxor.u32 %v3695, 2147483648
      %v3728 = vxor.u32 %v3696, 2147483648
      %v3729 = vxor.u32 %v3697, 2147483648
      %v3730 = vxor.u32 %v3698, 2147483648
      %v3731 = vxor.u32 %v3699, 2147483648
      %v3732 = vxor.u32 %v3700, 2147483648
      %v3733 = vxor.u32 %v3701, 2147483648
      %v3734 = vxor.u32 %v3702, 2147483648
      %v3735 = vxor.u32 %v3703, 2147483648
      %v3736 = vxor.u32 %v3704, 2147483648
      %v3737 = vxor.u32 %v3705, 2147483648
      %v3738 = vxor.u32 %v3706, 2147483648
      %v3739 = vxor.u32 %v3707, 2147483648
      %v3740 = vxor.u32 %v3708, 2147483648
      %v3741 = vxor.u32 %v3709, 2147483648
      %v3742 = vmul.f32 %v3710, 1.442695
      %v3743 = vpow.pop %v3742
      %v3744 = vmul.f32 %v3711, 1.442695
      %v3745 = vpow.pop %v3744
      %v3746 = vmul.f32 %v3712, 1.442695
      %v3747 = vpow.pop %v3746
      %v3748 = vmul.f32 %v3713, 1.442695
      %v3749 = vpow.pop %v3748
      %v3750 = vmul.f32 %v3714, 1.442695
      %v3751 = vpow.pop %v3750
      %v3752 = vmul.f32 %v3715, 1.442695
      %v3753 = vpow.pop %v3752
      %v3754 = vmul.f32 %v3716, 1.442695
      %v3755 = vpow.pop %v3754
      %v3756 = vmul.f32 %v3717, 1.442695
      %v3757 = vpow.pop %v3756
      %v3758 = vmul.f32 %v3718, 1.442695
      %v3759 = vpow.pop %v3758
      %v3760 = vmul.f32 %v3719, 1.442695
      %v3761 = vpow.pop %v3760
      %v3762 = vmul.f32 %v3720, 1.442695
      %v3763 = vpow.pop %v3762
      %v3764 = vmul.f32 %v3721, 1.442695
      %v3765 = vpow.pop %v3764
      %v3766 = vmul.f32 %v3722, 1.442695
      %v3767 = vpow.pop %v3766
      %v3768 = vmul.f32 %v3723, 1.442695
      %v3769 = vpow.pop %v3768
      %v3770 = vmul.f32 %v3724, 1.442695
      %v3771 = vpow.pop %v3770
      %v3772 = vmul.f32 %v3725, 1.442695
      %v3773 = vpow.pop %v3772
      %v3774 = vmul.f32 %v3726, 1.442695
      %v3775 = vpow.pop %v3774
      %v3776 = vmul.f32 %v3727, 1.442695
      %v3777 = vpow.pop %v3776
      %v3778 = vmul.f32 %v3728, 1.442695
      %v3779 = vpow.pop %v3778
      %v3780 = vmul.f32 %v3729, 1.442695
      %v3781 = vpow.pop %v3780
      %v3782 = vmul.f32 %v3730, 1.442695
      %v3783 = vpow.pop %v3782
      %v3784 = vmul.f32 %v3731, 1.442695
      %v3785 = vpow.pop %v3784
      %v3786 = vmul.f32 %v3732, 1.442695
      %v3787 = vpow.pop %v3786
      %v3788 = vmul.f32 %v3733, 1.442695
      %v3789 = vpow.pop %v3788
      %v3790 = vmul.f32 %v3734, 1.442695
      %v3791 = vpow.pop %v3790
      %v3792 = vmul.f32 %v3735, 1.442695
      %v3793 = vpow.pop %v3792
      %v3794 = vmul.f32 %v3736, 1.442695
      %v3795 = vpow.pop %v3794
      %v3796 = vmul.f32 %v3737, 1.442695
      %v3797 = vpow.pop %v3796
      %v3798 = vmul.f32 %v3738, 1.442695
      %v3799 = vpow.pop %v3798
      %v3800 = vmul.f32 %v3739, 1.442695
      %v3801 = vpow.pop %v3800
      %v3802 = vmul.f32 %v3740, 1.442695
      %v3803 = vpow.pop %v3802
      %v3804 = vmul.f32 %v3741, 1.442695
      %v3805 = vpow.pop %v3804
      %v3806 = vadd.f32 %v3743, 1.0
      %v3807 = vadd.f32 %v3745, 1.0
      %v3808 = vadd.f32 %v3747, 1.0
      %v3809 = vadd.f32 %v3749, 1.0
      %v3810 = vadd.f32 %v3751, 1.0
      %v3811 = vadd.f32 %v3753, 1.0
      %v3812 = vadd.f32 %v3755, 1.0
      %v3813 = vadd.f32 %v3757, 1.0
      %v3814 = vadd.f32 %v3759, 1.0
      %v3815 = vadd.f32 %v3761, 1.0
      %v3816 = vadd.f32 %v3763, 1.0
      %v3817 = vadd.f32 %v3765, 1.0
      %v3818 = vadd.f32 %v3767, 1.0
      %v3819 = vadd.f32 %v3769, 1.0
      %v3820 = vadd.f32 %v3771, 1.0
      %v3821 = vadd.f32 %v3773, 1.0
      %v3822 = vadd.f32 %v3775, 1.0
      %v3823 = vadd.f32 %v3777, 1.0
      %v3824 = vadd.f32 %v3779, 1.0
      %v3825 = vadd.f32 %v3781, 1.0
      %v3826 = vadd.f32 %v3783, 1.0
      %v3827 = vadd.f32 %v3785, 1.0
      %v3828 = vadd.f32 %v3787, 1.0
      %v3829 = vadd.f32 %v3789, 1.0
      %v3830 = vadd.f32 %v3791, 1.0
      %v3831 = vadd.f32 %v3793, 1.0
      %v3832 = vadd.f32 %v3795, 1.0
      %v3833 = vadd.f32 %v3797, 1.0
      %v3834 = vadd.f32 %v3799, 1.0
      %v3835 = vadd.f32 %v3801, 1.0
      %v3836 = vadd.f32 %v3803, 1.0
      %v3837 = vadd.f32 %v3805, 1.0
      %v3838 = vrcp.pop %v3806
      %v3839 = vmul.f32 1.0, %v3838
      %v3840 = vrcp.pop %v3807
      %v3841 = vmul.f32 1.0, %v3840
      %v3842 = vrcp.pop %v3808
      %v3843 = vmul.f32 1.0, %v3842
      %v3844 = vrcp.pop %v3809
      %v3845 = vmul.f32 1.0, %v3844
      %v3846 = vrcp.pop %v3810
      %v3847 = vmul.f32 1.0, %v3846
      %v3848 = vrcp.pop %v3811
      %v3849 = vmul.f32 1.0, %v3848
      %v3850 = vrcp.pop %v3812
      %v3851 = vmul.f32 1.0, %v3850
      %v3852 = vrcp.pop %v3813
      %v3853 = vmul.f32 1.0, %v3852
      %v3854 = vrcp.pop %v3814
      %v3855 = vmul.f32 1.0, %v3854
      %v3856 = vrcp.pop %v3815
      %v3857 = vmul.f32 1.0, %v3856
      %v3858 = vrcp.pop %v3816
      %v3859 = vmul.f32 1.0, %v3858
      %v3860 = vrcp.pop %v3817
      %v3861 = vmul.f32 1.0, %v3860
      %v3862 = vrcp.pop %v3818
      %v3863 = vmul.f32 1.0, %v3862
      %v3864 = vrcp.pop %v3819
      %v3865 = vmul.f32 1.0, %v3864
      %v3866 = vrcp.pop %v3820
      %v3867 = vmul.f32 1.0, %v3866
      %v3868 = vrcp.pop %v3821
      %v3869 = vmul.f32 1.0, %v3868
      %v3870 = vrcp.pop %v3822
      %v3871 = vmul.f32 1.0, %v3870
      %v3872 = vrcp.pop %v3823
      %v3873 = vmul.f32 1.0, %v3872
      %v3874 = vrcp.pop %v3824
      %v3875 = vmul.f32 1.0, %v3874
      %v3876 = vrcp.pop %v3825
      %v3877 = vmul.f32 1.0, %v3876
      %v3878 = vrcp.pop %v3826
      %v3879 = vmul.f32 1.0, %v3878
      %v3880 = vrcp.pop %v3827
      %v3881 = vmul.f32 1.0, %v3880
      %v3882 = vrcp.pop %v3828
      %v3883 = vmul.f32 1.0, %v3882
      %v3884 = vrcp.pop %v3829
      %v3885 = vmul.f32 1.0, %v3884
      %v3886 = vrcp.pop %v3830
      %v3887 = vmul.f32 1.0, %v3886
      %v3888 = vrcp.pop %v3831
      %v3889 = vmul.f32 1.0, %v3888
      %v3890 = vrcp.pop %v3832
      %v3891 = vmul.f32 1.0, %v3890
      %v3892 = vrcp.pop %v3833
      %v3893 = vmul.f32 1.0, %v3892
      %v3894 = vrcp.pop %v3834
      %v3895 = vmul.f32 1.0, %v3894
      %v3896 = vrcp.pop %v3835
      %v3897 = vmul.f32 1.0, %v3896
      %v3898 = vrcp.pop %v3836
      %v3899 = vmul.f32 1.0, %v3898
      %v3900 = vrcp.pop %v3837
      %v3901 = vmul.f32 1.0, %v3900
      %v3902 = vmul.f32 %v3678, %v3839
      %v3903 = vmul.f32 %v3679, %v3841
      %v3904 = vmul.f32 %v3680, %v3843
      %v3905 = vmul.f32 %v3681, %v3845
      %v3906 = vmul.f32 %v3682, %v3847
      %v3907 = vmul.f32 %v3683, %v3849
      %v3908 = vmul.f32 %v3684, %v3851
      %v3909 = vmul.f32 %v3685, %v3853
      %v3910 = vmul.f32 %v3686, %v3855
      %v3911 = vmul.f32 %v3687, %v3857
      %v3912 = vmul.f32 %v3688, %v3859
      %v3913 = vmul.f32 %v3689, %v3861
      %v3914 = vmul.f32 %v3690, %v3863
      %v3915 = vmul.f32 %v3691, %v3865
      %v3916 = vmul.f32 %v3692, %v3867
      %v3917 = vmul.f32 %v3693, %v3869
      %v3918 = vmul.f32 %v3694, %v3871
      %v3919 = vmul.f32 %v3695, %v3873
      %v3920 = vmul.f32 %v3696, %v3875
      %v3921 = vmul.f32 %v3697, %v3877
      %v3922 = vmul.f32 %v3698, %v3879
      %v3923 = vmul.f32 %v3699, %v3881
      %v3924 = vmul.f32 %v3700, %v3883
      %v3925 = vmul.f32 %v3701, %v3885
      %v3926 = vmul.f32 %v3702, %v3887
      %v3927 = vmul.f32 %v3703, %v3889
      %v3928 = vmul.f32 %v3704, %v3891
      %v3929 = vmul.f32 %v3705, %v3893
      %v3930 = vmul.f32 %v3706, %v3895
      %v3931 = vmul.f32 %v3707, %v3897
      %v3932 = vmul.f32 %v3708, %v3899
      %v3933 = vmul.f32 %v3709, %v3901
      %3934 = vst.msk [vmem:[%s224] sm:$0xff] %vm282, %v3902
      %3935 = vst.msk [vmem:[%s224 + $0x8] sm:$0xff] %vm282, %v3903
      %3936 = vst.msk [vmem:[%s224 + $0x10] sm:$0xff] %vm282, %v3904
      %3937 = vst.msk [vmem:[%s224 + $0x18] sm:$0xff] %vm282, %v3905
      %3938 = vst.msk [vmem:[%s224 + $0x20] sm:$0xff] %vm282, %v3906
      %3939 = vst.msk [vmem:[%s224 + $0x28] sm:$0xff] %vm282, %v3907
      %3940 = vst.msk [vmem:[%s224 + $0x30] sm:$0xff] %vm282, %v3908
      %3941 = vst.msk [vmem:[%s224 + $0x38] sm:$0xff] %vm282, %v3909
      %3942 = vst.msk [vmem:[%s224 + $0x40] sm:$0xff] %vm282, %v3910
      %3943 = vst.msk [vmem:[%s224 + $0x48] sm:$0xff] %vm282, %v3911
      %3944 = vst.msk [vmem:[%s224 + $0x50] sm:$0xff] %vm282, %v3912
      %3945 = vst.msk [vmem:[%s224 + $0x58] sm:$0xff] %vm282, %v3913
      %3946 = vst.msk [vmem:[%s224 + $0x60] sm:$0xff] %vm282, %v3914
      %3947 = vst.msk [vmem:[%s224 + $0x68] sm:$0xff] %vm282, %v3915
      %3948 = vst.msk [vmem:[%s224 + $0x70] sm:$0xff] %vm282, %v3916
      %3949 = vst.msk [vmem:[%s224 + $0x78] sm:$0xff] %vm282, %v3917
      %3950 = vst.msk [vmem:[%s224 + $0x80] sm:$0xff] %vm282, %v3918
      %3951 = vst.msk [vmem:[%s224 + $0x88] sm:$0xff] %vm282, %v3919
      %3952 = vst.msk [vmem:[%s224 + $0x90] sm:$0xff] %vm282, %v3920
      %3953 = vst.msk [vmem:[%s224 + $0x98] sm:$0xff] %vm282, %v3921
      %3954 = vst.msk [vmem:[%s224 + $0xa0] sm:$0xff] %vm282, %v3922
      %3955 = vst.msk [vmem:[%s224 + $0xa8] sm:$0xff] %vm282, %v3923
      %3956 = vst.msk [vmem:[%s224 + $0xb0] sm:$0xff] %vm282, %v3924
      %3957 = vst.msk [vmem:[%s224 + $0xb8] sm:$0xff] %vm282, %v3925
      %3958 = vst.msk [vmem:[%s224 + $0xc0] sm:$0xff] %vm282, %v3926
      %3959 = vst.msk [vmem:[%s224 + $0xc8] sm:$0xff] %vm282, %v3927
      %3960 = vst.msk [vmem:[%s224 + $0xd0] sm:$0xff] %vm282, %v3928
      %3961 = vst.msk [vmem:[%s224 + $0xd8] sm:$0xff] %vm282, %v3929
      %3962 = vst.msk [vmem:[%s224 + $0xe0] sm:$0xff] %vm282, %v3930
      %3963 = vst.msk [vmem:[%s224 + $0xe8] sm:$0xff] %vm282, %v3931
      %3964 = vst.msk [vmem:[%s224 + $0xf0] sm:$0xff] %vm282, %v3932
      %3965 = vst.msk [vmem:[%s224 + $0xf8] sm:$0xff] %vm282, %v3933
      %p3966 = scmp.lt.s32.totalorder %s16, 1
      %s3967 = scalar_select %p3966, %s16, 1
      %s3968 = smul.addr %s3967, 32
      %s3969 = smul.addr %s3968, 8
      %s3970 = scalar_lea.vmem %s5, %s3969
      // Predicated region
      $region41: #{tpu_custom_call.1} parent=39 // pred_check
        %p3971 = pneg %p144
      $region42: #{tpu_custom_call.1} parent=39 // pred_check_branch
        %3973 = sbr.rel (%p3971) target = $region44
      $region43: #{tpu_custom_call.1} parent=39 // pred_region
        _
      $region44: #{tpu_custom_call.1} parent=39 // pred_fallthru
        _
    $region40: #{tpu_custom_call.1} parent=5 // pred_fallthru
      _
    %p3974 = scmp.le.s32.totalorder 2, %s11
    // Predicated region
    $region45: #{tpu_custom_call.1} parent=5 // pred_check
      %p3975 = pneg %p3974
    $region46: #{tpu_custom_call.1} parent=5 // pred_check_branch
      %3977 = sbr.rel (%p3975) target = $region48
    $region47: #{tpu_custom_call.1} parent=5 // pred_region
      %s3978 = ssub.s32 %s11, 2
      // Predicated region
      $region49: #{tpu_custom_call.1} parent=47 // pred_check
        %p3979 = pneg %p150
      $region50: #{tpu_custom_call.1} parent=47 // pred_check_branch
        %3981 = sbr.rel (%p3979) target = $region52
      $region51: #{tpu_custom_call.1} parent=47 // pred_region
        %p3982 = scmp.lt.s32.totalorder %s17, 1
        %s3983 = scalar_select %p3982, %s17, 1
        %s3984 = smul.addr %s3983, 32
        %s3985 = smul.addr %s3984, 8
        %s3986 = scalar_lea.vmem %s5, %s3985
      $region52: #{tpu_custom_call.1} parent=47 // pred_fallthru
        _
    $region48: #{tpu_custom_call.1} parent=5 // pred_fallthru
      _
  $region6: #{tpu_custom_call.1} parent=0 // loop_footer
    %s15 = sadd.s32 1, %s11
  $region7: #{tpu_custom_call.1} parent=0 // loop_footer_branch
    %10 = sbr.rel target = $region3
  $region8: #{tpu_custom_call.1} parent=0 // loop_exit
    _

</llo_original>
